<compile_context>
chip_gen: v6e
topology: v6e:2x2x1
jax: 0.10.0
libtpu: 0.0.40
codegen_flags: <defaults>
</compile_context>

<pallas_src>
import jax
import jax.numpy as jnp
from jax import lax
from jax.experimental import pallas as pl
from jax.experimental.pallas import tpu as pltpu


def linear_kernel(x_ref, w_ref, b_ref, o_ref):
    """y = x @ w.T + b, all f32.

    x_ref : (B, K) f32
    w_ref : (N, K) f32  (torch nn.Linear.weight layout, K on the lane dim)
    b_ref : (1, N) f32
    o_ref : (B, N) f32
    """
    acc = lax.dot_general(
        x_ref[...], w_ref[...],
        dimension_numbers=(((1,), (1,)), ((), ())),   # contract over K (trans_b)
        preferred_element_type=jnp.float32,
    )
    o_ref[...] = acc + b_ref[...]                     # (1, N) broadcasts over rows


@jax.jit
def dummy_inner_model_forward(x, w, b):
    """Forward pass of DummyInnerModel.

    x : (B, C, H, W) float32   NCHW input, like the PyTorch module
    w : (N, K)       float32   torch nn.Linear.weight layout
    b : (N,)         float32   torch nn.Linear.bias
    Returns (B, N) float32.
    """
    B = x.shape[0]
    xf = x.reshape(B, -1)                  # matches x.view(x.size(0), -1)
    N = w.shape[0]

    # Total VMEM footprint: x ~384 KiB + w ~384 KiB (sublane-padded) + a few KiB
    # for bias/output -> single-shot, no grid, no pipelining.
    out = pl.pallas_call(
        linear_kernel,
        out_shape=jax.ShapeDtypeStruct((B, N), jnp.float32),
        in_specs=[
            pl.BlockSpec(memory_space=pltpu.MemorySpace.VMEM),  # x  (B, K)
            pl.BlockSpec(memory_space=pltpu.MemorySpace.VMEM),  # w  (N, K)
            pl.BlockSpec(memory_space=pltpu.MemorySpace.VMEM),  # b  (1, N)
        ],
        out_specs=pl.BlockSpec(memory_space=pltpu.MemorySpace.VMEM),
    )(xf, w, b.reshape(1, N))

    return out


if __name__ == "__main__":
    # Shapes implied by the module: in_features = 3*64*64 = 12288, classes = 2.
    B, C, H, W = 2, 3, 64, 64
    K = C * H * W
    N = 2

    key = jax.random.PRNGKey(0)
    kx, kw, kb = jax.random.split(key, 3)

    x = jax.random.normal(kx, (B, C, H, W), dtype=jnp.float32)

    # Deterministic parameter init (uniform like nn.Linear's default bound),
    # kept in torch layout: weight (N, K), bias (N,).
    bound = 1.0 / jnp.sqrt(K)
    w_torch = jax.random.uniform(kw, (N, K), jnp.float32, -bound, bound)
    b_torch = jax.random.uniform(kb, (N,), jnp.float32, -bound, bound)

    y = dummy_inner_model_forward(x, w_torch, b_torch)
    y = jax.block_until_ready(y)

    # Pure-f32 reference (same dtype path as the PyTorch module).
    y_ref = x.reshape(B, -1) @ w_torch.T + b_torch[None, :]

    assert y.shape == (B, N)
    assert jnp.allclose(y, y_ref, atol=2e-3, rtol=1e-3), "mismatch vs reference"

    print("KERNEL_OK")
</pallas_src>

<mosaic_0001>
module attributes {stable_mosaic.version = 11 : i64} {
  func.func @linear_kernel(%arg0: memref<2x12288xf32, #tpu.memory_space<vmem>>, %arg1: memref<2x12288xf32, #tpu.memory_space<vmem>>, %arg2: memref<1x2xf32, #tpu.memory_space<vmem>>, %arg3: memref<2x2xf32, #tpu.memory_space<vmem>>) attributes {dimension_semantics = [], scalar_prefetch = 0 : i64, scratch_operands = 0 : i64, tpu.core_type = #tpu.core_type<tc>} {
    %c0 = arith.constant 0 : index
    %c0_0 = arith.constant 0 : index
    %0 = vector.load %arg0[%c0, %c0_0] : memref<2x12288xf32, #tpu.memory_space<vmem>>, vector<2x12288xf32>
    %c0_1 = arith.constant 0 : index
    %c0_2 = arith.constant 0 : index
    %1 = vector.load %arg1[%c0_1, %c0_2] : memref<2x12288xf32, #tpu.memory_space<vmem>>, vector<2x12288xf32>
    %cst = arith.constant dense<0.000000e+00> : vector<2x2xf32>
    %2 = tpu.matmul %0, %1, %cst {dimension_numbers = #tpu.dot_dimension_numbers<[1], [1], [0], [0], [0, 0, 1, 0], [], []>} : vector<2x12288xf32>, vector<2x12288xf32>, vector<2x2xf32> -> vector<2x2xf32>
    %c0_3 = arith.constant 0 : index
    %c0_4 = arith.constant 0 : index
    %3 = vector.load %arg2[%c0_3, %c0_4] : memref<1x2xf32, #tpu.memory_space<vmem>>, vector<1x2xf32>
    %4 = vector.broadcast %3 : vector<1x2xf32> to vector<2x2xf32>
    %5 = arith.addf %2, %4 : vector<2x2xf32>
    %c0_5 = arith.constant 0 : index
    %c0_6 = arith.constant 0 : index
    %6 = vector.load %arg3[%c0_5, %c0_6] : memref<2x2xf32, #tpu.memory_space<vmem>>, vector<2x2xf32>
    tpu.vector_store %arg3[%c0_5, %c0_6], %5 {strides = array<i32>} : memref<2x2xf32, #tpu.memory_space<vmem>>, vector<2x2xf32>,
    return
  }
}

</mosaic_0001>

<llo_original>
// kernel: dummy_inner_model_forward.1
$region0: #{dummy_inner_model_forward.1}
  #allocation0 [shape = 'u32[]', space=smem, size = 0x4, offset = 0x4, fixed_abs, tag = 'smem constant byte address 0x4 - core index']
  #allocation1 [shape = 'u32[144,128]{1,0:T(1,128)}', space=vmem, size = 0x12000, scoped, tag = 'internal scratch']
  %s0 = inlined_call_operand.vmem [shape: f32[2,12288], index: 0, kind: input, shape index: {}]
  %s1 = inlined_call_operand.vmem [shape: f32[2,12288], index: 1, kind: input, shape index: {}]
  %s2 = inlined_call_operand.vmem [shape: f32[1,2], index: 2, kind: input, shape index: {}]
  %s3 = inlined_call_operand.hbm [shape: f32[2,2], index: 3, kind: output, shape index: {}]
  %s4 = sld [smem:[#allocation0]]
  $region22: #{dummy_inner_model_forward.1} parent=0
    _
  %s6 = ssub.s32 1, %s4
  %s7 = scalar_select 0, %s6, %s4
  $region1: #{dummy_inner_model_forward.1} parent=0
    #allocation2 [shape = 'u8[1024]{0}', space=vmem, size = 0x400, scoped, tag = 'output window, operand 0, single buffered']
    #allocation3 [shape = 's32[1]{0}', space=sflag, size = 0x4, scoped, tag = 'scoped memory for dummy_inner_model_forward.1']
    %8 = vsyncpa [#allocation3], 0
    // Predicated region
    $region2: #{dummy_inner_model_forward.1} parent=1 // pred_check
      _
    $region3: #{dummy_inner_model_forward.1} parent=1 // pred_check_branch
      %10 = sbr.rel (0) target = $region5
    $region4: #{dummy_inner_model_forward.1} parent=1 // pred_region
      _
    $region5: #{dummy_inner_model_forward.1} parent=1 // pred_fallthru
      _
    // Predicated region
    $region6: #{dummy_inner_model_forward.1} parent=1 // pred_check
      _
    $region7: #{dummy_inner_model_forward.1} parent=1 // pred_check_branch
      %12 = sbr.rel (0) target = $region9
    $region8: #{dummy_inner_model_forward.1} parent=1 // pred_region
      _
    $region9: #{dummy_inner_model_forward.1} parent=1 // pred_fallthru
      _
    // Predicated region
    $region10: #{dummy_inner_model_forward.1} parent=1 // pred_check
      _
    $region11: #{dummy_inner_model_forward.1} parent=1 // pred_check_branch
      %14 = sbr.rel (0) target = $region13
    $region12: #{dummy_inner_model_forward.1} parent=1 // pred_region
      _
    $region13: #{dummy_inner_model_forward.1} parent=1 // pred_fallthru
      _
    %v15 = vld [vmem:[%s0] sm:$0xff]
    %v16 = vld [vmem:[%s0 + $0x8] sm:$0xff]
    %v17 = vld [vmem:[%s0 + $0x10] sm:$0xff]
    %v18 = vld [vmem:[%s0 + $0x18] sm:$0xff]
    %v19 = vld [vmem:[%s0 + $0x20] sm:$0xff]
    %v20 = vld [vmem:[%s0 + $0x28] sm:$0xff]
    %v21 = vld [vmem:[%s0 + $0x30] sm:$0xff]
    %v22 = vld [vmem:[%s0 + $0x38] sm:$0xff]
    %v23 = vld [vmem:[%s0 + $0x40] sm:$0xff]
    %v24 = vld [vmem:[%s0 + $0x48] sm:$0xff]
    %v25 = vld [vmem:[%s0 + $0x50] sm:$0xff]
    %v26 = vld [vmem:[%s0 + $0x58] sm:$0xff]
    %v27 = vld [vmem:[%s0 + $0x60] sm:$0xff]
    %v28 = vld [vmem:[%s0 + $0x68] sm:$0xff]
    %v29 = vld [vmem:[%s0 + $0x70] sm:$0xff]
    %v30 = vld [vmem:[%s0 + $0x78] sm:$0xff]
    %v31 = vld [vmem:[%s0 + $0x80] sm:$0xff]
    %v32 = vld [vmem:[%s0 + $0x88] sm:$0xff]
    %v33 = vld [vmem:[%s0 + $0x90] sm:$0xff]
    %v34 = vld [vmem:[%s0 + $0x98] sm:$0xff]
    %v35 = vld [vmem:[%s0 + $0xa0] sm:$0xff]
    %v36 = vld [vmem:[%s0 + $0xa8] sm:$0xff]
    %v37 = vld [vmem:[%s0 + $0xb0] sm:$0xff]
    %v38 = vld [vmem:[%s0 + $0xb8] sm:$0xff]
    %v39 = vld [vmem:[%s1] sm:$0xff]
    %v40 = vld [vmem:[%s1 + $0x8] sm:$0xff]
    %v41 = vld [vmem:[%s1 + $0x10] sm:$0xff]
    %v42 = vld [vmem:[%s1 + $0x18] sm:$0xff]
    %v43 = vld [vmem:[%s1 + $0x20] sm:$0xff]
    %v44 = vld [vmem:[%s1 + $0x28] sm:$0xff]
    %v45 = vld [vmem:[%s1 + $0x30] sm:$0xff]
    %v46 = vld [vmem:[%s1 + $0x38] sm:$0xff]
    %v47 = vld [vmem:[%s1 + $0x40] sm:$0xff]
    %v48 = vld [vmem:[%s1 + $0x48] sm:$0xff]
    %v49 = vld [vmem:[%s1 + $0x50] sm:$0xff]
    %v50 = vld [vmem:[%s1 + $0x58] sm:$0xff]
    %v51 = vld [vmem:[%s1 + $0x60] sm:$0xff]
    %v52 = vld [vmem:[%s1 + $0x68] sm:$0xff]
    %v53 = vld [vmem:[%s1 + $0x70] sm:$0xff]
    %v54 = vld [vmem:[%s1 + $0x78] sm:$0xff]
    %v55 = vld [vmem:[%s1 + $0x80] sm:$0xff]
    %v56 = vld [vmem:[%s1 + $0x88] sm:$0xff]
    %v57 = vld [vmem:[%s1 + $0x90] sm:$0xff]
    %v58 = vld [vmem:[%s1 + $0x98] sm:$0xff]
    %v59 = vld [vmem:[%s1 + $0xa0] sm:$0xff]
    %v60 = vld [vmem:[%s1 + $0xa8] sm:$0xff]
    %v61 = vld [vmem:[%s1 + $0xb0] sm:$0xff]
    %v62 = vld [vmem:[%s1 + $0xb8] sm:$0xff]
    %v63 = vld [vmem:[%s2] sm:$0x1]
    %v65 = vlaneseq
    %v66 = vshrl.u32 %v65, 7
    %v67 = vsub.s32 0, %v66
    %v68 = vrot.slane %v63, %v67
    %v94 = vcombine.high %v15, %v15
    %v96 = vunpack.c.l.s4 1983009808
    %v97 = vunpack.c.0.s8 %v96
    %v98 = vlaneseq
    %v99 = vshrl.u32 %v98, 7
    %v100 = vsub.s32 %v97, %v99
    %v101 = vrot.slane %v15, %v100
    %v103 = vunpack.c.l.s4 1983009808
    %v104 = vunpack.c.0.s8 %v103
    %v105 = vlaneseq
    %v106 = vshrl.u32 %v105, 7
    %v107 = vsub.s32 %v104, %v106
    %v108 = vrot.slane %v94, %v107
    %v109 = vcombine.high %v101, %v101
    %v110 = vcombine.high %v108, %v108
    %v111 = vcombine.high %v16, %v16
    %v113 = vunpack.c.l.s4 1983009808
    %v114 = vunpack.c.0.s8 %v113
    %v115 = vlaneseq
    %v116 = vshrl.u32 %v115, 7
    %v117 = vsub.s32 %v114, %v116
    %v118 = vrot.slane %v16, %v117
    %v120 = vunpack.c.l.s4 1983009808
    %v121 = vunpack.c.0.s8 %v120
    %v122 = vlaneseq
    %v123 = vshrl.u32 %v122, 7
    %v124 = vsub.s32 %v121, %v123
    %v125 = vrot.slane %v111, %v124
    %v126 = vcombine.high %v118, %v118
    %v127 = vcombine.high %v125, %v125
    %v128 = vcombine.high %v17, %v17
    %v130 = vunpack.c.l.s4 1983009808
    %v131 = vunpack.c.0.s8 %v130
    %v132 = vlaneseq
    %v133 = vshrl.u32 %v132, 7
    %v134 = vsub.s32 %v131, %v133
    %v135 = vrot.slane %v17, %v134
    %v137 = vunpack.c.l.s4 1983009808
    %v138 = vunpack.c.0.s8 %v137
    %v139 = vlaneseq
    %v140 = vshrl.u32 %v139, 7
    %v141 = vsub.s32 %v138, %v140
    %v142 = vrot.slane %v128, %v141
    %v143 = vcombine.high %v135, %v135
    %v144 = vcombine.high %v142, %v142
    %v145 = vcombine.high %v18, %v18
    %v147 = vunpack.c.l.s4 1983009808
    %v148 = vunpack.c.0.s8 %v147
    %v149 = vlaneseq
    %v150 = vshrl.u32 %v149, 7
    %v151 = vsub.s32 %v148, %v150
    %v152 = vrot.slane %v18, %v151
    %v154 = vunpack.c.l.s4 1983009808
    %v155 = vunpack.c.0.s8 %v154
    %v156 = vlaneseq
    %v157 = vshrl.u32 %v156, 7
    %v158 = vsub.s32 %v155, %v157
    %v159 = vrot.slane %v145, %v158
    %v160 = vcombine.high %v152, %v152
    %v161 = vcombine.high %v159, %v159
    %v162 = vcombine.high %v19, %v19
    %v164 = vunpack.c.l.s4 1983009808
    %v165 = vunpack.c.0.s8 %v164
    %v166 = vlaneseq
    %v167 = vshrl.u32 %v166, 7
    %v168 = vsub.s32 %v165, %v167
    %v169 = vrot.slane %v19, %v168
    %v171 = vunpack.c.l.s4 1983009808
    %v172 = vunpack.c.0.s8 %v171
    %v173 = vlaneseq
    %v174 = vshrl.u32 %v173, 7
    %v175 = vsub.s32 %v172, %v174
    %v176 = vrot.slane %v162, %v175
    %v177 = vcombine.high %v169, %v169
    %v178 = vcombine.high %v176, %v176
    %v179 = vcombine.high %v20, %v20
    %v181 = vunpack.c.l.s4 1983009808
    %v182 = vunpack.c.0.s8 %v181
    %v183 = vlaneseq
    %v184 = vshrl.u32 %v183, 7
    %v185 = vsub.s32 %v182, %v184
    %v186 = vrot.slane %v20, %v185
    %v188 = vunpack.c.l.s4 1983009808
    %v189 = vunpack.c.0.s8 %v188
    %v190 = vlaneseq
    %v191 = vshrl.u32 %v190, 7
    %v192 = vsub.s32 %v189, %v191
    %v193 = vrot.slane %v179, %v192
    %v194 = vcombine.high %v186, %v186
    %v195 = vcombine.high %v193, %v193
    %v196 = vcombine.high %v21, %v21
    %v198 = vunpack.c.l.s4 1983009808
    %v199 = vunpack.c.0.s8 %v198
    %v200 = vlaneseq
    %v201 = vshrl.u32 %v200, 7
    %v202 = vsub.s32 %v199, %v201
    %v203 = vrot.slane %v21, %v202
    %v205 = vunpack.c.l.s4 1983009808
    %v206 = vunpack.c.0.s8 %v205
    %v207 = vlaneseq
    %v208 = vshrl.u32 %v207, 7
    %v209 = vsub.s32 %v206, %v208
    %v210 = vrot.slane %v196, %v209
    %v211 = vcombine.high %v203, %v203
    %v212 = vcombine.high %v210, %v210
    %v213 = vcombine.high %v22, %v22
    %v215 = vunpack.c.l.s4 1983009808
    %v216 = vunpack.c.0.s8 %v215
    %v217 = vlaneseq
    %v218 = vshrl.u32 %v217, 7
    %v219 = vsub.s32 %v216, %v218
    %v220 = vrot.slane %v22, %v219
    %v222 = vunpack.c.l.s4 1983009808
    %v223 = vunpack.c.0.s8 %v222
    %v224 = vlaneseq
    %v225 = vshrl.u32 %v224, 7
    %v226 = vsub.s32 %v223, %v225
    %v227 = vrot.slane %v213, %v226
    %v228 = vcombine.high %v220, %v220
    %v229 = vcombine.high %v227, %v227
    %v230 = vcombine.high %v23, %v23
    %v232 = vunpack.c.l.s4 1983009808
    %v233 = vunpack.c.0.s8 %v232
    %v234 = vlaneseq
    %v235 = vshrl.u32 %v234, 7
    %v236 = vsub.s32 %v233, %v235
    %v237 = vrot.slane %v23, %v236
    %v239 = vunpack.c.l.s4 1983009808
    %v240 = vunpack.c.0.s8 %v239
    %v241 = vlaneseq
    %v242 = vshrl.u32 %v241, 7
    %v243 = vsub.s32 %v240, %v242
    %v244 = vrot.slane %v230, %v243
    %v245 = vcombine.high %v237, %v237
    %v246 = vcombine.high %v244, %v244
    %v247 = vcombine.high %v24, %v24
    %v249 = vunpack.c.l.s4 1983009808
    %v250 = vunpack.c.0.s8 %v249
    %v251 = vlaneseq
    %v252 = vshrl.u32 %v251, 7
    %v253 = vsub.s32 %v250, %v252
    %v254 = vrot.slane %v24, %v253
    %v256 = vunpack.c.l.s4 1983009808
    %v257 = vunpack.c.0.s8 %v256
    %v258 = vlaneseq
    %v259 = vshrl.u32 %v258, 7
    %v260 = vsub.s32 %v257, %v259
    %v261 = vrot.slane %v247, %v260
    %v262 = vcombine.high %v254, %v254
    %v263 = vcombine.high %v261, %v261
    %v264 = vcombine.high %v25, %v25
    %v266 = vunpack.c.l.s4 1983009808
    %v267 = vunpack.c.0.s8 %v266
    %v268 = vlaneseq
    %v269 = vshrl.u32 %v268, 7
    %v270 = vsub.s32 %v267, %v269
    %v271 = vrot.slane %v25, %v270
    %v273 = vunpack.c.l.s4 1983009808
    %v274 = vunpack.c.0.s8 %v273
    %v275 = vlaneseq
    %v276 = vshrl.u32 %v275, 7
    %v277 = vsub.s32 %v274, %v276
    %v278 = vrot.slane %v264, %v277
    %v279 = vcombine.high %v271, %v271
    %v280 = vcombine.high %v278, %v278
    %v281 = vcombine.high %v26, %v26
    %v283 = vunpack.c.l.s4 1983009808
    %v284 = vunpack.c.0.s8 %v283
    %v285 = vlaneseq
    %v286 = vshrl.u32 %v285, 7
    %v287 = vsub.s32 %v284, %v286
    %v288 = vrot.slane %v26, %v287
    %v290 = vunpack.c.l.s4 1983009808
    %v291 = vunpack.c.0.s8 %v290
    %v292 = vlaneseq
    %v293 = vshrl.u32 %v292, 7
    %v294 = vsub.s32 %v291, %v293
    %v295 = vrot.slane %v281, %v294
    %v296 = vcombine.high %v288, %v288
    %v297 = vcombine.high %v295, %v295
    %v298 = vcombine.high %v27, %v27
    %v300 = vunpack.c.l.s4 1983009808
    %v301 = vunpack.c.0.s8 %v300
    %v302 = vlaneseq
    %v303 = vshrl.u32 %v302, 7
    %v304 = vsub.s32 %v301, %v303
    %v305 = vrot.slane %v27, %v304
    %v307 = vunpack.c.l.s4 1983009808
    %v308 = vunpack.c.0.s8 %v307
    %v309 = vlaneseq
    %v310 = vshrl.u32 %v309, 7
    %v311 = vsub.s32 %v308, %v310
    %v312 = vrot.slane %v298, %v311
    %v313 = vcombine.high %v305, %v305
    %v314 = vcombine.high %v312, %v312
    %v315 = vcombine.high %v28, %v28
    %v317 = vunpack.c.l.s4 1983009808
    %v318 = vunpack.c.0.s8 %v317
    %v319 = vlaneseq
    %v320 = vshrl.u32 %v319, 7
    %v321 = vsub.s32 %v318, %v320
    %v322 = vrot.slane %v28, %v321
    %v324 = vunpack.c.l.s4 1983009808
    %v325 = vunpack.c.0.s8 %v324
    %v326 = vlaneseq
    %v327 = vshrl.u32 %v326, 7
    %v328 = vsub.s32 %v325, %v327
    %v329 = vrot.slane %v315, %v328
    %v330 = vcombine.high %v322, %v322
    %v331 = vcombine.high %v329, %v329
    %v332 = vcombine.high %v29, %v29
    %v334 = vunpack.c.l.s4 1983009808
    %v335 = vunpack.c.0.s8 %v334
    %v336 = vlaneseq
    %v337 = vshrl.u32 %v336, 7
    %v338 = vsub.s32 %v335, %v337
    %v339 = vrot.slane %v29, %v338
    %v341 = vunpack.c.l.s4 1983009808
    %v342 = vunpack.c.0.s8 %v341
    %v343 = vlaneseq
    %v344 = vshrl.u32 %v343, 7
    %v345 = vsub.s32 %v342, %v344
    %v346 = vrot.slane %v332, %v345
    %v347 = vcombine.high %v339, %v339
    %v348 = vcombine.high %v346, %v346
    %v349 = vcombine.high %v30, %v30
    %v351 = vunpack.c.l.s4 1983009808
    %v352 = vunpack.c.0.s8 %v351
    %v353 = vlaneseq
    %v354 = vshrl.u32 %v353, 7
    %v355 = vsub.s32 %v352, %v354
    %v356 = vrot.slane %v30, %v355
    %v358 = vunpack.c.l.s4 1983009808
    %v359 = vunpack.c.0.s8 %v358
    %v360 = vlaneseq
    %v361 = vshrl.u32 %v360, 7
    %v362 = vsub.s32 %v359, %v361
    %v363 = vrot.slane %v349, %v362
    %v364 = vcombine.high %v356, %v356
    %v365 = vcombine.high %v363, %v363
    %v366 = vcombine.high %v31, %v31
    %v368 = vunpack.c.l.s4 1983009808
    %v369 = vunpack.c.0.s8 %v368
    %v370 = vlaneseq
    %v371 = vshrl.u32 %v370, 7
    %v372 = vsub.s32 %v369, %v371
    %v373 = vrot.slane %v31, %v372
    %v375 = vunpack.c.l.s4 1983009808
    %v376 = vunpack.c.0.s8 %v375
    %v377 = vlaneseq
    %v378 = vshrl.u32 %v377, 7
    %v379 = vsub.s32 %v376, %v378
    %v380 = vrot.slane %v366, %v379
    %v381 = vcombine.high %v373, %v373
    %v382 = vcombine.high %v380, %v380
    %v383 = vcombine.high %v32, %v32
    %v385 = vunpack.c.l.s4 1983009808
    %v386 = vunpack.c.0.s8 %v385
    %v387 = vlaneseq
    %v388 = vshrl.u32 %v387, 7
    %v389 = vsub.s32 %v386, %v388
    %v390 = vrot.slane %v32, %v389
    %v392 = vunpack.c.l.s4 1983009808
    %v393 = vunpack.c.0.s8 %v392
    %v394 = vlaneseq
    %v395 = vshrl.u32 %v394, 7
    %v396 = vsub.s32 %v393, %v395
    %v397 = vrot.slane %v383, %v396
    %v398 = vcombine.high %v390, %v390
    %v399 = vcombine.high %v397, %v397
    %v400 = vcombine.high %v33, %v33
    %v402 = vunpack.c.l.s4 1983009808
    %v403 = vunpack.c.0.s8 %v402
    %v404 = vlaneseq
    %v405 = vshrl.u32 %v404, 7
    %v406 = vsub.s32 %v403, %v405
    %v407 = vrot.slane %v33, %v406
    %v409 = vunpack.c.l.s4 1983009808
    %v410 = vunpack.c.0.s8 %v409
    %v411 = vlaneseq
    %v412 = vshrl.u32 %v411, 7
    %v413 = vsub.s32 %v410, %v412
    %v414 = vrot.slane %v400, %v413
    %v415 = vcombine.high %v407, %v407
    %v416 = vcombine.high %v414, %v414
    %v417 = vcombine.high %v34, %v34
    %v419 = vunpack.c.l.s4 1983009808
    %v420 = vunpack.c.0.s8 %v419
    %v421 = vlaneseq
    %v422 = vshrl.u32 %v421, 7
    %v423 = vsub.s32 %v420, %v422
    %v424 = vrot.slane %v34, %v423
    %v426 = vunpack.c.l.s4 1983009808
    %v427 = vunpack.c.0.s8 %v426
    %v428 = vlaneseq
    %v429 = vshrl.u32 %v428, 7
    %v430 = vsub.s32 %v427, %v429
    %v431 = vrot.slane %v417, %v430
    %v432 = vcombine.high %v424, %v424
    %v433 = vcombine.high %v431, %v431
    %v434 = vcombine.high %v35, %v35
    %v436 = vunpack.c.l.s4 1983009808
    %v437 = vunpack.c.0.s8 %v436
    %v438 = vlaneseq
    %v439 = vshrl.u32 %v438, 7
    %v440 = vsub.s32 %v437, %v439
    %v441 = vrot.slane %v35, %v440
    %v443 = vunpack.c.l.s4 1983009808
    %v444 = vunpack.c.0.s8 %v443
    %v445 = vlaneseq
    %v446 = vshrl.u32 %v445, 7
    %v447 = vsub.s32 %v444, %v446
    %v448 = vrot.slane %v434, %v447
    %v449 = vcombine.high %v441, %v441
    %v450 = vcombine.high %v448, %v448
    %v451 = vcombine.high %v36, %v36
    %v453 = vunpack.c.l.s4 1983009808
    %v454 = vunpack.c.0.s8 %v453
    %v455 = vlaneseq
    %v456 = vshrl.u32 %v455, 7
    %v457 = vsub.s32 %v454, %v456
    %v458 = vrot.slane %v36, %v457
    %v460 = vunpack.c.l.s4 1983009808
    %v461 = vunpack.c.0.s8 %v460
    %v462 = vlaneseq
    %v463 = vshrl.u32 %v462, 7
    %v464 = vsub.s32 %v461, %v463
    %v465 = vrot.slane %v451, %v464
    %v466 = vcombine.high %v458, %v458
    %v467 = vcombine.high %v465, %v465
    %v468 = vcombine.high %v37, %v37
    %v470 = vunpack.c.l.s4 1983009808
    %v471 = vunpack.c.0.s8 %v470
    %v472 = vlaneseq
    %v473 = vshrl.u32 %v472, 7
    %v474 = vsub.s32 %v471, %v473
    %v475 = vrot.slane %v37, %v474
    %v477 = vunpack.c.l.s4 1983009808
    %v478 = vunpack.c.0.s8 %v477
    %v479 = vlaneseq
    %v480 = vshrl.u32 %v479, 7
    %v481 = vsub.s32 %v478, %v480
    %v482 = vrot.slane %v468, %v481
    %v483 = vcombine.high %v475, %v475
    %v484 = vcombine.high %v482, %v482
    %v485 = vcombine.high %v38, %v38
    %v487 = vunpack.c.l.s4 1983009808
    %v488 = vunpack.c.0.s8 %v487
    %v489 = vlaneseq
    %v490 = vshrl.u32 %v489, 7
    %v491 = vsub.s32 %v488, %v490
    %v492 = vrot.slane %v38, %v491
    %v494 = vunpack.c.l.s4 1983009808
    %v495 = vunpack.c.0.s8 %v494
    %v496 = vlaneseq
    %v497 = vshrl.u32 %v496, 7
    %v498 = vsub.s32 %v495, %v497
    %v499 = vrot.slane %v485, %v498
    %v500 = vcombine.high %v492, %v492
    %v501 = vcombine.high %v499, %v499
    %v622 = vcombine.high %v39, %v39
    %v624 = vunpack.c.l.s4 1983009808
    %v625 = vunpack.c.0.s8 %v624
    %v626 = vlaneseq
    %v627 = vshrl.u32 %v626, 7
    %v628 = vsub.s32 %v625, %v627
    %v629 = vrot.slane %v39, %v628
    %v631 = vunpack.c.l.s4 1983009808
    %v632 = vunpack.c.0.s8 %v631
    %v633 = vlaneseq
    %v634 = vshrl.u32 %v633, 7
    %v635 = vsub.s32 %v632, %v634
    %v636 = vrot.slane %v622, %v635
    %v637 = vcombine.high %v629, %v629
    %v638 = vcombine.high %v636, %v636
    %v639 = vcombine.high %v40, %v40
    %v641 = vunpack.c.l.s4 1983009808
    %v642 = vunpack.c.0.s8 %v641
    %v643 = vlaneseq
    %v644 = vshrl.u32 %v643, 7
    %v645 = vsub.s32 %v642, %v644
    %v646 = vrot.slane %v40, %v645
    %v648 = vunpack.c.l.s4 1983009808
    %v649 = vunpack.c.0.s8 %v648
    %v650 = vlaneseq
    %v651 = vshrl.u32 %v650, 7
    %v652 = vsub.s32 %v649, %v651
    %v653 = vrot.slane %v639, %v652
    %v654 = vcombine.high %v646, %v646
    %v655 = vcombine.high %v653, %v653
    %v656 = vcombine.high %v41, %v41
    %v658 = vunpack.c.l.s4 1983009808
    %v659 = vunpack.c.0.s8 %v658
    %v660 = vlaneseq
    %v661 = vshrl.u32 %v660, 7
    %v662 = vsub.s32 %v659, %v661
    %v663 = vrot.slane %v41, %v662
    %v665 = vunpack.c.l.s4 1983009808
    %v666 = vunpack.c.0.s8 %v665
    %v667 = vlaneseq
    %v668 = vshrl.u32 %v667, 7
    %v669 = vsub.s32 %v666, %v668
    %v670 = vrot.slane %v656, %v669
    %v671 = vcombine.high %v663, %v663
    %v672 = vcombine.high %v670, %v670
    %v673 = vcombine.high %v42, %v42
    %v675 = vunpack.c.l.s4 1983009808
    %v676 = vunpack.c.0.s8 %v675
    %v677 = vlaneseq
    %v678 = vshrl.u32 %v677, 7
    %v679 = vsub.s32 %v676, %v678
    %v680 = vrot.slane %v42, %v679
    %v682 = vunpack.c.l.s4 1983009808
    %v683 = vunpack.c.0.s8 %v682
    %v684 = vlaneseq
    %v685 = vshrl.u32 %v684, 7
    %v686 = vsub.s32 %v683, %v685
    %v687 = vrot.slane %v673, %v686
    %v688 = vcombine.high %v680, %v680
    %v689 = vcombine.high %v687, %v687
    %v690 = vcombine.high %v43, %v43
    %v692 = vunpack.c.l.s4 1983009808
    %v693 = vunpack.c.0.s8 %v692
    %v694 = vlaneseq
    %v695 = vshrl.u32 %v694, 7
    %v696 = vsub.s32 %v693, %v695
    %v697 = vrot.slane %v43, %v696
    %v699 = vunpack.c.l.s4 1983009808
    %v700 = vunpack.c.0.s8 %v699
    %v701 = vlaneseq
    %v702 = vshrl.u32 %v701, 7
    %v703 = vsub.s32 %v700, %v702
    %v704 = vrot.slane %v690, %v703
    %v705 = vcombine.high %v697, %v697
    %v706 = vcombine.high %v704, %v704
    %v707 = vcombine.high %v44, %v44
    %v709 = vunpack.c.l.s4 1983009808
    %v710 = vunpack.c.0.s8 %v709
    %v711 = vlaneseq
    %v712 = vshrl.u32 %v711, 7
    %v713 = vsub.s32 %v710, %v712
    %v714 = vrot.slane %v44, %v713
    %v716 = vunpack.c.l.s4 1983009808
    %v717 = vunpack.c.0.s8 %v716
    %v718 = vlaneseq
    %v719 = vshrl.u32 %v718, 7
    %v720 = vsub.s32 %v717, %v719
    %v721 = vrot.slane %v707, %v720
    %v722 = vcombine.high %v714, %v714
    %v723 = vcombine.high %v721, %v721
    %v724 = vcombine.high %v45, %v45
    %v726 = vunpack.c.l.s4 1983009808
    %v727 = vunpack.c.0.s8 %v726
    %v728 = vlaneseq
    %v729 = vshrl.u32 %v728, 7
    %v730 = vsub.s32 %v727, %v729
    %v731 = vrot.slane %v45, %v730
    %v733 = vunpack.c.l.s4 1983009808
    %v734 = vunpack.c.0.s8 %v733
    %v735 = vlaneseq
    %v736 = vshrl.u32 %v735, 7
    %v737 = vsub.s32 %v734, %v736
    %v738 = vrot.slane %v724, %v737
    %v739 = vcombine.high %v731, %v731
    %v740 = vcombine.high %v738, %v738
    %v741 = vcombine.high %v46, %v46
    %v743 = vunpack.c.l.s4 1983009808
    %v744 = vunpack.c.0.s8 %v743
    %v745 = vlaneseq
    %v746 = vshrl.u32 %v745, 7
    %v747 = vsub.s32 %v744, %v746
    %v748 = vrot.slane %v46, %v747
    %v750 = vunpack.c.l.s4 1983009808
    %v751 = vunpack.c.0.s8 %v750
    %v752 = vlaneseq
    %v753 = vshrl.u32 %v752, 7
    %v754 = vsub.s32 %v751, %v753
    %v755 = vrot.slane %v741, %v754
    %v756 = vcombine.high %v748, %v748
    %v757 = vcombine.high %v755, %v755
    %v758 = vcombine.high %v47, %v47
    %v760 = vunpack.c.l.s4 1983009808
    %v761 = vunpack.c.0.s8 %v760
    %v762 = vlaneseq
    %v763 = vshrl.u32 %v762, 7
    %v764 = vsub.s32 %v761, %v763
    %v765 = vrot.slane %v47, %v764
    %v767 = vunpack.c.l.s4 1983009808
    %v768 = vunpack.c.0.s8 %v767
    %v769 = vlaneseq
    %v770 = vshrl.u32 %v769, 7
    %v771 = vsub.s32 %v768, %v770
    %v772 = vrot.slane %v758, %v771
    %v773 = vcombine.high %v765, %v765
    %v774 = vcombine.high %v772, %v772
    %v775 = vcombine.high %v48, %v48
    %v777 = vunpack.c.l.s4 1983009808
    %v778 = vunpack.c.0.s8 %v777
    %v779 = vlaneseq
    %v780 = vshrl.u32 %v779, 7
    %v781 = vsub.s32 %v778, %v780
    %v782 = vrot.slane %v48, %v781
    %v784 = vunpack.c.l.s4 1983009808
    %v785 = vunpack.c.0.s8 %v784
    %v786 = vlaneseq
    %v787 = vshrl.u32 %v786, 7
    %v788 = vsub.s32 %v785, %v787
    %v789 = vrot.slane %v775, %v788
    %v790 = vcombine.high %v782, %v782
    %v791 = vcombine.high %v789, %v789
    %v792 = vcombine.high %v49, %v49
    %v794 = vunpack.c.l.s4 1983009808
    %v795 = vunpack.c.0.s8 %v794
    %v796 = vlaneseq
    %v797 = vshrl.u32 %v796, 7
    %v798 = vsub.s32 %v795, %v797
    %v799 = vrot.slane %v49, %v798
    %v801 = vunpack.c.l.s4 1983009808
    %v802 = vunpack.c.0.s8 %v801
    %v803 = vlaneseq
    %v804 = vshrl.u32 %v803, 7
    %v805 = vsub.s32 %v802, %v804
    %v806 = vrot.slane %v792, %v805
    %v807 = vcombine.high %v799, %v799
    %v808 = vcombine.high %v806, %v806
    %v809 = vcombine.high %v50, %v50
    %v811 = vunpack.c.l.s4 1983009808
    %v812 = vunpack.c.0.s8 %v811
    %v813 = vlaneseq
    %v814 = vshrl.u32 %v813, 7
    %v815 = vsub.s32 %v812, %v814
    %v816 = vrot.slane %v50, %v815
    %v818 = vunpack.c.l.s4 1983009808
    %v819 = vunpack.c.0.s8 %v818
    %v820 = vlaneseq
    %v821 = vshrl.u32 %v820, 7
    %v822 = vsub.s32 %v819, %v821
    %v823 = vrot.slane %v809, %v822
    %v824 = vcombine.high %v816, %v816
    %v825 = vcombine.high %v823, %v823
    %v826 = vcombine.high %v51, %v51
    %v828 = vunpack.c.l.s4 1983009808
    %v829 = vunpack.c.0.s8 %v828
    %v830 = vlaneseq
    %v831 = vshrl.u32 %v830, 7
    %v832 = vsub.s32 %v829, %v831
    %v833 = vrot.slane %v51, %v832
    %v835 = vunpack.c.l.s4 1983009808
    %v836 = vunpack.c.0.s8 %v835
    %v837 = vlaneseq
    %v838 = vshrl.u32 %v837, 7
    %v839 = vsub.s32 %v836, %v838
    %v840 = vrot.slane %v826, %v839
    %v841 = vcombine.high %v833, %v833
    %v842 = vcombine.high %v840, %v840
    %v843 = vcombine.high %v52, %v52
    %v845 = vunpack.c.l.s4 1983009808
    %v846 = vunpack.c.0.s8 %v845
    %v847 = vlaneseq
    %v848 = vshrl.u32 %v847, 7
    %v849 = vsub.s32 %v846, %v848
    %v850 = vrot.slane %v52, %v849
    %v852 = vunpack.c.l.s4 1983009808
    %v853 = vunpack.c.0.s8 %v852
    %v854 = vlaneseq
    %v855 = vshrl.u32 %v854, 7
    %v856 = vsub.s32 %v853, %v855
    %v857 = vrot.slane %v843, %v856
    %v858 = vcombine.high %v850, %v850
    %v859 = vcombine.high %v857, %v857
    %v860 = vcombine.high %v53, %v53
    %v862 = vunpack.c.l.s4 1983009808
    %v863 = vunpack.c.0.s8 %v862
    %v864 = vlaneseq
    %v865 = vshrl.u32 %v864, 7
    %v866 = vsub.s32 %v863, %v865
    %v867 = vrot.slane %v53, %v866
    %v869 = vunpack.c.l.s4 1983009808
    %v870 = vunpack.c.0.s8 %v869
    %v871 = vlaneseq
    %v872 = vshrl.u32 %v871, 7
    %v873 = vsub.s32 %v870, %v872
    %v874 = vrot.slane %v860, %v873
    %v875 = vcombine.high %v867, %v867
    %v876 = vcombine.high %v874, %v874
    %v877 = vcombine.high %v54, %v54
    %v879 = vunpack.c.l.s4 1983009808
    %v880 = vunpack.c.0.s8 %v879
    %v881 = vlaneseq
    %v882 = vshrl.u32 %v881, 7
    %v883 = vsub.s32 %v880, %v882
    %v884 = vrot.slane %v54, %v883
    %v886 = vunpack.c.l.s4 1983009808
    %v887 = vunpack.c.0.s8 %v886
    %v888 = vlaneseq
    %v889 = vshrl.u32 %v888, 7
    %v890 = vsub.s32 %v887, %v889
    %v891 = vrot.slane %v877, %v890
    %v892 = vcombine.high %v884, %v884
    %v893 = vcombine.high %v891, %v891
    %v894 = vcombine.high %v55, %v55
    %v896 = vunpack.c.l.s4 1983009808
    %v897 = vunpack.c.0.s8 %v896
    %v898 = vlaneseq
    %v899 = vshrl.u32 %v898, 7
    %v900 = vsub.s32 %v897, %v899
    %v901 = vrot.slane %v55, %v900
    %v903 = vunpack.c.l.s4 1983009808
    %v904 = vunpack.c.0.s8 %v903
    %v905 = vlaneseq
    %v906 = vshrl.u32 %v905, 7
    %v907 = vsub.s32 %v904, %v906
    %v908 = vrot.slane %v894, %v907
    %v909 = vcombine.high %v901, %v901
    %v910 = vcombine.high %v908, %v908
    %v911 = vcombine.high %v56, %v56
    %v913 = vunpack.c.l.s4 1983009808
    %v914 = vunpack.c.0.s8 %v913
    %v915 = vlaneseq
    %v916 = vshrl.u32 %v915, 7
    %v917 = vsub.s32 %v914, %v916
    %v918 = vrot.slane %v56, %v917
    %v920 = vunpack.c.l.s4 1983009808
    %v921 = vunpack.c.0.s8 %v920
    %v922 = vlaneseq
    %v923 = vshrl.u32 %v922, 7
    %v924 = vsub.s32 %v921, %v923
    %v925 = vrot.slane %v911, %v924
    %v926 = vcombine.high %v918, %v918
    %v927 = vcombine.high %v925, %v925
    %v928 = vcombine.high %v57, %v57
    %v930 = vunpack.c.l.s4 1983009808
    %v931 = vunpack.c.0.s8 %v930
    %v932 = vlaneseq
    %v933 = vshrl.u32 %v932, 7
    %v934 = vsub.s32 %v931, %v933
    %v935 = vrot.slane %v57, %v934
    %v937 = vunpack.c.l.s4 1983009808
    %v938 = vunpack.c.0.s8 %v937
    %v939 = vlaneseq
    %v940 = vshrl.u32 %v939, 7
    %v941 = vsub.s32 %v938, %v940
    %v942 = vrot.slane %v928, %v941
    %v943 = vcombine.high %v935, %v935
    %v944 = vcombine.high %v942, %v942
    %v945 = vcombine.high %v58, %v58
    %v947 = vunpack.c.l.s4 1983009808
    %v948 = vunpack.c.0.s8 %v947
    %v949 = vlaneseq
    %v950 = vshrl.u32 %v949, 7
    %v951 = vsub.s32 %v948, %v950
    %v952 = vrot.slane %v58, %v951
    %v954 = vunpack.c.l.s4 1983009808
    %v955 = vunpack.c.0.s8 %v954
    %v956 = vlaneseq
    %v957 = vshrl.u32 %v956, 7
    %v958 = vsub.s32 %v955, %v957
    %v959 = vrot.slane %v945, %v958
    %v960 = vcombine.high %v952, %v952
    %v961 = vcombine.high %v959, %v959
    %v962 = vcombine.high %v59, %v59
    %v964 = vunpack.c.l.s4 1983009808
    %v965 = vunpack.c.0.s8 %v964
    %v966 = vlaneseq
    %v967 = vshrl.u32 %v966, 7
    %v968 = vsub.s32 %v965, %v967
    %v969 = vrot.slane %v59, %v968
    %v971 = vunpack.c.l.s4 1983009808
    %v972 = vunpack.c.0.s8 %v971
    %v973 = vlaneseq
    %v974 = vshrl.u32 %v973, 7
    %v975 = vsub.s32 %v972, %v974
    %v976 = vrot.slane %v962, %v975
    %v977 = vcombine.high %v969, %v969
    %v978 = vcombine.high %v976, %v976
    %v979 = vcombine.high %v60, %v60
    %v981 = vunpack.c.l.s4 1983009808
    %v982 = vunpack.c.0.s8 %v981
    %v983 = vlaneseq
    %v984 = vshrl.u32 %v983, 7
    %v985 = vsub.s32 %v982, %v984
    %v986 = vrot.slane %v60, %v985
    %v988 = vunpack.c.l.s4 1983009808
    %v989 = vunpack.c.0.s8 %v988
    %v990 = vlaneseq
    %v991 = vshrl.u32 %v990, 7
    %v992 = vsub.s32 %v989, %v991
    %v993 = vrot.slane %v979, %v992
    %v994 = vcombine.high %v986, %v986
    %v995 = vcombine.high %v993, %v993
    %v996 = vcombine.high %v61, %v61
    %v998 = vunpack.c.l.s4 1983009808
    %v999 = vunpack.c.0.s8 %v998
    %v1000 = vlaneseq
    %v1001 = vshrl.u32 %v1000, 7
    %v1002 = vsub.s32 %v999, %v1001
    %v1003 = vrot.slane %v61, %v1002
    %v1005 = vunpack.c.l.s4 1983009808
    %v1006 = vunpack.c.0.s8 %v1005
    %v1007 = vlaneseq
    %v1008 = vshrl.u32 %v1007, 7
    %v1009 = vsub.s32 %v1006, %v1008
    %v1010 = vrot.slane %v996, %v1009
    %v1011 = vcombine.high %v1003, %v1003
    %v1012 = vcombine.high %v1010, %v1010
    %v1013 = vcombine.high %v62, %v62
    %v1015 = vunpack.c.l.s4 1983009808
    %v1016 = vunpack.c.0.s8 %v1015
    %v1017 = vlaneseq
    %v1018 = vshrl.u32 %v1017, 7
    %v1019 = vsub.s32 %v1016, %v1018
    %v1020 = vrot.slane %v62, %v1019
    %v1022 = vunpack.c.l.s4 1983009808
    %v1023 = vunpack.c.0.s8 %v1022
    %v1024 = vlaneseq
    %v1025 = vshrl.u32 %v1024, 7
    %v1026 = vsub.s32 %v1023, %v1025
    %v1027 = vrot.slane %v1013, %v1026
    %v1028 = vcombine.high %v1020, %v1020
    %v1029 = vcombine.high %v1027, %v1027
    %1126 = vmatprep.subr.mxu0 0.0
    %1127 = vmatpush1.xpose.msra.mxu0 0.0
    %1128 = vmatprep.subr.mxu0 0.0
    %1129 = vmatpush1.xpose.msra.mxu0 0.0
    %1130 = vmatprep.subr.mxu0 0.0
    %1131 = vmatpush1.xpose.msra.mxu0 0.0
    %1132 = vmatprep.subr.mxu0 0.0
    %1133 = vmatpush1.xpose.msra.mxu0 0.0
    %1134 = vmatprep.subr.mxu0 0.0
    %1135 = vmatpush1.xpose.msra.mxu0 0.0
    %1136 = vmatprep.subr.mxu0 0.0
    %1137 = vmatpush1.xpose.msra.mxu0 0.0
    %1138 = vmatprep.subr.mxu0 0.0
    %1139 = vmatpush1.xpose.msra.mxu0 0.0
    %1140 = vmatprep.subr.mxu0 0.0
    %1141 = vmatpush1.xpose.msra.mxu0 0.0
    %1142 = vmatprep.subr.mxu0 0.0
    %1143 = vmatpush1.xpose.msra.mxu0 0.0
    %1144 = vmatprep.subr.mxu0 0.0
    %1145 = vmatpush1.xpose.msra.mxu0 0.0
    %1146 = vmatprep.subr.mxu0 0.0
    %1147 = vmatpush1.xpose.msra.mxu0 0.0
    %1148 = vmatprep.subr.mxu0 0.0
    %1149 = vmatpush1.xpose.msra.mxu0 0.0
    %1150 = vmatprep.subr.mxu0 0.0
    %1151 = vmatpush1.xpose.msra.mxu0 0.0
    %1152 = vmatprep.subr.mxu0 0.0
    %1153 = vmatpush1.xpose.msra.mxu0 0.0
    %1154 = vmatprep.subr.mxu0 0.0
    %1155 = vmatpush1.xpose.msra.mxu0 0.0
    %1156 = vmatprep.subr.mxu0 %v637
    %1157 = vmatpush1.xpose.msra.mxu0 %v629
    %1158 = vmatprep.subr.mxu0 0.0
    %1159 = vmatpush2.xpose.msra.mxu0 0.0
    %1160 = vmatprep.subr.mxu0 0.0
    %1161 = vmatpush2.xpose.msra.mxu0 0.0
    %1162 = vmatprep.subr.mxu0 0.0
    %1163 = vmatpush2.xpose.msra.mxu0 0.0
    %1164 = vmatprep.subr.mxu0 0.0
    %1165 = vmatpush2.xpose.msra.mxu0 0.0
    %1166 = vmatprep.subr.mxu0 0.0
    %1167 = vmatpush2.xpose.msra.mxu0 0.0
    %1168 = vmatprep.subr.mxu0 0.0
    %1169 = vmatpush2.xpose.msra.mxu0 0.0
    %1170 = vmatprep.subr.mxu0 0.0
    %1171 = vmatpush2.xpose.msra.mxu0 0.0
    %1172 = vmatprep.subr.mxu0 0.0
    %1173 = vmatpush2.xpose.msra.mxu0 0.0
    %1174 = vmatprep.subr.mxu0 0.0
    %1175 = vmatpush2.xpose.msra.mxu0 0.0
    %1176 = vmatprep.subr.mxu0 0.0
    %1177 = vmatpush2.xpose.msra.mxu0 0.0
    %1178 = vmatprep.subr.mxu0 0.0
    %1179 = vmatpush2.xpose.msra.mxu0 0.0
    %1180 = vmatprep.subr.mxu0 0.0
    %1181 = vmatpush2.xpose.msra.mxu0 0.0
    %1182 = vmatprep.subr.mxu0 0.0
    %1183 = vmatpush2.xpose.msra.mxu0 0.0
    %1184 = vmatprep.subr.mxu0 0.0
    %1185 = vmatpush2.xpose.msra.mxu0 0.0
    %1186 = vmatprep.subr.mxu0 0.0
    %1187 = vmatpush2.xpose.msra.mxu0 0.0
    %1188 = vmatprep.subr.mxu0 0.0
    %1189 = vmatpush2.xpose.msra.mxu0 0.0
    %1190 = vmatprep.mubr.f32.mxu0 %v109
    %1191 = vmatmul.mubr.f32.gmra.mxu0 %v101
    %v1192 = vpop.f32.mrf.mxu0
    %v1193 = vadd.f32 %v68, %v1192
    %v1194 = vpop.f32.mrf.mxu0
    %1195 = vdwg.mxu0
    %1196 = vmatprep.subr.mxu0 0.0
    %1197 = vmatpush1.xpose.msra.mxu0 0.0
    %1198 = vmatprep.subr.mxu0 0.0
    %1199 = vmatpush1.xpose.msra.mxu0 0.0
    %1200 = vmatprep.subr.mxu0 0.0
    %1201 = vmatpush1.xpose.msra.mxu0 0.0
    %1202 = vmatprep.subr.mxu0 0.0
    %1203 = vmatpush1.xpose.msra.mxu0 0.0
    %1204 = vmatprep.subr.mxu0 0.0
    %1205 = vmatpush1.xpose.msra.mxu0 0.0
    %1206 = vmatprep.subr.mxu0 0.0
    %1207 = vmatpush1.xpose.msra.mxu0 0.0
    %1208 = vmatprep.subr.mxu0 0.0
    %1209 = vmatpush1.xpose.msra.mxu0 0.0
    %1210 = vmatprep.subr.mxu0 0.0
    %1211 = vmatpush1.xpose.msra.mxu0 0.0
    %1212 = vmatprep.subr.mxu0 0.0
    %1213 = vmatpush1.xpose.msra.mxu0 0.0
    %1214 = vmatprep.subr.mxu0 0.0
    %1215 = vmatpush1.xpose.msra.mxu0 0.0
    %1216 = vmatprep.subr.mxu0 0.0
    %1217 = vmatpush1.xpose.msra.mxu0 0.0
    %1218 = vmatprep.subr.mxu0 0.0
    %1219 = vmatpush1.xpose.msra.mxu0 0.0
    %1220 = vmatprep.subr.mxu0 0.0
    %1221 = vmatpush1.xpose.msra.mxu0 0.0
    %1222 = vmatprep.subr.mxu0 0.0
    %1223 = vmatpush1.xpose.msra.mxu0 0.0
    %1224 = vmatprep.subr.mxu0 0.0
    %1225 = vmatpush1.xpose.msra.mxu0 0.0
    %1226 = vmatprep.subr.mxu0 %v638
    %1227 = vmatpush1.xpose.msra.mxu0 %v636
    %1228 = vmatprep.subr.mxu0 0.0
    %1229 = vmatpush2.xpose.msra.mxu0 0.0
    %1230 = vmatprep.subr.mxu0 0.0
    %1231 = vmatpush2.xpose.msra.mxu0 0.0
    %1232 = vmatprep.subr.mxu0 0.0
    %1233 = vmatpush2.xpose.msra.mxu0 0.0
    %1234 = vmatprep.subr.mxu0 0.0
    %1235 = vmatpush2.xpose.msra.mxu0 0.0
    %1236 = vmatprep.subr.mxu0 0.0
    %1237 = vmatpush2.xpose.msra.mxu0 0.0
    %1238 = vmatprep.subr.mxu0 0.0
    %1239 = vmatpush2.xpose.msra.mxu0 0.0
    %1240 = vmatprep.subr.mxu0 0.0
    %1241 = vmatpush2.xpose.msra.mxu0 0.0
    %1242 = vmatprep.subr.mxu0 0.0
    %1243 = vmatpush2.xpose.msra.mxu0 0.0
    %1244 = vmatprep.subr.mxu0 0.0
    %1245 = vmatpush2.xpose.msra.mxu0 0.0
    %1246 = vmatprep.subr.mxu0 0.0
    %1247 = vmatpush2.xpose.msra.mxu0 0.0
    %1248 = vmatprep.subr.mxu0 0.0
    %1249 = vmatpush2.xpose.msra.mxu0 0.0
    %1250 = vmatprep.subr.mxu0 0.0
    %1251 = vmatpush2.xpose.msra.mxu0 0.0
    %1252 = vmatprep.subr.mxu0 0.0
    %1253 = vmatpush2.xpose.msra.mxu0 0.0
    %1254 = vmatprep.subr.mxu0 0.0
    %1255 = vmatpush2.xpose.msra.mxu0 0.0
    %1256 = vmatprep.subr.mxu0 0.0
    %1257 = vmatpush2.xpose.msra.mxu0 0.0
    %1258 = vmatprep.subr.mxu0 0.0
    %1259 = vmatpush2.xpose.msra.mxu0 0.0
    %1260 = vmatprep.mubr.f32.mxu0 %v110
    %1261 = vmatmul.mubr.f32.gmra.mxu0 %v108
    %v1262 = vpop.f32.mrf.mxu0
    %v1263 = vadd.f32 %v1193, %v1262
    %v1264 = vpop.f32.mrf.mxu0
    %1265 = vdwg.mxu0
    %1266 = vmatprep.subr.mxu0 0.0
    %1267 = vmatpush1.xpose.msra.mxu0 0.0
    %1268 = vmatprep.subr.mxu0 0.0
    %1269 = vmatpush1.xpose.msra.mxu0 0.0
    %1270 = vmatprep.subr.mxu0 0.0
    %1271 = vmatpush1.xpose.msra.mxu0 0.0
    %1272 = vmatprep.subr.mxu0 0.0
    %1273 = vmatpush1.xpose.msra.mxu0 0.0
    %1274 = vmatprep.subr.mxu0 0.0
    %1275 = vmatpush1.xpose.msra.mxu0 0.0
    %1276 = vmatprep.subr.mxu0 0.0
    %1277 = vmatpush1.xpose.msra.mxu0 0.0
    %1278 = vmatprep.subr.mxu0 0.0
    %1279 = vmatpush1.xpose.msra.mxu0 0.0
    %1280 = vmatprep.subr.mxu0 0.0
    %1281 = vmatpush1.xpose.msra.mxu0 0.0
    %1282 = vmatprep.subr.mxu0 0.0
    %1283 = vmatpush1.xpose.msra.mxu0 0.0
    %1284 = vmatprep.subr.mxu0 0.0
    %1285 = vmatpush1.xpose.msra.mxu0 0.0
    %1286 = vmatprep.subr.mxu0 0.0
    %1287 = vmatpush1.xpose.msra.mxu0 0.0
    %1288 = vmatprep.subr.mxu0 0.0
    %1289 = vmatpush1.xpose.msra.mxu0 0.0
    %1290 = vmatprep.subr.mxu0 0.0
    %1291 = vmatpush1.xpose.msra.mxu0 0.0
    %1292 = vmatprep.subr.mxu0 0.0
    %1293 = vmatpush1.xpose.msra.mxu0 0.0
    %1294 = vmatprep.subr.mxu0 0.0
    %1295 = vmatpush1.xpose.msra.mxu0 0.0
    %1296 = vmatprep.subr.mxu0 %v654
    %1297 = vmatpush1.xpose.msra.mxu0 %v646
    %1298 = vmatprep.subr.mxu0 0.0
    %1299 = vmatpush2.xpose.msra.mxu0 0.0
    %1300 = vmatprep.subr.mxu0 0.0
    %1301 = vmatpush2.xpose.msra.mxu0 0.0
    %1302 = vmatprep.subr.mxu0 0.0
    %1303 = vmatpush2.xpose.msra.mxu0 0.0
    %1304 = vmatprep.subr.mxu0 0.0
    %1305 = vmatpush2.xpose.msra.mxu0 0.0
    %1306 = vmatprep.subr.mxu0 0.0
    %1307 = vmatpush2.xpose.msra.mxu0 0.0
    %1308 = vmatprep.subr.mxu0 0.0
    %1309 = vmatpush2.xpose.msra.mxu0 0.0
    %1310 = vmatprep.subr.mxu0 0.0
    %1311 = vmatpush2.xpose.msra.mxu0 0.0
    %1312 = vmatprep.subr.mxu0 0.0
    %1313 = vmatpush2.xpose.msra.mxu0 0.0
    %1314 = vmatprep.subr.mxu0 0.0
    %1315 = vmatpush2.xpose.msra.mxu0 0.0
    %1316 = vmatprep.subr.mxu0 0.0
    %1317 = vmatpush2.xpose.msra.mxu0 0.0
    %1318 = vmatprep.subr.mxu0 0.0
    %1319 = vmatpush2.xpose.msra.mxu0 0.0
    %1320 = vmatprep.subr.mxu0 0.0
    %1321 = vmatpush2.xpose.msra.mxu0 0.0
    %1322 = vmatprep.subr.mxu0 0.0
    %1323 = vmatpush2.xpose.msra.mxu0 0.0
    %1324 = vmatprep.subr.mxu0 0.0
    %1325 = vmatpush2.xpose.msra.mxu0 0.0
    %1326 = vmatprep.subr.mxu0 0.0
    %1327 = vmatpush2.xpose.msra.mxu0 0.0
    %1328 = vmatprep.subr.mxu0 0.0
    %1329 = vmatpush2.xpose.msra.mxu0 0.0
    %1330 = vmatprep.mubr.f32.mxu0 %v126
    %1331 = vmatmul.mubr.f32.gmra.mxu0 %v118
    %v1332 = vpop.f32.mrf.mxu0
    %v1333 = vadd.f32 %v1263, %v1332
    %v1334 = vpop.f32.mrf.mxu0
    %1335 = vdwg.mxu0
    %1336 = vmatprep.subr.mxu0 0.0
    %1337 = vmatpush1.xpose.msra.mxu0 0.0
    %1338 = vmatprep.subr.mxu0 0.0
    %1339 = vmatpush1.xpose.msra.mxu0 0.0
    %1340 = vmatprep.subr.mxu0 0.0
    %1341 = vmatpush1.xpose.msra.mxu0 0.0
    %1342 = vmatprep.subr.mxu0 0.0
    %1343 = vmatpush1.xpose.msra.mxu0 0.0
    %1344 = vmatprep.subr.mxu0 0.0
    %1345 = vmatpush1.xpose.msra.mxu0 0.0
    %1346 = vmatprep.subr.mxu0 0.0
    %1347 = vmatpush1.xpose.msra.mxu0 0.0
    %1348 = vmatprep.subr.mxu0 0.0
    %1349 = vmatpush1.xpose.msra.mxu0 0.0
    %1350 = vmatprep.subr.mxu0 0.0
    %1351 = vmatpush1.xpose.msra.mxu0 0.0
    %1352 = vmatprep.subr.mxu0 0.0
    %1353 = vmatpush1.xpose.msra.mxu0 0.0
    %1354 = vmatprep.subr.mxu0 0.0
    %1355 = vmatpush1.xpose.msra.mxu0 0.0
    %1356 = vmatprep.subr.mxu0 0.0
    %1357 = vmatpush1.xpose.msra.mxu0 0.0
    %1358 = vmatprep.subr.mxu0 0.0
    %1359 = vmatpush1.xpose.msra.mxu0 0.0
    %1360 = vmatprep.subr.mxu0 0.0
    %1361 = vmatpush1.xpose.msra.mxu0 0.0
    %1362 = vmatprep.subr.mxu0 0.0
    %1363 = vmatpush1.xpose.msra.mxu0 0.0
    %1364 = vmatprep.subr.mxu0 0.0
    %1365 = vmatpush1.xpose.msra.mxu0 0.0
    %1366 = vmatprep.subr.mxu0 %v655
    %1367 = vmatpush1.xpose.msra.mxu0 %v653
    %1368 = vmatprep.subr.mxu0 0.0
    %1369 = vmatpush2.xpose.msra.mxu0 0.0
    %1370 = vmatprep.subr.mxu0 0.0
    %1371 = vmatpush2.xpose.msra.mxu0 0.0
    %1372 = vmatprep.subr.mxu0 0.0
    %1373 = vmatpush2.xpose.msra.mxu0 0.0
    %1374 = vmatprep.subr.mxu0 0.0
    %1375 = vmatpush2.xpose.msra.mxu0 0.0
    %1376 = vmatprep.subr.mxu0 0.0
    %1377 = vmatpush2.xpose.msra.mxu0 0.0
    %1378 = vmatprep.subr.mxu0 0.0
    %1379 = vmatpush2.xpose.msra.mxu0 0.0
    %1380 = vmatprep.subr.mxu0 0.0
    %1381 = vmatpush2.xpose.msra.mxu0 0.0
    %1382 = vmatprep.subr.mxu0 0.0
    %1383 = vmatpush2.xpose.msra.mxu0 0.0
    %1384 = vmatprep.subr.mxu0 0.0
    %1385 = vmatpush2.xpose.msra.mxu0 0.0
    %1386 = vmatprep.subr.mxu0 0.0
    %1387 = vmatpush2.xpose.msra.mxu0 0.0
    %1388 = vmatprep.subr.mxu0 0.0
    %1389 = vmatpush2.xpose.msra.mxu0 0.0
    %1390 = vmatprep.subr.mxu0 0.0
    %1391 = vmatpush2.xpose.msra.mxu0 0.0
    %1392 = vmatprep.subr.mxu0 0.0
    %1393 = vmatpush2.xpose.msra.mxu0 0.0
    %1394 = vmatprep.subr.mxu0 0.0
    %1395 = vmatpush2.xpose.msra.mxu0 0.0
    %1396 = vmatprep.subr.mxu0 0.0
    %1397 = vmatpush2.xpose.msra.mxu0 0.0
    %1398 = vmatprep.subr.mxu0 0.0
    %1399 = vmatpush2.xpose.msra.mxu0 0.0
    %1400 = vmatprep.mubr.f32.mxu0 %v127
    %1401 = vmatmul.mubr.f32.gmra.mxu0 %v125
    %v1402 = vpop.f32.mrf.mxu0
    %v1403 = vadd.f32 %v1333, %v1402
    %v1404 = vpop.f32.mrf.mxu0
    %1405 = vdwg.mxu0
    %1406 = vmatprep.subr.mxu0 0.0
    %1407 = vmatpush1.xpose.msra.mxu0 0.0
    %1408 = vmatprep.subr.mxu0 0.0
    %1409 = vmatpush1.xpose.msra.mxu0 0.0
    %1410 = vmatprep.subr.mxu0 0.0
    %1411 = vmatpush1.xpose.msra.mxu0 0.0
    %1412 = vmatprep.subr.mxu0 0.0
    %1413 = vmatpush1.xpose.msra.mxu0 0.0
    %1414 = vmatprep.subr.mxu0 0.0
    %1415 = vmatpush1.xpose.msra.mxu0 0.0
    %1416 = vmatprep.subr.mxu0 0.0
    %1417 = vmatpush1.xpose.msra.mxu0 0.0
    %1418 = vmatprep.subr.mxu0 0.0
    %1419 = vmatpush1.xpose.msra.mxu0 0.0
    %1420 = vmatprep.subr.mxu0 0.0
    %1421 = vmatpush1.xpose.msra.mxu0 0.0
    %1422 = vmatprep.subr.mxu0 0.0
    %1423 = vmatpush1.xpose.msra.mxu0 0.0
    %1424 = vmatprep.subr.mxu0 0.0
    %1425 = vmatpush1.xpose.msra.mxu0 0.0
    %1426 = vmatprep.subr.mxu0 0.0
    %1427 = vmatpush1.xpose.msra.mxu0 0.0
    %1428 = vmatprep.subr.mxu0 0.0
    %1429 = vmatpush1.xpose.msra.mxu0 0.0
    %1430 = vmatprep.subr.mxu0 0.0
    %1431 = vmatpush1.xpose.msra.mxu0 0.0
    %1432 = vmatprep.subr.mxu0 0.0
    %1433 = vmatpush1.xpose.msra.mxu0 0.0
    %1434 = vmatprep.subr.mxu0 0.0
    %1435 = vmatpush1.xpose.msra.mxu0 0.0
    %1436 = vmatprep.subr.mxu0 %v671
    %1437 = vmatpush1.xpose.msra.mxu0 %v663
    %1438 = vmatprep.subr.mxu0 0.0
    %1439 = vmatpush2.xpose.msra.mxu0 0.0
    %1440 = vmatprep.subr.mxu0 0.0
    %1441 = vmatpush2.xpose.msra.mxu0 0.0
    %1442 = vmatprep.subr.mxu0 0.0
    %1443 = vmatpush2.xpose.msra.mxu0 0.0
    %1444 = vmatprep.subr.mxu0 0.0
    %1445 = vmatpush2.xpose.msra.mxu0 0.0
    %1446 = vmatprep.subr.mxu0 0.0
    %1447 = vmatpush2.xpose.msra.mxu0 0.0
    %1448 = vmatprep.subr.mxu0 0.0
    %1449 = vmatpush2.xpose.msra.mxu0 0.0
    %1450 = vmatprep.subr.mxu0 0.0
    %1451 = vmatpush2.xpose.msra.mxu0 0.0
    %1452 = vmatprep.subr.mxu0 0.0
    %1453 = vmatpush2.xpose.msra.mxu0 0.0
    %1454 = vmatprep.subr.mxu0 0.0
    %1455 = vmatpush2.xpose.msra.mxu0 0.0
    %1456 = vmatprep.subr.mxu0 0.0
    %1457 = vmatpush2.xpose.msra.mxu0 0.0
    %1458 = vmatprep.subr.mxu0 0.0
    %1459 = vmatpush2.xpose.msra.mxu0 0.0
    %1460 = vmatprep.subr.mxu0 0.0
    %1461 = vmatpush2.xpose.msra.mxu0 0.0
    %1462 = vmatprep.subr.mxu0 0.0
    %1463 = vmatpush2.xpose.msra.mxu0 0.0
    %1464 = vmatprep.subr.mxu0 0.0
    %1465 = vmatpush2.xpose.msra.mxu0 0.0
    %1466 = vmatprep.subr.mxu0 0.0
    %1467 = vmatpush2.xpose.msra.mxu0 0.0
    %1468 = vmatprep.subr.mxu0 0.0
    %1469 = vmatpush2.xpose.msra.mxu0 0.0
    %1470 = vmatprep.mubr.f32.mxu0 %v143
    %1471 = vmatmul.mubr.f32.gmra.mxu0 %v135
    %v1472 = vpop.f32.mrf.mxu0
    %v1473 = vadd.f32 %v1403, %v1472
    %v1474 = vpop.f32.mrf.mxu0
    %1475 = vdwg.mxu0
    %1476 = vmatprep.subr.mxu0 0.0
    %1477 = vmatpush1.xpose.msra.mxu0 0.0
    %1478 = vmatprep.subr.mxu0 0.0
    %1479 = vmatpush1.xpose.msra.mxu0 0.0
    %1480 = vmatprep.subr.mxu0 0.0
    %1481 = vmatpush1.xpose.msra.mxu0 0.0
    %1482 = vmatprep.subr.mxu0 0.0
    %1483 = vmatpush1.xpose.msra.mxu0 0.0
    %1484 = vmatprep.subr.mxu0 0.0
    %1485 = vmatpush1.xpose.msra.mxu0 0.0
    %1486 = vmatprep.subr.mxu0 0.0
    %1487 = vmatpush1.xpose.msra.mxu0 0.0
    %1488 = vmatprep.subr.mxu0 0.0
    %1489 = vmatpush1.xpose.msra.mxu0 0.0
    %1490 = vmatprep.subr.mxu0 0.0
    %1491 = vmatpush1.xpose.msra.mxu0 0.0
    %1492 = vmatprep.subr.mxu0 0.0
    %1493 = vmatpush1.xpose.msra.mxu0 0.0
    %1494 = vmatprep.subr.mxu0 0.0
    %1495 = vmatpush1.xpose.msra.mxu0 0.0
    %1496 = vmatprep.subr.mxu0 0.0
    %1497 = vmatpush1.xpose.msra.mxu0 0.0
    %1498 = vmatprep.subr.mxu0 0.0
    %1499 = vmatpush1.xpose.msra.mxu0 0.0
    %1500 = vmatprep.subr.mxu0 0.0
    %1501 = vmatpush1.xpose.msra.mxu0 0.0
    %1502 = vmatprep.subr.mxu0 0.0
    %1503 = vmatpush1.xpose.msra.mxu0 0.0
    %1504 = vmatprep.subr.mxu0 0.0
    %1505 = vmatpush1.xpose.msra.mxu0 0.0
    %1506 = vmatprep.subr.mxu0 %v672
    %1507 = vmatpush1.xpose.msra.mxu0 %v670
    %1508 = vmatprep.subr.mxu0 0.0
    %1509 = vmatpush2.xpose.msra.mxu0 0.0
    %1510 = vmatprep.subr.mxu0 0.0
    %1511 = vmatpush2.xpose.msra.mxu0 0.0
    %1512 = vmatprep.subr.mxu0 0.0
    %1513 = vmatpush2.xpose.msra.mxu0 0.0
    %1514 = vmatprep.subr.mxu0 0.0
    %1515 = vmatpush2.xpose.msra.mxu0 0.0
    %1516 = vmatprep.subr.mxu0 0.0
    %1517 = vmatpush2.xpose.msra.mxu0 0.0
    %1518 = vmatprep.subr.mxu0 0.0
    %1519 = vmatpush2.xpose.msra.mxu0 0.0
    %1520 = vmatprep.subr.mxu0 0.0
    %1521 = vmatpush2.xpose.msra.mxu0 0.0
    %1522 = vmatprep.subr.mxu0 0.0
    %1523 = vmatpush2.xpose.msra.mxu0 0.0
    %1524 = vmatprep.subr.mxu0 0.0
    %1525 = vmatpush2.xpose.msra.mxu0 0.0
    %1526 = vmatprep.subr.mxu0 0.0
    %1527 = vmatpush2.xpose.msra.mxu0 0.0
    %1528 = vmatprep.subr.mxu0 0.0
    %1529 = vmatpush2.xpose.msra.mxu0 0.0
    %1530 = vmatprep.subr.mxu0 0.0
    %1531 = vmatpush2.xpose.msra.mxu0 0.0
    %1532 = vmatprep.subr.mxu0 0.0
    %1533 = vmatpush2.xpose.msra.mxu0 0.0
    %1534 = vmatprep.subr.mxu0 0.0
    %1535 = vmatpush2.xpose.msra.mxu0 0.0
    %1536 = vmatprep.subr.mxu0 0.0
    %1537 = vmatpush2.xpose.msra.mxu0 0.0
    %1538 = vmatprep.subr.mxu0 0.0
    %1539 = vmatpush2.xpose.msra.mxu0 0.0
    %1540 = vmatprep.mubr.f32.mxu0 %v144
    %1541 = vmatmul.mubr.f32.gmra.mxu0 %v142
    %v1542 = vpop.f32.mrf.mxu0
    %v1543 = vadd.f32 %v1473, %v1542
    %v1544 = vpop.f32.mrf.mxu0
    %1545 = vdwg.mxu0
    %1546 = vmatprep.subr.mxu0 0.0
    %1547 = vmatpush1.xpose.msra.mxu0 0.0
    %1548 = vmatprep.subr.mxu0 0.0
    %1549 = vmatpush1.xpose.msra.mxu0 0.0
    %1550 = vmatprep.subr.mxu0 0.0
    %1551 = vmatpush1.xpose.msra.mxu0 0.0
    %1552 = vmatprep.subr.mxu0 0.0
    %1553 = vmatpush1.xpose.msra.mxu0 0.0
    %1554 = vmatprep.subr.mxu0 0.0
    %1555 = vmatpush1.xpose.msra.mxu0 0.0
    %1556 = vmatprep.subr.mxu0 0.0
    %1557 = vmatpush1.xpose.msra.mxu0 0.0
    %1558 = vmatprep.subr.mxu0 0.0
    %1559 = vmatpush1.xpose.msra.mxu0 0.0
    %1560 = vmatprep.subr.mxu0 0.0
    %1561 = vmatpush1.xpose.msra.mxu0 0.0
    %1562 = vmatprep.subr.mxu0 0.0
    %1563 = vmatpush1.xpose.msra.mxu0 0.0
    %1564 = vmatprep.subr.mxu0 0.0
    %1565 = vmatpush1.xpose.msra.mxu0 0.0
    %1566 = vmatprep.subr.mxu0 0.0
    %1567 = vmatpush1.xpose.msra.mxu0 0.0
    %1568 = vmatprep.subr.mxu0 0.0
    %1569 = vmatpush1.xpose.msra.mxu0 0.0
    %1570 = vmatprep.subr.mxu0 0.0
    %1571 = vmatpush1.xpose.msra.mxu0 0.0
    %1572 = vmatprep.subr.mxu0 0.0
    %1573 = vmatpush1.xpose.msra.mxu0 0.0
    %1574 = vmatprep.subr.mxu0 0.0
    %1575 = vmatpush1.xpose.msra.mxu0 0.0
    %1576 = vmatprep.subr.mxu0 %v688
    %1577 = vmatpush1.xpose.msra.mxu0 %v680
    %1578 = vmatprep.subr.mxu0 0.0
    %1579 = vmatpush2.xpose.msra.mxu0 0.0
    %1580 = vmatprep.subr.mxu0 0.0
    %1581 = vmatpush2.xpose.msra.mxu0 0.0
    %1582 = vmatprep.subr.mxu0 0.0
    %1583 = vmatpush2.xpose.msra.mxu0 0.0
    %1584 = vmatprep.subr.mxu0 0.0
    %1585 = vmatpush2.xpose.msra.mxu0 0.0
    %1586 = vmatprep.subr.mxu0 0.0
    %1587 = vmatpush2.xpose.msra.mxu0 0.0
    %1588 = vmatprep.subr.mxu0 0.0
    %1589 = vmatpush2.xpose.msra.mxu0 0.0
    %1590 = vmatprep.subr.mxu0 0.0
    %1591 = vmatpush2.xpose.msra.mxu0 0.0
    %1592 = vmatprep.subr.mxu0 0.0
    %1593 = vmatpush2.xpose.msra.mxu0 0.0
    %1594 = vmatprep.subr.mxu0 0.0
    %1595 = vmatpush2.xpose.msra.mxu0 0.0
    %1596 = vmatprep.subr.mxu0 0.0
    %1597 = vmatpush2.xpose.msra.mxu0 0.0
    %1598 = vmatprep.subr.mxu0 0.0
    %1599 = vmatpush2.xpose.msra.mxu0 0.0
    %1600 = vmatprep.subr.mxu0 0.0
    %1601 = vmatpush2.xpose.msra.mxu0 0.0
    %1602 = vmatprep.subr.mxu0 0.0
    %1603 = vmatpush2.xpose.msra.mxu0 0.0
    %1604 = vmatprep.subr.mxu0 0.0
    %1605 = vmatpush2.xpose.msra.mxu0 0.0
    %1606 = vmatprep.subr.mxu0 0.0
    %1607 = vmatpush2.xpose.msra.mxu0 0.0
    %1608 = vmatprep.subr.mxu0 0.0
    %1609 = vmatpush2.xpose.msra.mxu0 0.0
    %1610 = vmatprep.mubr.f32.mxu0 %v160
    %1611 = vmatmul.mubr.f32.gmra.mxu0 %v152
    %v1612 = vpop.f32.mrf.mxu0
    %v1613 = vadd.f32 %v1543, %v1612
    %v1614 = vpop.f32.mrf.mxu0
    %1615 = vdwg.mxu0
    %1616 = vmatprep.subr.mxu0 0.0
    %1617 = vmatpush1.xpose.msra.mxu0 0.0
    %1618 = vmatprep.subr.mxu0 0.0
    %1619 = vmatpush1.xpose.msra.mxu0 0.0
    %1620 = vmatprep.subr.mxu0 0.0
    %1621 = vmatpush1.xpose.msra.mxu0 0.0
    %1622 = vmatprep.subr.mxu0 0.0
    %1623 = vmatpush1.xpose.msra.mxu0 0.0
    %1624 = vmatprep.subr.mxu0 0.0
    %1625 = vmatpush1.xpose.msra.mxu0 0.0
    %1626 = vmatprep.subr.mxu0 0.0
    %1627 = vmatpush1.xpose.msra.mxu0 0.0
    %1628 = vmatprep.subr.mxu0 0.0
    %1629 = vmatpush1.xpose.msra.mxu0 0.0
    %1630 = vmatprep.subr.mxu0 0.0
    %1631 = vmatpush1.xpose.msra.mxu0 0.0
    %1632 = vmatprep.subr.mxu0 0.0
    %1633 = vmatpush1.xpose.msra.mxu0 0.0
    %1634 = vmatprep.subr.mxu0 0.0
    %1635 = vmatpush1.xpose.msra.mxu0 0.0
    %1636 = vmatprep.subr.mxu0 0.0
    %1637 = vmatpush1.xpose.msra.mxu0 0.0
    %1638 = vmatprep.subr.mxu0 0.0
    %1639 = vmatpush1.xpose.msra.mxu0 0.0
    %1640 = vmatprep.subr.mxu0 0.0
    %1641 = vmatpush1.xpose.msra.mxu0 0.0
    %1642 = vmatprep.subr.mxu0 0.0
    %1643 = vmatpush1.xpose.msra.mxu0 0.0
    %1644 = vmatprep.subr.mxu0 0.0
    %1645 = vmatpush1.xpose.msra.mxu0 0.0
    %1646 = vmatprep.subr.mxu0 %v689
    %1647 = vmatpush1.xpose.msra.mxu0 %v687
    %1648 = vmatprep.subr.mxu0 0.0
    %1649 = vmatpush2.xpose.msra.mxu0 0.0
    %1650 = vmatprep.subr.mxu0 0.0
    %1651 = vmatpush2.xpose.msra.mxu0 0.0
    %1652 = vmatprep.subr.mxu0 0.0
    %1653 = vmatpush2.xpose.msra.mxu0 0.0
    %1654 = vmatprep.subr.mxu0 0.0
    %1655 = vmatpush2.xpose.msra.mxu0 0.0
    %1656 = vmatprep.subr.mxu0 0.0
    %1657 = vmatpush2.xpose.msra.mxu0 0.0
    %1658 = vmatprep.subr.mxu0 0.0
    %1659 = vmatpush2.xpose.msra.mxu0 0.0
    %1660 = vmatprep.subr.mxu0 0.0
    %1661 = vmatpush2.xpose.msra.mxu0 0.0
    %1662 = vmatprep.subr.mxu0 0.0
    %1663 = vmatpush2.xpose.msra.mxu0 0.0
    %1664 = vmatprep.subr.mxu0 0.0
    %1665 = vmatpush2.xpose.msra.mxu0 0.0
    %1666 = vmatprep.subr.mxu0 0.0
    %1667 = vmatpush2.xpose.msra.mxu0 0.0
    %1668 = vmatprep.subr.mxu0 0.0
    %1669 = vmatpush2.xpose.msra.mxu0 0.0
    %1670 = vmatprep.subr.mxu0 0.0
    %1671 = vmatpush2.xpose.msra.mxu0 0.0
    %1672 = vmatprep.subr.mxu0 0.0
    %1673 = vmatpush2.xpose.msra.mxu0 0.0
    %1674 = vmatprep.subr.mxu0 0.0
    %1675 = vmatpush2.xpose.msra.mxu0 0.0
    %1676 = vmatprep.subr.mxu0 0.0
    %1677 = vmatpush2.xpose.msra.mxu0 0.0
    %1678 = vmatprep.subr.mxu0 0.0
    %1679 = vmatpush2.xpose.msra.mxu0 0.0
    %1680 = vmatprep.mubr.f32.mxu0 %v161
    %1681 = vmatmul.mubr.f32.gmra.mxu0 %v159
    %v1682 = vpop.f32.mrf.mxu0
    %v1683 = vadd.f32 %v1613, %v1682
    %v1684 = vpop.f32.mrf.mxu0
    %1685 = vdwg.mxu0
    %1686 = vmatprep.subr.mxu0 0.0
    %1687 = vmatpush1.xpose.msra.mxu0 0.0
    %1688 = vmatprep.subr.mxu0 0.0
    %1689 = vmatpush1.xpose.msra.mxu0 0.0
    %1690 = vmatprep.subr.mxu0 0.0
    %1691 = vmatpush1.xpose.msra.mxu0 0.0
    %1692 = vmatprep.subr.mxu0 0.0
    %1693 = vmatpush1.xpose.msra.mxu0 0.0
    %1694 = vmatprep.subr.mxu0 0.0
    %1695 = vmatpush1.xpose.msra.mxu0 0.0
    %1696 = vmatprep.subr.mxu0 0.0
    %1697 = vmatpush1.xpose.msra.mxu0 0.0
    %1698 = vmatprep.subr.mxu0 0.0
    %1699 = vmatpush1.xpose.msra.mxu0 0.0
    %1700 = vmatprep.subr.mxu0 0.0
    %1701 = vmatpush1.xpose.msra.mxu0 0.0
    %1702 = vmatprep.subr.mxu0 0.0
    %1703 = vmatpush1.xpose.msra.mxu0 0.0
    %1704 = vmatprep.subr.mxu0 0.0
    %1705 = vmatpush1.xpose.msra.mxu0 0.0
    %1706 = vmatprep.subr.mxu0 0.0
    %1707 = vmatpush1.xpose.msra.mxu0 0.0
    %1708 = vmatprep.subr.mxu0 0.0
    %1709 = vmatpush1.xpose.msra.mxu0 0.0
    %1710 = vmatprep.subr.mxu0 0.0
    %1711 = vmatpush1.xpose.msra.mxu0 0.0
    %1712 = vmatprep.subr.mxu0 0.0
    %1713 = vmatpush1.xpose.msra.mxu0 0.0
    %1714 = vmatprep.subr.mxu0 0.0
    %1715 = vmatpush1.xpose.msra.mxu0 0.0
    %1716 = vmatprep.subr.mxu0 %v705
    %1717 = vmatpush1.xpose.msra.mxu0 %v697
    %1718 = vmatprep.subr.mxu0 0.0
    %1719 = vmatpush2.xpose.msra.mxu0 0.0
    %1720 = vmatprep.subr.mxu0 0.0
    %1721 = vmatpush2.xpose.msra.mxu0 0.0
    %1722 = vmatprep.subr.mxu0 0.0
    %1723 = vmatpush2.xpose.msra.mxu0 0.0
    %1724 = vmatprep.subr.mxu0 0.0
    %1725 = vmatpush2.xpose.msra.mxu0 0.0
    %1726 = vmatprep.subr.mxu0 0.0
    %1727 = vmatpush2.xpose.msra.mxu0 0.0
    %1728 = vmatprep.subr.mxu0 0.0
    %1729 = vmatpush2.xpose.msra.mxu0 0.0
    %1730 = vmatprep.subr.mxu0 0.0
    %1731 = vmatpush2.xpose.msra.mxu0 0.0
    %1732 = vmatprep.subr.mxu0 0.0
    %1733 = vmatpush2.xpose.msra.mxu0 0.0
    %1734 = vmatprep.subr.mxu0 0.0
    %1735 = vmatpush2.xpose.msra.mxu0 0.0
    %1736 = vmatprep.subr.mxu0 0.0
    %1737 = vmatpush2.xpose.msra.mxu0 0.0
    %1738 = vmatprep.subr.mxu0 0.0
    %1739 = vmatpush2.xpose.msra.mxu0 0.0
    %1740 = vmatprep.subr.mxu0 0.0
    %1741 = vmatpush2.xpose.msra.mxu0 0.0
    %1742 = vmatprep.subr.mxu0 0.0
    %1743 = vmatpush2.xpose.msra.mxu0 0.0
    %1744 = vmatprep.subr.mxu0 0.0
    %1745 = vmatpush2.xpose.msra.mxu0 0.0
    %1746 = vmatprep.subr.mxu0 0.0
    %1747 = vmatpush2.xpose.msra.mxu0 0.0
    %1748 = vmatprep.subr.mxu0 0.0
    %1749 = vmatpush2.xpose.msra.mxu0 0.0
    %1750 = vmatprep.mubr.f32.mxu0 %v177
    %1751 = vmatmul.mubr.f32.gmra.mxu0 %v169
    %v1752 = vpop.f32.mrf.mxu0
    %v1753 = vadd.f32 %v1683, %v1752
    %v1754 = vpop.f32.mrf.mxu0
    %1755 = vdwg.mxu0
    %1756 = vmatprep.subr.mxu0 0.0
    %1757 = vmatpush1.xpose.msra.mxu0 0.0
    %1758 = vmatprep.subr.mxu0 0.0
    %1759 = vmatpush1.xpose.msra.mxu0 0.0
    %1760 = vmatprep.subr.mxu0 0.0
    %1761 = vmatpush1.xpose.msra.mxu0 0.0
    %1762 = vmatprep.subr.mxu0 0.0
    %1763 = vmatpush1.xpose.msra.mxu0 0.0
    %1764 = vmatprep.subr.mxu0 0.0
    %1765 = vmatpush1.xpose.msra.mxu0 0.0
    %1766 = vmatprep.subr.mxu0 0.0
    %1767 = vmatpush1.xpose.msra.mxu0 0.0
    %1768 = vmatprep.subr.mxu0 0.0
    %1769 = vmatpush1.xpose.msra.mxu0 0.0
    %1770 = vmatprep.subr.mxu0 0.0
    %1771 = vmatpush1.xpose.msra.mxu0 0.0
    %1772 = vmatprep.subr.mxu0 0.0
    %1773 = vmatpush1.xpose.msra.mxu0 0.0
    %1774 = vmatprep.subr.mxu0 0.0
    %1775 = vmatpush1.xpose.msra.mxu0 0.0
    %1776 = vmatprep.subr.mxu0 0.0
    %1777 = vmatpush1.xpose.msra.mxu0 0.0
    %1778 = vmatprep.subr.mxu0 0.0
    %1779 = vmatpush1.xpose.msra.mxu0 0.0
    %1780 = vmatprep.subr.mxu0 0.0
    %1781 = vmatpush1.xpose.msra.mxu0 0.0
    %1782 = vmatprep.subr.mxu0 0.0
    %1783 = vmatpush1.xpose.msra.mxu0 0.0
    %1784 = vmatprep.subr.mxu0 0.0
    %1785 = vmatpush1.xpose.msra.mxu0 0.0
    %1786 = vmatprep.subr.mxu0 %v706
    %1787 = vmatpush1.xpose.msra.mxu0 %v704
    %1788 = vmatprep.subr.mxu0 0.0
    %1789 = vmatpush2.xpose.msra.mxu0 0.0
    %1790 = vmatprep.subr.mxu0 0.0
    %1791 = vmatpush2.xpose.msra.mxu0 0.0
    %1792 = vmatprep.subr.mxu0 0.0
    %1793 = vmatpush2.xpose.msra.mxu0 0.0
    %1794 = vmatprep.subr.mxu0 0.0
    %1795 = vmatpush2.xpose.msra.mxu0 0.0
    %1796 = vmatprep.subr.mxu0 0.0
    %1797 = vmatpush2.xpose.msra.mxu0 0.0
    %1798 = vmatprep.subr.mxu0 0.0
    %1799 = vmatpush2.xpose.msra.mxu0 0.0
    %1800 = vmatprep.subr.mxu0 0.0
    %1801 = vmatpush2.xpose.msra.mxu0 0.0
    %1802 = vmatprep.subr.mxu0 0.0
    %1803 = vmatpush2.xpose.msra.mxu0 0.0
    %1804 = vmatprep.subr.mxu0 0.0
    %1805 = vmatpush2.xpose.msra.mxu0 0.0
    %1806 = vmatprep.subr.mxu0 0.0
    %1807 = vmatpush2.xpose.msra.mxu0 0.0
    %1808 = vmatprep.subr.mxu0 0.0
    %1809 = vmatpush2.xpose.msra.mxu0 0.0
    %1810 = vmatprep.subr.mxu0 0.0
    %1811 = vmatpush2.xpose.msra.mxu0 0.0
    %1812 = vmatprep.subr.mxu0 0.0
    %1813 = vmatpush2.xpose.msra.mxu0 0.0
    %1814 = vmatprep.subr.mxu0 0.0
    %1815 = vmatpush2.xpose.msra.mxu0 0.0
    %1816 = vmatprep.subr.mxu0 0.0
    %1817 = vmatpush2.xpose.msra.mxu0 0.0
    %1818 = vmatprep.subr.mxu0 0.0
    %1819 = vmatpush2.xpose.msra.mxu0 0.0
    %1820 = vmatprep.mubr.f32.mxu0 %v178
    %1821 = vmatmul.mubr.f32.gmra.mxu0 %v176
    %v1822 = vpop.f32.mrf.mxu0
    %v1823 = vadd.f32 %v1753, %v1822
    %v1824 = vpop.f32.mrf.mxu0
    %1825 = vdwg.mxu0
    %1826 = vmatprep.subr.mxu0 0.0
    %1827 = vmatpush1.xpose.msra.mxu0 0.0
    %1828 = vmatprep.subr.mxu0 0.0
    %1829 = vmatpush1.xpose.msra.mxu0 0.0
    %1830 = vmatprep.subr.mxu0 0.0
    %1831 = vmatpush1.xpose.msra.mxu0 0.0
    %1832 = vmatprep.subr.mxu0 0.0
    %1833 = vmatpush1.xpose.msra.mxu0 0.0
    %1834 = vmatprep.subr.mxu0 0.0
    %1835 = vmatpush1.xpose.msra.mxu0 0.0
    %1836 = vmatprep.subr.mxu0 0.0
    %1837 = vmatpush1.xpose.msra.mxu0 0.0
    %1838 = vmatprep.subr.mxu0 0.0
    %1839 = vmatpush1.xpose.msra.mxu0 0.0
    %1840 = vmatprep.subr.mxu0 0.0
    %1841 = vmatpush1.xpose.msra.mxu0 0.0
    %1842 = vmatprep.subr.mxu0 0.0
    %1843 = vmatpush1.xpose.msra.mxu0 0.0
    %1844 = vmatprep.subr.mxu0 0.0
    %1845 = vmatpush1.xpose.msra.mxu0 0.0
    %1846 = vmatprep.subr.mxu0 0.0
    %1847 = vmatpush1.xpose.msra.mxu0 0.0
    %1848 = vmatprep.subr.mxu0 0.0
    %1849 = vmatpush1.xpose.msra.mxu0 0.0
    %1850 = vmatprep.subr.mxu0 0.0
    %1851 = vmatpush1.xpose.msra.mxu0 0.0
    %1852 = vmatprep.subr.mxu0 0.0
    %1853 = vmatpush1.xpose.msra.mxu0 0.0
    %1854 = vmatprep.subr.mxu0 0.0
    %1855 = vmatpush1.xpose.msra.mxu0 0.0
    %1856 = vmatprep.subr.mxu0 %v722
    %1857 = vmatpush1.xpose.msra.mxu0 %v714
    %1858 = vmatprep.subr.mxu0 0.0
    %1859 = vmatpush2.xpose.msra.mxu0 0.0
    %1860 = vmatprep.subr.mxu0 0.0
    %1861 = vmatpush2.xpose.msra.mxu0 0.0
    %1862 = vmatprep.subr.mxu0 0.0
    %1863 = vmatpush2.xpose.msra.mxu0 0.0
    %1864 = vmatprep.subr.mxu0 0.0
    %1865 = vmatpush2.xpose.msra.mxu0 0.0
    %1866 = vmatprep.subr.mxu0 0.0
    %1867 = vmatpush2.xpose.msra.mxu0 0.0
    %1868 = vmatprep.subr.mxu0 0.0
    %1869 = vmatpush2.xpose.msra.mxu0 0.0
    %1870 = vmatprep.subr.mxu0 0.0
    %1871 = vmatpush2.xpose.msra.mxu0 0.0
    %1872 = vmatprep.subr.mxu0 0.0
    %1873 = vmatpush2.xpose.msra.mxu0 0.0
    %1874 = vmatprep.subr.mxu0 0.0
    %1875 = vmatpush2.xpose.msra.mxu0 0.0
    %1876 = vmatprep.subr.mxu0 0.0
    %1877 = vmatpush2.xpose.msra.mxu0 0.0
    %1878 = vmatprep.subr.mxu0 0.0
    %1879 = vmatpush2.xpose.msra.mxu0 0.0
    %1880 = vmatprep.subr.mxu0 0.0
    %1881 = vmatpush2.xpose.msra.mxu0 0.0
    %1882 = vmatprep.subr.mxu0 0.0
    %1883 = vmatpush2.xpose.msra.mxu0 0.0
    %1884 = vmatprep.subr.mxu0 0.0
    %1885 = vmatpush2.xpose.msra.mxu0 0.0
    %1886 = vmatprep.subr.mxu0 0.0
    %1887 = vmatpush2.xpose.msra.mxu0 0.0
    %1888 = vmatprep.subr.mxu0 0.0
    %1889 = vmatpush2.xpose.msra.mxu0 0.0
    %1890 = vmatprep.mubr.f32.mxu0 %v194
    %1891 = vmatmul.mubr.f32.gmra.mxu0 %v186
    %v1892 = vpop.f32.mrf.mxu0
    %v1893 = vadd.f32 %v1823, %v1892
    %v1894 = vpop.f32.mrf.mxu0
    %1895 = vdwg.mxu0
    %1896 = vmatprep.subr.mxu0 0.0
    %1897 = vmatpush1.xpose.msra.mxu0 0.0
    %1898 = vmatprep.subr.mxu0 0.0
    %1899 = vmatpush1.xpose.msra.mxu0 0.0
    %1900 = vmatprep.subr.mxu0 0.0
    %1901 = vmatpush1.xpose.msra.mxu0 0.0
    %1902 = vmatprep.subr.mxu0 0.0
    %1903 = vmatpush1.xpose.msra.mxu0 0.0
    %1904 = vmatprep.subr.mxu0 0.0
    %1905 = vmatpush1.xpose.msra.mxu0 0.0
    %1906 = vmatprep.subr.mxu0 0.0
    %1907 = vmatpush1.xpose.msra.mxu0 0.0
    %1908 = vmatprep.subr.mxu0 0.0
    %1909 = vmatpush1.xpose.msra.mxu0 0.0
    %1910 = vmatprep.subr.mxu0 0.0
    %1911 = vmatpush1.xpose.msra.mxu0 0.0
    %1912 = vmatprep.subr.mxu0 0.0
    %1913 = vmatpush1.xpose.msra.mxu0 0.0
    %1914 = vmatprep.subr.mxu0 0.0
    %1915 = vmatpush1.xpose.msra.mxu0 0.0
    %1916 = vmatprep.subr.mxu0 0.0
    %1917 = vmatpush1.xpose.msra.mxu0 0.0
    %1918 = vmatprep.subr.mxu0 0.0
    %1919 = vmatpush1.xpose.msra.mxu0 0.0
    %1920 = vmatprep.subr.mxu0 0.0
    %1921 = vmatpush1.xpose.msra.mxu0 0.0
    %1922 = vmatprep.subr.mxu0 0.0
    %1923 = vmatpush1.xpose.msra.mxu0 0.0
    %1924 = vmatprep.subr.mxu0 0.0
    %1925 = vmatpush1.xpose.msra.mxu0 0.0
    %1926 = vmatprep.subr.mxu0 %v723
    %1927 = vmatpush1.xpose.msra.mxu0 %v721
    %1928 = vmatprep.subr.mxu0 0.0
    %1929 = vmatpush2.xpose.msra.mxu0 0.0
    %1930 = vmatprep.subr.mxu0 0.0
    %1931 = vmatpush2.xpose.msra.mxu0 0.0
    %1932 = vmatprep.subr.mxu0 0.0
    %1933 = vmatpush2.xpose.msra.mxu0 0.0
    %1934 = vmatprep.subr.mxu0 0.0
    %1935 = vmatpush2.xpose.msra.mxu0 0.0
    %1936 = vmatprep.subr.mxu0 0.0
    %1937 = vmatpush2.xpose.msra.mxu0 0.0
    %1938 = vmatprep.subr.mxu0 0.0
    %1939 = vmatpush2.xpose.msra.mxu0 0.0
    %1940 = vmatprep.subr.mxu0 0.0
    %1941 = vmatpush2.xpose.msra.mxu0 0.0
    %1942 = vmatprep.subr.mxu0 0.0
    %1943 = vmatpush2.xpose.msra.mxu0 0.0
    %1944 = vmatprep.subr.mxu0 0.0
    %1945 = vmatpush2.xpose.msra.mxu0 0.0
    %1946 = vmatprep.subr.mxu0 0.0
    %1947 = vmatpush2.xpose.msra.mxu0 0.0
    %1948 = vmatprep.subr.mxu0 0.0
    %1949 = vmatpush2.xpose.msra.mxu0 0.0
    %1950 = vmatprep.subr.mxu0 0.0
    %1951 = vmatpush2.xpose.msra.mxu0 0.0
    %1952 = vmatprep.subr.mxu0 0.0
    %1953 = vmatpush2.xpose.msra.mxu0 0.0
    %1954 = vmatprep.subr.mxu0 0.0
    %1955 = vmatpush2.xpose.msra.mxu0 0.0
    %1956 = vmatprep.subr.mxu0 0.0
    %1957 = vmatpush2.xpose.msra.mxu0 0.0
    %1958 = vmatprep.subr.mxu0 0.0
    %1959 = vmatpush2.xpose.msra.mxu0 0.0
    %1960 = vmatprep.mubr.f32.mxu0 %v195
    %1961 = vmatmul.mubr.f32.gmra.mxu0 %v193
    %v1962 = vpop.f32.mrf.mxu0
    %v1963 = vadd.f32 %v1893, %v1962
    %v1964 = vpop.f32.mrf.mxu0
    %1965 = vdwg.mxu0
    %1966 = vmatprep.subr.mxu0 0.0
    %1967 = vmatpush1.xpose.msra.mxu0 0.0
    %1968 = vmatprep.subr.mxu0 0.0
    %1969 = vmatpush1.xpose.msra.mxu0 0.0
    %1970 = vmatprep.subr.mxu0 0.0
    %1971 = vmatpush1.xpose.msra.mxu0 0.0
    %1972 = vmatprep.subr.mxu0 0.0
    %1973 = vmatpush1.xpose.msra.mxu0 0.0
    %1974 = vmatprep.subr.mxu0 0.0
    %1975 = vmatpush1.xpose.msra.mxu0 0.0
    %1976 = vmatprep.subr.mxu0 0.0
    %1977 = vmatpush1.xpose.msra.mxu0 0.0
    %1978 = vmatprep.subr.mxu0 0.0
    %1979 = vmatpush1.xpose.msra.mxu0 0.0
    %1980 = vmatprep.subr.mxu0 0.0
    %1981 = vmatpush1.xpose.msra.mxu0 0.0
    %1982 = vmatprep.subr.mxu0 0.0
    %1983 = vmatpush1.xpose.msra.mxu0 0.0
    %1984 = vmatprep.subr.mxu0 0.0
    %1985 = vmatpush1.xpose.msra.mxu0 0.0
    %1986 = vmatprep.subr.mxu0 0.0
    %1987 = vmatpush1.xpose.msra.mxu0 0.0
    %1988 = vmatprep.subr.mxu0 0.0
    %1989 = vmatpush1.xpose.msra.mxu0 0.0
    %1990 = vmatprep.subr.mxu0 0.0
    %1991 = vmatpush1.xpose.msra.mxu0 0.0
    %1992 = vmatprep.subr.mxu0 0.0
    %1993 = vmatpush1.xpose.msra.mxu0 0.0
    %1994 = vmatprep.subr.mxu0 0.0
    %1995 = vmatpush1.xpose.msra.mxu0 0.0
    %1996 = vmatprep.subr.mxu0 %v739
    %1997 = vmatpush1.xpose.msra.mxu0 %v731
    %1998 = vmatprep.subr.mxu0 0.0
    %1999 = vmatpush2.xpose.msra.mxu0 0.0
    %2000 = vmatprep.subr.mxu0 0.0
    %2001 = vmatpush2.xpose.msra.mxu0 0.0
    %2002 = vmatprep.subr.mxu0 0.0
    %2003 = vmatpush2.xpose.msra.mxu0 0.0
    %2004 = vmatprep.subr.mxu0 0.0
    %2005 = vmatpush2.xpose.msra.mxu0 0.0
    %2006 = vmatprep.subr.mxu0 0.0
    %2007 = vmatpush2.xpose.msra.mxu0 0.0
    %2008 = vmatprep.subr.mxu0 0.0
    %2009 = vmatpush2.xpose.msra.mxu0 0.0
    %2010 = vmatprep.subr.mxu0 0.0
    %2011 = vmatpush2.xpose.msra.mxu0 0.0
    %2012 = vmatprep.subr.mxu0 0.0
    %2013 = vmatpush2.xpose.msra.mxu0 0.0
    %2014 = vmatprep.subr.mxu0 0.0
    %2015 = vmatpush2.xpose.msra.mxu0 0.0
    %2016 = vmatprep.subr.mxu0 0.0
    %2017 = vmatpush2.xpose.msra.mxu0 0.0
    %2018 = vmatprep.subr.mxu0 0.0
    %2019 = vmatpush2.xpose.msra.mxu0 0.0
    %2020 = vmatprep.subr.mxu0 0.0
    %2021 = vmatpush2.xpose.msra.mxu0 0.0
    %2022 = vmatprep.subr.mxu0 0.0
    %2023 = vmatpush2.xpose.msra.mxu0 0.0
    %2024 = vmatprep.subr.mxu0 0.0
    %2025 = vmatpush2.xpose.msra.mxu0 0.0
    %2026 = vmatprep.subr.mxu0 0.0
    %2027 = vmatpush2.xpose.msra.mxu0 0.0
    %2028 = vmatprep.subr.mxu0 0.0
    %2029 = vmatpush2.xpose.msra.mxu0 0.0
    %2030 = vmatprep.mubr.f32.mxu0 %v211
    %2031 = vmatmul.mubr.f32.gmra.mxu0 %v203
    %v2032 = vpop.f32.mrf.mxu0
    %v2033 = vadd.f32 %v1963, %v2032
    %v2034 = vpop.f32.mrf.mxu0
    %2035 = vdwg.mxu0
    %2036 = vmatprep.subr.mxu0 0.0
    %2037 = vmatpush1.xpose.msra.mxu0 0.0
    %2038 = vmatprep.subr.mxu0 0.0
    %2039 = vmatpush1.xpose.msra.mxu0 0.0
    %2040 = vmatprep.subr.mxu0 0.0
    %2041 = vmatpush1.xpose.msra.mxu0 0.0
    %2042 = vmatprep.subr.mxu0 0.0
    %2043 = vmatpush1.xpose.msra.mxu0 0.0
    %2044 = vmatprep.subr.mxu0 0.0
    %2045 = vmatpush1.xpose.msra.mxu0 0.0
    %2046 = vmatprep.subr.mxu0 0.0
    %2047 = vmatpush1.xpose.msra.mxu0 0.0
    %2048 = vmatprep.subr.mxu0 0.0
    %2049 = vmatpush1.xpose.msra.mxu0 0.0
    %2050 = vmatprep.subr.mxu0 0.0
    %2051 = vmatpush1.xpose.msra.mxu0 0.0
    %2052 = vmatprep.subr.mxu0 0.0
    %2053 = vmatpush1.xpose.msra.mxu0 0.0
    %2054 = vmatprep.subr.mxu0 0.0
    %2055 = vmatpush1.xpose.msra.mxu0 0.0
    %2056 = vmatprep.subr.mxu0 0.0
    %2057 = vmatpush1.xpose.msra.mxu0 0.0
    %2058 = vmatprep.subr.mxu0 0.0
    %2059 = vmatpush1.xpose.msra.mxu0 0.0
    %2060 = vmatprep.subr.mxu0 0.0
    %2061 = vmatpush1.xpose.msra.mxu0 0.0
    %2062 = vmatprep.subr.mxu0 0.0
    %2063 = vmatpush1.xpose.msra.mxu0 0.0
    %2064 = vmatprep.subr.mxu0 0.0
    %2065 = vmatpush1.xpose.msra.mxu0 0.0
    %2066 = vmatprep.subr.mxu0 %v740
    %2067 = vmatpush1.xpose.msra.mxu0 %v738
    %2068 = vmatprep.subr.mxu0 0.0
    %2069 = vmatpush2.xpose.msra.mxu0 0.0
    %2070 = vmatprep.subr.mxu0 0.0
    %2071 = vmatpush2.xpose.msra.mxu0 0.0
    %2072 = vmatprep.subr.mxu0 0.0
    %2073 = vmatpush2.xpose.msra.mxu0 0.0
    %2074 = vmatprep.subr.mxu0 0.0
    %2075 = vmatpush2.xpose.msra.mxu0 0.0
    %2076 = vmatprep.subr.mxu0 0.0
    %2077 = vmatpush2.xpose.msra.mxu0 0.0
    %2078 = vmatprep.subr.mxu0 0.0
    %2079 = vmatpush2.xpose.msra.mxu0 0.0
    %2080 = vmatprep.subr.mxu0 0.0
    %2081 = vmatpush2.xpose.msra.mxu0 0.0
    %2082 = vmatprep.subr.mxu0 0.0
    %2083 = vmatpush2.xpose.msra.mxu0 0.0
    %2084 = vmatprep.subr.mxu0 0.0
    %2085 = vmatpush2.xpose.msra.mxu0 0.0
    %2086 = vmatprep.subr.mxu0 0.0
    %2087 = vmatpush2.xpose.msra.mxu0 0.0
    %2088 = vmatprep.subr.mxu0 0.0
    %2089 = vmatpush2.xpose.msra.mxu0 0.0
    %2090 = vmatprep.subr.mxu0 0.0
    %2091 = vmatpush2.xpose.msra.mxu0 0.0
    %2092 = vmatprep.subr.mxu0 0.0
    %2093 = vmatpush2.xpose.msra.mxu0 0.0
    %2094 = vmatprep.subr.mxu0 0.0
    %2095 = vmatpush2.xpose.msra.mxu0 0.0
    %2096 = vmatprep.subr.mxu0 0.0
    %2097 = vmatpush2.xpose.msra.mxu0 0.0
    %2098 = vmatprep.subr.mxu0 0.0
    %2099 = vmatpush2.xpose.msra.mxu0 0.0
    %2100 = vmatprep.mubr.f32.mxu0 %v212
    %2101 = vmatmul.mubr.f32.gmra.mxu0 %v210
    %v2102 = vpop.f32.mrf.mxu0
    %v2103 = vadd.f32 %v2033, %v2102
    %v2104 = vpop.f32.mrf.mxu0
    %2105 = vdwg.mxu0
    %2106 = vmatprep.subr.mxu0 0.0
    %2107 = vmatpush1.xpose.msra.mxu0 0.0
    %2108 = vmatprep.subr.mxu0 0.0
    %2109 = vmatpush1.xpose.msra.mxu0 0.0
    %2110 = vmatprep.subr.mxu0 0.0
    %2111 = vmatpush1.xpose.msra.mxu0 0.0
    %2112 = vmatprep.subr.mxu0 0.0
    %2113 = vmatpush1.xpose.msra.mxu0 0.0
    %2114 = vmatprep.subr.mxu0 0.0
    %2115 = vmatpush1.xpose.msra.mxu0 0.0
    %2116 = vmatprep.subr.mxu0 0.0
    %2117 = vmatpush1.xpose.msra.mxu0 0.0
    %2118 = vmatprep.subr.mxu0 0.0
    %2119 = vmatpush1.xpose.msra.mxu0 0.0
    %2120 = vmatprep.subr.mxu0 0.0
    %2121 = vmatpush1.xpose.msra.mxu0 0.0
    %2122 = vmatprep.subr.mxu0 0.0
    %2123 = vmatpush1.xpose.msra.mxu0 0.0
    %2124 = vmatprep.subr.mxu0 0.0
    %2125 = vmatpush1.xpose.msra.mxu0 0.0
    %2126 = vmatprep.subr.mxu0 0.0
    %2127 = vmatpush1.xpose.msra.mxu0 0.0
    %2128 = vmatprep.subr.mxu0 0.0
    %2129 = vmatpush1.xpose.msra.mxu0 0.0
    %2130 = vmatprep.subr.mxu0 0.0
    %2131 = vmatpush1.xpose.msra.mxu0 0.0
    %2132 = vmatprep.subr.mxu0 0.0
    %2133 = vmatpush1.xpose.msra.mxu0 0.0
    %2134 = vmatprep.subr.mxu0 0.0
    %2135 = vmatpush1.xpose.msra.mxu0 0.0
    %2136 = vmatprep.subr.mxu0 %v756
    %2137 = vmatpush1.xpose.msra.mxu0 %v748
    %2138 = vmatprep.subr.mxu0 0.0
    %2139 = vmatpush2.xpose.msra.mxu0 0.0
    %2140 = vmatprep.subr.mxu0 0.0
    %2141 = vmatpush2.xpose.msra.mxu0 0.0
    %2142 = vmatprep.subr.mxu0 0.0
    %2143 = vmatpush2.xpose.msra.mxu0 0.0
    %2144 = vmatprep.subr.mxu0 0.0
    %2145 = vmatpush2.xpose.msra.mxu0 0.0
    %2146 = vmatprep.subr.mxu0 0.0
    %2147 = vmatpush2.xpose.msra.mxu0 0.0
    %2148 = vmatprep.subr.mxu0 0.0
    %2149 = vmatpush2.xpose.msra.mxu0 0.0
    %2150 = vmatprep.subr.mxu0 0.0
    %2151 = vmatpush2.xpose.msra.mxu0 0.0
    %2152 = vmatprep.subr.mxu0 0.0
    %2153 = vmatpush2.xpose.msra.mxu0 0.0
    %2154 = vmatprep.subr.mxu0 0.0
    %2155 = vmatpush2.xpose.msra.mxu0 0.0
    %2156 = vmatprep.subr.mxu0 0.0
    %2157 = vmatpush2.xpose.msra.mxu0 0.0
    %2158 = vmatprep.subr.mxu0 0.0
    %2159 = vmatpush2.xpose.msra.mxu0 0.0
    %2160 = vmatprep.subr.mxu0 0.0
    %2161 = vmatpush2.xpose.msra.mxu0 0.0
    %2162 = vmatprep.subr.mxu0 0.0
    %2163 = vmatpush2.xpose.msra.mxu0 0.0
    %2164 = vmatprep.subr.mxu0 0.0
    %2165 = vmatpush2.xpose.msra.mxu0 0.0
    %2166 = vmatprep.subr.mxu0 0.0
    %2167 = vmatpush2.xpose.msra.mxu0 0.0
    %2168 = vmatprep.subr.mxu0 0.0
    %2169 = vmatpush2.xpose.msra.mxu0 0.0
    %2170 = vmatprep.mubr.f32.mxu0 %v228
    %2171 = vmatmul.mubr.f32.gmra.mxu0 %v220
    %v2172 = vpop.f32.mrf.mxu0
    %v2173 = vadd.f32 %v2103, %v2172
    %v2174 = vpop.f32.mrf.mxu0
    %2175 = vdwg.mxu0
    %2176 = vmatprep.subr.mxu0 0.0
    %2177 = vmatpush1.xpose.msra.mxu0 0.0
    %2178 = vmatprep.subr.mxu0 0.0
    %2179 = vmatpush1.xpose.msra.mxu0 0.0
    %2180 = vmatprep.subr.mxu0 0.0
    %2181 = vmatpush1.xpose.msra.mxu0 0.0
    %2182 = vmatprep.subr.mxu0 0.0
    %2183 = vmatpush1.xpose.msra.mxu0 0.0
    %2184 = vmatprep.subr.mxu0 0.0
    %2185 = vmatpush1.xpose.msra.mxu0 0.0
    %2186 = vmatprep.subr.mxu0 0.0
    %2187 = vmatpush1.xpose.msra.mxu0 0.0
    %2188 = vmatprep.subr.mxu0 0.0
    %2189 = vmatpush1.xpose.msra.mxu0 0.0
    %2190 = vmatprep.subr.mxu0 0.0
    %2191 = vmatpush1.xpose.msra.mxu0 0.0
    %2192 = vmatprep.subr.mxu0 0.0
    %2193 = vmatpush1.xpose.msra.mxu0 0.0
    %2194 = vmatprep.subr.mxu0 0.0
    %2195 = vmatpush1.xpose.msra.mxu0 0.0
    %2196 = vmatprep.subr.mxu0 0.0
    %2197 = vmatpush1.xpose.msra.mxu0 0.0
    %2198 = vmatprep.subr.mxu0 0.0
    %2199 = vmatpush1.xpose.msra.mxu0 0.0
    %2200 = vmatprep.subr.mxu0 0.0
    %2201 = vmatpush1.xpose.msra.mxu0 0.0
    %2202 = vmatprep.subr.mxu0 0.0
    %2203 = vmatpush1.xpose.msra.mxu0 0.0
    %2204 = vmatprep.subr.mxu0 0.0
    %2205 = vmatpush1.xpose.msra.mxu0 0.0
    %2206 = vmatprep.subr.mxu0 %v757
    %2207 = vmatpush1.xpose.msra.mxu0 %v755
    %2208 = vmatprep.subr.mxu0 0.0
    %2209 = vmatpush2.xpose.msra.mxu0 0.0
    %2210 = vmatprep.subr.mxu0 0.0
    %2211 = vmatpush2.xpose.msra.mxu0 0.0
    %2212 = vmatprep.subr.mxu0 0.0
    %2213 = vmatpush2.xpose.msra.mxu0 0.0
    %2214 = vmatprep.subr.mxu0 0.0
    %2215 = vmatpush2.xpose.msra.mxu0 0.0
    %2216 = vmatprep.subr.mxu0 0.0
    %2217 = vmatpush2.xpose.msra.mxu0 0.0
    %2218 = vmatprep.subr.mxu0 0.0
    %2219 = vmatpush2.xpose.msra.mxu0 0.0
    %2220 = vmatprep.subr.mxu0 0.0
    %2221 = vmatpush2.xpose.msra.mxu0 0.0
    %2222 = vmatprep.subr.mxu0 0.0
    %2223 = vmatpush2.xpose.msra.mxu0 0.0
    %2224 = vmatprep.subr.mxu0 0.0
    %2225 = vmatpush2.xpose.msra.mxu0 0.0
    %2226 = vmatprep.subr.mxu0 0.0
    %2227 = vmatpush2.xpose.msra.mxu0 0.0
    %2228 = vmatprep.subr.mxu0 0.0
    %2229 = vmatpush2.xpose.msra.mxu0 0.0
    %2230 = vmatprep.subr.mxu0 0.0
    %2231 = vmatpush2.xpose.msra.mxu0 0.0
    %2232 = vmatprep.subr.mxu0 0.0
    %2233 = vmatpush2.xpose.msra.mxu0 0.0
    %2234 = vmatprep.subr.mxu0 0.0
    %2235 = vmatpush2.xpose.msra.mxu0 0.0
    %2236 = vmatprep.subr.mxu0 0.0
    %2237 = vmatpush2.xpose.msra.mxu0 0.0
    %2238 = vmatprep.subr.mxu0 0.0
    %2239 = vmatpush2.xpose.msra.mxu0 0.0
    %2240 = vmatprep.mubr.f32.mxu0 %v229
    %2241 = vmatmul.mubr.f32.gmra.mxu0 %v227
    %v2242 = vpop.f32.mrf.mxu0
    %v2243 = vadd.f32 %v2173, %v2242
    %v2244 = vpop.f32.mrf.mxu0
    %2245 = vdwg.mxu0
    %2246 = vmatprep.subr.mxu0 0.0
    %2247 = vmatpush1.xpose.msra.mxu0 0.0
    %2248 = vmatprep.subr.mxu0 0.0
    %2249 = vmatpush1.xpose.msra.mxu0 0.0
    %2250 = vmatprep.subr.mxu0 0.0
    %2251 = vmatpush1.xpose.msra.mxu0 0.0
    %2252 = vmatprep.subr.mxu0 0.0
    %2253 = vmatpush1.xpose.msra.mxu0 0.0
    %2254 = vmatprep.subr.mxu0 0.0
    %2255 = vmatpush1.xpose.msra.mxu0 0.0
    %2256 = vmatprep.subr.mxu0 0.0
    %2257 = vmatpush1.xpose.msra.mxu0 0.0
    %2258 = vmatprep.subr.mxu0 0.0
    %2259 = vmatpush1.xpose.msra.mxu0 0.0
    %2260 = vmatprep.subr.mxu0 0.0
    %2261 = vmatpush1.xpose.msra.mxu0 0.0
    %2262 = vmatprep.subr.mxu0 0.0
    %2263 = vmatpush1.xpose.msra.mxu0 0.0
    %2264 = vmatprep.subr.mxu0 0.0
    %2265 = vmatpush1.xpose.msra.mxu0 0.0
    %2266 = vmatprep.subr.mxu0 0.0
    %2267 = vmatpush1.xpose.msra.mxu0 0.0
    %2268 = vmatprep.subr.mxu0 0.0
    %2269 = vmatpush1.xpose.msra.mxu0 0.0
    %2270 = vmatprep.subr.mxu0 0.0
    %2271 = vmatpush1.xpose.msra.mxu0 0.0
    %2272 = vmatprep.subr.mxu0 0.0
    %2273 = vmatpush1.xpose.msra.mxu0 0.0
    %2274 = vmatprep.subr.mxu0 0.0
    %2275 = vmatpush1.xpose.msra.mxu0 0.0
    %2276 = vmatprep.subr.mxu0 %v773
    %2277 = vmatpush1.xpose.msra.mxu0 %v765
    %2278 = vmatprep.subr.mxu0 0.0
    %2279 = vmatpush2.xpose.msra.mxu0 0.0
    %2280 = vmatprep.subr.mxu0 0.0
    %2281 = vmatpush2.xpose.msra.mxu0 0.0
    %2282 = vmatprep.subr.mxu0 0.0
    %2283 = vmatpush2.xpose.msra.mxu0 0.0
    %2284 = vmatprep.subr.mxu0 0.0
    %2285 = vmatpush2.xpose.msra.mxu0 0.0
    %2286 = vmatprep.subr.mxu0 0.0
    %2287 = vmatpush2.xpose.msra.mxu0 0.0
    %2288 = vmatprep.subr.mxu0 0.0
    %2289 = vmatpush2.xpose.msra.mxu0 0.0
    %2290 = vmatprep.subr.mxu0 0.0
    %2291 = vmatpush2.xpose.msra.mxu0 0.0
    %2292 = vmatprep.subr.mxu0 0.0
    %2293 = vmatpush2.xpose.msra.mxu0 0.0
    %2294 = vmatprep.subr.mxu0 0.0
    %2295 = vmatpush2.xpose.msra.mxu0 0.0
    %2296 = vmatprep.subr.mxu0 0.0
    %2297 = vmatpush2.xpose.msra.mxu0 0.0
    %2298 = vmatprep.subr.mxu0 0.0
    %2299 = vmatpush2.xpose.msra.mxu0 0.0
    %2300 = vmatprep.subr.mxu0 0.0
    %2301 = vmatpush2.xpose.msra.mxu0 0.0
    %2302 = vmatprep.subr.mxu0 0.0
    %2303 = vmatpush2.xpose.msra.mxu0 0.0
    %2304 = vmatprep.subr.mxu0 0.0
    %2305 = vmatpush2.xpose.msra.mxu0 0.0
    %2306 = vmatprep.subr.mxu0 0.0
    %2307 = vmatpush2.xpose.msra.mxu0 0.0
    %2308 = vmatprep.subr.mxu0 0.0
    %2309 = vmatpush2.xpose.msra.mxu0 0.0
    %2310 = vmatprep.mubr.f32.mxu0 %v245
    %2311 = vmatmul.mubr.f32.gmra.mxu0 %v237
    %v2312 = vpop.f32.mrf.mxu0
    %v2313 = vadd.f32 %v2243, %v2312
    %v2314 = vpop.f32.mrf.mxu0
    %2315 = vdwg.mxu0
    %2316 = vmatprep.subr.mxu0 0.0
    %2317 = vmatpush1.xpose.msra.mxu0 0.0
    %2318 = vmatprep.subr.mxu0 0.0
    %2319 = vmatpush1.xpose.msra.mxu0 0.0
    %2320 = vmatprep.subr.mxu0 0.0
    %2321 = vmatpush1.xpose.msra.mxu0 0.0
    %2322 = vmatprep.subr.mxu0 0.0
    %2323 = vmatpush1.xpose.msra.mxu0 0.0
    %2324 = vmatprep.subr.mxu0 0.0
    %2325 = vmatpush1.xpose.msra.mxu0 0.0
    %2326 = vmatprep.subr.mxu0 0.0
    %2327 = vmatpush1.xpose.msra.mxu0 0.0
    %2328 = vmatprep.subr.mxu0 0.0
    %2329 = vmatpush1.xpose.msra.mxu0 0.0
    %2330 = vmatprep.subr.mxu0 0.0
    %2331 = vmatpush1.xpose.msra.mxu0 0.0
    %2332 = vmatprep.subr.mxu0 0.0
    %2333 = vmatpush1.xpose.msra.mxu0 0.0
    %2334 = vmatprep.subr.mxu0 0.0
    %2335 = vmatpush1.xpose.msra.mxu0 0.0
    %2336 = vmatprep.subr.mxu0 0.0
    %2337 = vmatpush1.xpose.msra.mxu0 0.0
    %2338 = vmatprep.subr.mxu0 0.0
    %2339 = vmatpush1.xpose.msra.mxu0 0.0
    %2340 = vmatprep.subr.mxu0 0.0
    %2341 = vmatpush1.xpose.msra.mxu0 0.0
    %2342 = vmatprep.subr.mxu0 0.0
    %2343 = vmatpush1.xpose.msra.mxu0 0.0
    %2344 = vmatprep.subr.mxu0 0.0
    %2345 = vmatpush1.xpose.msra.mxu0 0.0
    %2346 = vmatprep.subr.mxu0 %v774
    %2347 = vmatpush1.xpose.msra.mxu0 %v772
    %2348 = vmatprep.subr.mxu0 0.0
    %2349 = vmatpush2.xpose.msra.mxu0 0.0
    %2350 = vmatprep.subr.mxu0 0.0
    %2351 = vmatpush2.xpose.msra.mxu0 0.0
    %2352 = vmatprep.subr.mxu0 0.0
    %2353 = vmatpush2.xpose.msra.mxu0 0.0
    %2354 = vmatprep.subr.mxu0 0.0
    %2355 = vmatpush2.xpose.msra.mxu0 0.0
    %2356 = vmatprep.subr.mxu0 0.0
    %2357 = vmatpush2.xpose.msra.mxu0 0.0
    %2358 = vmatprep.subr.mxu0 0.0
    %2359 = vmatpush2.xpose.msra.mxu0 0.0
    %2360 = vmatprep.subr.mxu0 0.0
    %2361 = vmatpush2.xpose.msra.mxu0 0.0
    %2362 = vmatprep.subr.mxu0 0.0
    %2363 = vmatpush2.xpose.msra.mxu0 0.0
    %2364 = vmatprep.subr.mxu0 0.0
    %2365 = vmatpush2.xpose.msra.mxu0 0.0
    %2366 = vmatprep.subr.mxu0 0.0
    %2367 = vmatpush2.xpose.msra.mxu0 0.0
    %2368 = vmatprep.subr.mxu0 0.0
    %2369 = vmatpush2.xpose.msra.mxu0 0.0
    %2370 = vmatprep.subr.mxu0 0.0
    %2371 = vmatpush2.xpose.msra.mxu0 0.0
    %2372 = vmatprep.subr.mxu0 0.0
    %2373 = vmatpush2.xpose.msra.mxu0 0.0
    %2374 = vmatprep.subr.mxu0 0.0
    %2375 = vmatpush2.xpose.msra.mxu0 0.0
    %2376 = vmatprep.subr.mxu0 0.0
    %2377 = vmatpush2.xpose.msra.mxu0 0.0
    %2378 = vmatprep.subr.mxu0 0.0
    %2379 = vmatpush2.xpose.msra.mxu0 0.0
    %2380 = vmatprep.mubr.f32.mxu0 %v246
    %2381 = vmatmul.mubr.f32.gmra.mxu0 %v244
    %v2382 = vpop.f32.mrf.mxu0
    %v2383 = vadd.f32 %v2313, %v2382
    %v2384 = vpop.f32.mrf.mxu0
    %2385 = vdwg.mxu0
    %2386 = vmatprep.subr.mxu0 0.0
    %2387 = vmatpush1.xpose.msra.mxu0 0.0
    %2388 = vmatprep.subr.mxu0 0.0
    %2389 = vmatpush1.xpose.msra.mxu0 0.0
    %2390 = vmatprep.subr.mxu0 0.0
    %2391 = vmatpush1.xpose.msra.mxu0 0.0
    %2392 = vmatprep.subr.mxu0 0.0
    %2393 = vmatpush1.xpose.msra.mxu0 0.0
    %2394 = vmatprep.subr.mxu0 0.0
    %2395 = vmatpush1.xpose.msra.mxu0 0.0
    %2396 = vmatprep.subr.mxu0 0.0
    %2397 = vmatpush1.xpose.msra.mxu0 0.0
    %2398 = vmatprep.subr.mxu0 0.0
    %2399 = vmatpush1.xpose.msra.mxu0 0.0
    %2400 = vmatprep.subr.mxu0 0.0
    %2401 = vmatpush1.xpose.msra.mxu0 0.0
    %2402 = vmatprep.subr.mxu0 0.0
    %2403 = vmatpush1.xpose.msra.mxu0 0.0
    %2404 = vmatprep.subr.mxu0 0.0
    %2405 = vmatpush1.xpose.msra.mxu0 0.0
    %2406 = vmatprep.subr.mxu0 0.0
    %2407 = vmatpush1.xpose.msra.mxu0 0.0
    %2408 = vmatprep.subr.mxu0 0.0
    %2409 = vmatpush1.xpose.msra.mxu0 0.0
    %2410 = vmatprep.subr.mxu0 0.0
    %2411 = vmatpush1.xpose.msra.mxu0 0.0
    %2412 = vmatprep.subr.mxu0 0.0
    %2413 = vmatpush1.xpose.msra.mxu0 0.0
    %2414 = vmatprep.subr.mxu0 0.0
    %2415 = vmatpush1.xpose.msra.mxu0 0.0
    %2416 = vmatprep.subr.mxu0 %v790
    %2417 = vmatpush1.xpose.msra.mxu0 %v782
    %2418 = vmatprep.subr.mxu0 0.0
    %2419 = vmatpush2.xpose.msra.mxu0 0.0
    %2420 = vmatprep.subr.mxu0 0.0
    %2421 = vmatpush2.xpose.msra.mxu0 0.0
    %2422 = vmatprep.subr.mxu0 0.0
    %2423 = vmatpush2.xpose.msra.mxu0 0.0
    %2424 = vmatprep.subr.mxu0 0.0
    %2425 = vmatpush2.xpose.msra.mxu0 0.0
    %2426 = vmatprep.subr.mxu0 0.0
    %2427 = vmatpush2.xpose.msra.mxu0 0.0
    %2428 = vmatprep.subr.mxu0 0.0
    %2429 = vmatpush2.xpose.msra.mxu0 0.0
    %2430 = vmatprep.subr.mxu0 0.0
    %2431 = vmatpush2.xpose.msra.mxu0 0.0
    %2432 = vmatprep.subr.mxu0 0.0
    %2433 = vmatpush2.xpose.msra.mxu0 0.0
    %2434 = vmatprep.subr.mxu0 0.0
    %2435 = vmatpush2.xpose.msra.mxu0 0.0
    %2436 = vmatprep.subr.mxu0 0.0
    %2437 = vmatpush2.xpose.msra.mxu0 0.0
    %2438 = vmatprep.subr.mxu0 0.0
    %2439 = vmatpush2.xpose.msra.mxu0 0.0
    %2440 = vmatprep.subr.mxu0 0.0
    %2441 = vmatpush2.xpose.msra.mxu0 0.0
    %2442 = vmatprep.subr.mxu0 0.0
    %2443 = vmatpush2.xpose.msra.mxu0 0.0
    %2444 = vmatprep.subr.mxu0 0.0
    %2445 = vmatpush2.xpose.msra.mxu0 0.0
    %2446 = vmatprep.subr.mxu0 0.0
    %2447 = vmatpush2.xpose.msra.mxu0 0.0
    %2448 = vmatprep.subr.mxu0 0.0
    %2449 = vmatpush2.xpose.msra.mxu0 0.0
    %2450 = vmatprep.mubr.f32.mxu0 %v262
    %2451 = vmatmul.mubr.f32.gmra.mxu0 %v254
    %v2452 = vpop.f32.mrf.mxu0
    %v2453 = vadd.f32 %v2383, %v2452
    %v2454 = vpop.f32.mrf.mxu0
    %2455 = vdwg.mxu0
    %2456 = vmatprep.subr.mxu0 0.0
    %2457 = vmatpush1.xpose.msra.mxu0 0.0
    %2458 = vmatprep.subr.mxu0 0.0
    %2459 = vmatpush1.xpose.msra.mxu0 0.0
    %2460 = vmatprep.subr.mxu0 0.0
    %2461 = vmatpush1.xpose.msra.mxu0 0.0
    %2462 = vmatprep.subr.mxu0 0.0
    %2463 = vmatpush1.xpose.msra.mxu0 0.0
    %2464 = vmatprep.subr.mxu0 0.0
    %2465 = vmatpush1.xpose.msra.mxu0 0.0
    %2466 = vmatprep.subr.mxu0 0.0
    %2467 = vmatpush1.xpose.msra.mxu0 0.0
    %2468 = vmatprep.subr.mxu0 0.0
    %2469 = vmatpush1.xpose.msra.mxu0 0.0
    %2470 = vmatprep.subr.mxu0 0.0
    %2471 = vmatpush1.xpose.msra.mxu0 0.0
    %2472 = vmatprep.subr.mxu0 0.0
    %2473 = vmatpush1.xpose.msra.mxu0 0.0
    %2474 = vmatprep.subr.mxu0 0.0
    %2475 = vmatpush1.xpose.msra.mxu0 0.0
    %2476 = vmatprep.subr.mxu0 0.0
    %2477 = vmatpush1.xpose.msra.mxu0 0.0
    %2478 = vmatprep.subr.mxu0 0.0
    %2479 = vmatpush1.xpose.msra.mxu0 0.0
    %2480 = vmatprep.subr.mxu0 0.0
    %2481 = vmatpush1.xpose.msra.mxu0 0.0
    %2482 = vmatprep.subr.mxu0 0.0
    %2483 = vmatpush1.xpose.msra.mxu0 0.0
    %2484 = vmatprep.subr.mxu0 0.0
    %2485 = vmatpush1.xpose.msra.mxu0 0.0
    %2486 = vmatprep.subr.mxu0 %v791
    %2487 = vmatpush1.xpose.msra.mxu0 %v789
    %2488 = vmatprep.subr.mxu0 0.0
    %2489 = vmatpush2.xpose.msra.mxu0 0.0
    %2490 = vmatprep.subr.mxu0 0.0
    %2491 = vmatpush2.xpose.msra.mxu0 0.0
    %2492 = vmatprep.subr.mxu0 0.0
    %2493 = vmatpush2.xpose.msra.mxu0 0.0
    %2494 = vmatprep.subr.mxu0 0.0
    %2495 = vmatpush2.xpose.msra.mxu0 0.0
    %2496 = vmatprep.subr.mxu0 0.0
    %2497 = vmatpush2.xpose.msra.mxu0 0.0
    %2498 = vmatprep.subr.mxu0 0.0
    %2499 = vmatpush2.xpose.msra.mxu0 0.0
    %2500 = vmatprep.subr.mxu0 0.0
    %2501 = vmatpush2.xpose.msra.mxu0 0.0
    %2502 = vmatprep.subr.mxu0 0.0
    %2503 = vmatpush2.xpose.msra.mxu0 0.0
    %2504 = vmatprep.subr.mxu0 0.0
    %2505 = vmatpush2.xpose.msra.mxu0 0.0
    %2506 = vmatprep.subr.mxu0 0.0
    %2507 = vmatpush2.xpose.msra.mxu0 0.0
    %2508 = vmatprep.subr.mxu0 0.0
    %2509 = vmatpush2.xpose.msra.mxu0 0.0
    %2510 = vmatprep.subr.mxu0 0.0
    %2511 = vmatpush2.xpose.msra.mxu0 0.0
    %2512 = vmatprep.subr.mxu0 0.0
    %2513 = vmatpush2.xpose.msra.mxu0 0.0
    %2514 = vmatprep.subr.mxu0 0.0
    %2515 = vmatpush2.xpose.msra.mxu0 0.0
    %2516 = vmatprep.subr.mxu0 0.0
    %2517 = vmatpush2.xpose.msra.mxu0 0.0
    %2518 = vmatprep.subr.mxu0 0.0
    %2519 = vmatpush2.xpose.msra.mxu0 0.0
    %2520 = vmatprep.mubr.f32.mxu0 %v263
    %2521 = vmatmul.mubr.f32.gmra.mxu0 %v261
    %v2522 = vpop.f32.mrf.mxu0
    %v2523 = vadd.f32 %v2453, %v2522
    %v2524 = vpop.f32.mrf.mxu0
    %2525 = vdwg.mxu0
    %2526 = vmatprep.subr.mxu0 0.0
    %2527 = vmatpush1.xpose.msra.mxu0 0.0
    %2528 = vmatprep.subr.mxu0 0.0
    %2529 = vmatpush1.xpose.msra.mxu0 0.0
    %2530 = vmatprep.subr.mxu0 0.0
    %2531 = vmatpush1.xpose.msra.mxu0 0.0
    %2532 = vmatprep.subr.mxu0 0.0
    %2533 = vmatpush1.xpose.msra.mxu0 0.0
    %2534 = vmatprep.subr.mxu0 0.0
    %2535 = vmatpush1.xpose.msra.mxu0 0.0
    %2536 = vmatprep.subr.mxu0 0.0
    %2537 = vmatpush1.xpose.msra.mxu0 0.0
    %2538 = vmatprep.subr.mxu0 0.0
    %2539 = vmatpush1.xpose.msra.mxu0 0.0
    %2540 = vmatprep.subr.mxu0 0.0
    %2541 = vmatpush1.xpose.msra.mxu0 0.0
    %2542 = vmatprep.subr.mxu0 0.0
    %2543 = vmatpush1.xpose.msra.mxu0 0.0
    %2544 = vmatprep.subr.mxu0 0.0
    %2545 = vmatpush1.xpose.msra.mxu0 0.0
    %2546 = vmatprep.subr.mxu0 0.0
    %2547 = vmatpush1.xpose.msra.mxu0 0.0
    %2548 = vmatprep.subr.mxu0 0.0
    %2549 = vmatpush1.xpose.msra.mxu0 0.0
    %2550 = vmatprep.subr.mxu0 0.0
    %2551 = vmatpush1.xpose.msra.mxu0 0.0
    %2552 = vmatprep.subr.mxu0 0.0
    %2553 = vmatpush1.xpose.msra.mxu0 0.0
    %2554 = vmatprep.subr.mxu0 0.0
    %2555 = vmatpush1.xpose.msra.mxu0 0.0
    %2556 = vmatprep.subr.mxu0 %v807
    %2557 = vmatpush1.xpose.msra.mxu0 %v799
    %2558 = vmatprep.subr.mxu0 0.0
    %2559 = vmatpush2.xpose.msra.mxu0 0.0
    %2560 = vmatprep.subr.mxu0 0.0
    %2561 = vmatpush2.xpose.msra.mxu0 0.0
    %2562 = vmatprep.subr.mxu0 0.0
    %2563 = vmatpush2.xpose.msra.mxu0 0.0
    %2564 = vmatprep.subr.mxu0 0.0
    %2565 = vmatpush2.xpose.msra.mxu0 0.0
    %2566 = vmatprep.subr.mxu0 0.0
    %2567 = vmatpush2.xpose.msra.mxu0 0.0
    %2568 = vmatprep.subr.mxu0 0.0
    %2569 = vmatpush2.xpose.msra.mxu0 0.0
    %2570 = vmatprep.subr.mxu0 0.0
    %2571 = vmatpush2.xpose.msra.mxu0 0.0
    %2572 = vmatprep.subr.mxu0 0.0
    %2573 = vmatpush2.xpose.msra.mxu0 0.0
    %2574 = vmatprep.subr.mxu0 0.0
    %2575 = vmatpush2.xpose.msra.mxu0 0.0
    %2576 = vmatprep.subr.mxu0 0.0
    %2577 = vmatpush2.xpose.msra.mxu0 0.0
    %2578 = vmatprep.subr.mxu0 0.0
    %2579 = vmatpush2.xpose.msra.mxu0 0.0
    %2580 = vmatprep.subr.mxu0 0.0
    %2581 = vmatpush2.xpose.msra.mxu0 0.0
    %2582 = vmatprep.subr.mxu0 0.0
    %2583 = vmatpush2.xpose.msra.mxu0 0.0
    %2584 = vmatprep.subr.mxu0 0.0
    %2585 = vmatpush2.xpose.msra.mxu0 0.0
    %2586 = vmatprep.subr.mxu0 0.0
    %2587 = vmatpush2.xpose.msra.mxu0 0.0
    %2588 = vmatprep.subr.mxu0 0.0
    %2589 = vmatpush2.xpose.msra.mxu0 0.0
    %2590 = vmatprep.mubr.f32.mxu0 %v279
    %2591 = vmatmul.mubr.f32.gmra.mxu0 %v271
    %v2592 = vpop.f32.mrf.mxu0
    %v2593 = vadd.f32 %v2523, %v2592
    %v2594 = vpop.f32.mrf.mxu0
    %2595 = vdwg.mxu0
    %2596 = vmatprep.subr.mxu0 0.0
    %2597 = vmatpush1.xpose.msra.mxu0 0.0
    %2598 = vmatprep.subr.mxu0 0.0
    %2599 = vmatpush1.xpose.msra.mxu0 0.0
    %2600 = vmatprep.subr.mxu0 0.0
    %2601 = vmatpush1.xpose.msra.mxu0 0.0
    %2602 = vmatprep.subr.mxu0 0.0
    %2603 = vmatpush1.xpose.msra.mxu0 0.0
    %2604 = vmatprep.subr.mxu0 0.0
    %2605 = vmatpush1.xpose.msra.mxu0 0.0
    %2606 = vmatprep.subr.mxu0 0.0
    %2607 = vmatpush1.xpose.msra.mxu0 0.0
    %2608 = vmatprep.subr.mxu0 0.0
    %2609 = vmatpush1.xpose.msra.mxu0 0.0
    %2610 = vmatprep.subr.mxu0 0.0
    %2611 = vmatpush1.xpose.msra.mxu0 0.0
    %2612 = vmatprep.subr.mxu0 0.0
    %2613 = vmatpush1.xpose.msra.mxu0 0.0
    %2614 = vmatprep.subr.mxu0 0.0
    %2615 = vmatpush1.xpose.msra.mxu0 0.0
    %2616 = vmatprep.subr.mxu0 0.0
    %2617 = vmatpush1.xpose.msra.mxu0 0.0
    %2618 = vmatprep.subr.mxu0 0.0
    %2619 = vmatpush1.xpose.msra.mxu0 0.0
    %2620 = vmatprep.subr.mxu0 0.0
    %2621 = vmatpush1.xpose.msra.mxu0 0.0
    %2622 = vmatprep.subr.mxu0 0.0
    %2623 = vmatpush1.xpose.msra.mxu0 0.0
    %2624 = vmatprep.subr.mxu0 0.0
    %2625 = vmatpush1.xpose.msra.mxu0 0.0
    %2626 = vmatprep.subr.mxu0 %v808
    %2627 = vmatpush1.xpose.msra.mxu0 %v806
    %2628 = vmatprep.subr.mxu0 0.0
    %2629 = vmatpush2.xpose.msra.mxu0 0.0
    %2630 = vmatprep.subr.mxu0 0.0
    %2631 = vmatpush2.xpose.msra.mxu0 0.0
    %2632 = vmatprep.subr.mxu0 0.0
    %2633 = vmatpush2.xpose.msra.mxu0 0.0
    %2634 = vmatprep.subr.mxu0 0.0
    %2635 = vmatpush2.xpose.msra.mxu0 0.0
    %2636 = vmatprep.subr.mxu0 0.0
    %2637 = vmatpush2.xpose.msra.mxu0 0.0
    %2638 = vmatprep.subr.mxu0 0.0
    %2639 = vmatpush2.xpose.msra.mxu0 0.0
    %2640 = vmatprep.subr.mxu0 0.0
    %2641 = vmatpush2.xpose.msra.mxu0 0.0
    %2642 = vmatprep.subr.mxu0 0.0
    %2643 = vmatpush2.xpose.msra.mxu0 0.0
    %2644 = vmatprep.subr.mxu0 0.0
    %2645 = vmatpush2.xpose.msra.mxu0 0.0
    %2646 = vmatprep.subr.mxu0 0.0
    %2647 = vmatpush2.xpose.msra.mxu0 0.0
    %2648 = vmatprep.subr.mxu0 0.0
    %2649 = vmatpush2.xpose.msra.mxu0 0.0
    %2650 = vmatprep.subr.mxu0 0.0
    %2651 = vmatpush2.xpose.msra.mxu0 0.0
    %2652 = vmatprep.subr.mxu0 0.0
    %2653 = vmatpush2.xpose.msra.mxu0 0.0
    %2654 = vmatprep.subr.mxu0 0.0
    %2655 = vmatpush2.xpose.msra.mxu0 0.0
    %2656 = vmatprep.subr.mxu0 0.0
    %2657 = vmatpush2.xpose.msra.mxu0 0.0
    %2658 = vmatprep.subr.mxu0 0.0
    %2659 = vmatpush2.xpose.msra.mxu0 0.0
    %2660 = vmatprep.mubr.f32.mxu0 %v280
    %2661 = vmatmul.mubr.f32.gmra.mxu0 %v278
    %v2662 = vpop.f32.mrf.mxu0
    %v2663 = vadd.f32 %v2593, %v2662
    %v2664 = vpop.f32.mrf.mxu0
    %2665 = vdwg.mxu0
    %2666 = vmatprep.subr.mxu0 0.0
    %2667 = vmatpush1.xpose.msra.mxu0 0.0
    %2668 = vmatprep.subr.mxu0 0.0
    %2669 = vmatpush1.xpose.msra.mxu0 0.0
    %2670 = vmatprep.subr.mxu0 0.0
    %2671 = vmatpush1.xpose.msra.mxu0 0.0
    %2672 = vmatprep.subr.mxu0 0.0
    %2673 = vmatpush1.xpose.msra.mxu0 0.0
    %2674 = vmatprep.subr.mxu0 0.0
    %2675 = vmatpush1.xpose.msra.mxu0 0.0
    %2676 = vmatprep.subr.mxu0 0.0
    %2677 = vmatpush1.xpose.msra.mxu0 0.0
    %2678 = vmatprep.subr.mxu0 0.0
    %2679 = vmatpush1.xpose.msra.mxu0 0.0
    %2680 = vmatprep.subr.mxu0 0.0
    %2681 = vmatpush1.xpose.msra.mxu0 0.0
    %2682 = vmatprep.subr.mxu0 0.0
    %2683 = vmatpush1.xpose.msra.mxu0 0.0
    %2684 = vmatprep.subr.mxu0 0.0
    %2685 = vmatpush1.xpose.msra.mxu0 0.0
    %2686 = vmatprep.subr.mxu0 0.0
    %2687 = vmatpush1.xpose.msra.mxu0 0.0
    %2688 = vmatprep.subr.mxu0 0.0
    %2689 = vmatpush1.xpose.msra.mxu0 0.0
    %2690 = vmatprep.subr.mxu0 0.0
    %2691 = vmatpush1.xpose.msra.mxu0 0.0
    %2692 = vmatprep.subr.mxu0 0.0
    %2693 = vmatpush1.xpose.msra.mxu0 0.0
    %2694 = vmatprep.subr.mxu0 0.0
    %2695 = vmatpush1.xpose.msra.mxu0 0.0
    %2696 = vmatprep.subr.mxu0 %v824
    %2697 = vmatpush1.xpose.msra.mxu0 %v816
    %2698 = vmatprep.subr.mxu0 0.0
    %2699 = vmatpush2.xpose.msra.mxu0 0.0
    %2700 = vmatprep.subr.mxu0 0.0
    %2701 = vmatpush2.xpose.msra.mxu0 0.0
    %2702 = vmatprep.subr.mxu0 0.0
    %2703 = vmatpush2.xpose.msra.mxu0 0.0
    %2704 = vmatprep.subr.mxu0 0.0
    %2705 = vmatpush2.xpose.msra.mxu0 0.0
    %2706 = vmatprep.subr.mxu0 0.0
    %2707 = vmatpush2.xpose.msra.mxu0 0.0
    %2708 = vmatprep.subr.mxu0 0.0
    %2709 = vmatpush2.xpose.msra.mxu0 0.0
    %2710 = vmatprep.subr.mxu0 0.0
    %2711 = vmatpush2.xpose.msra.mxu0 0.0
    %2712 = vmatprep.subr.mxu0 0.0
    %2713 = vmatpush2.xpose.msra.mxu0 0.0
    %2714 = vmatprep.subr.mxu0 0.0
    %2715 = vmatpush2.xpose.msra.mxu0 0.0
    %2716 = vmatprep.subr.mxu0 0.0
    %2717 = vmatpush2.xpose.msra.mxu0 0.0
    %2718 = vmatprep.subr.mxu0 0.0
    %2719 = vmatpush2.xpose.msra.mxu0 0.0
    %2720 = vmatprep.subr.mxu0 0.0
    %2721 = vmatpush2.xpose.msra.mxu0 0.0
    %2722 = vmatprep.subr.mxu0 0.0
    %2723 = vmatpush2.xpose.msra.mxu0 0.0
    %2724 = vmatprep.subr.mxu0 0.0
    %2725 = vmatpush2.xpose.msra.mxu0 0.0
    %2726 = vmatprep.subr.mxu0 0.0
    %2727 = vmatpush2.xpose.msra.mxu0 0.0
    %2728 = vmatprep.subr.mxu0 0.0
    %2729 = vmatpush2.xpose.msra.mxu0 0.0
    %2730 = vmatprep.mubr.f32.mxu0 %v296
    %2731 = vmatmul.mubr.f32.gmra.mxu0 %v288
    %v2732 = vpop.f32.mrf.mxu0
    %v2733 = vadd.f32 %v2663, %v2732
    %v2734 = vpop.f32.mrf.mxu0
    %2735 = vdwg.mxu0
    %2736 = vmatprep.subr.mxu0 0.0
    %2737 = vmatpush1.xpose.msra.mxu0 0.0
    %2738 = vmatprep.subr.mxu0 0.0
    %2739 = vmatpush1.xpose.msra.mxu0 0.0
    %2740 = vmatprep.subr.mxu0 0.0
    %2741 = vmatpush1.xpose.msra.mxu0 0.0
    %2742 = vmatprep.subr.mxu0 0.0
    %2743 = vmatpush1.xpose.msra.mxu0 0.0
    %2744 = vmatprep.subr.mxu0 0.0
    %2745 = vmatpush1.xpose.msra.mxu0 0.0
    %2746 = vmatprep.subr.mxu0 0.0
    %2747 = vmatpush1.xpose.msra.mxu0 0.0
    %2748 = vmatprep.subr.mxu0 0.0
    %2749 = vmatpush1.xpose.msra.mxu0 0.0
    %2750 = vmatprep.subr.mxu0 0.0
    %2751 = vmatpush1.xpose.msra.mxu0 0.0
    %2752 = vmatprep.subr.mxu0 0.0
    %2753 = vmatpush1.xpose.msra.mxu0 0.0
    %2754 = vmatprep.subr.mxu0 0.0
    %2755 = vmatpush1.xpose.msra.mxu0 0.0
    %2756 = vmatprep.subr.mxu0 0.0
    %2757 = vmatpush1.xpose.msra.mxu0 0.0
    %2758 = vmatprep.subr.mxu0 0.0
    %2759 = vmatpush1.xpose.msra.mxu0 0.0
    %2760 = vmatprep.subr.mxu0 0.0
    %2761 = vmatpush1.xpose.msra.mxu0 0.0
    %2762 = vmatprep.subr.mxu0 0.0
    %2763 = vmatpush1.xpose.msra.mxu0 0.0
    %2764 = vmatprep.subr.mxu0 0.0
    %2765 = vmatpush1.xpose.msra.mxu0 0.0
    %2766 = vmatprep.subr.mxu0 %v825
    %2767 = vmatpush1.xpose.msra.mxu0 %v823
    %2768 = vmatprep.subr.mxu0 0.0
    %2769 = vmatpush2.xpose.msra.mxu0 0.0
    %2770 = vmatprep.subr.mxu0 0.0
    %2771 = vmatpush2.xpose.msra.mxu0 0.0
    %2772 = vmatprep.subr.mxu0 0.0
    %2773 = vmatpush2.xpose.msra.mxu0 0.0
    %2774 = vmatprep.subr.mxu0 0.0
    %2775 = vmatpush2.xpose.msra.mxu0 0.0
    %2776 = vmatprep.subr.mxu0 0.0
    %2777 = vmatpush2.xpose.msra.mxu0 0.0
    %2778 = vmatprep.subr.mxu0 0.0
    %2779 = vmatpush2.xpose.msra.mxu0 0.0
    %2780 = vmatprep.subr.mxu0 0.0
    %2781 = vmatpush2.xpose.msra.mxu0 0.0
    %2782 = vmatprep.subr.mxu0 0.0
    %2783 = vmatpush2.xpose.msra.mxu0 0.0
    %2784 = vmatprep.subr.mxu0 0.0
    %2785 = vmatpush2.xpose.msra.mxu0 0.0
    %2786 = vmatprep.subr.mxu0 0.0
    %2787 = vmatpush2.xpose.msra.mxu0 0.0
    %2788 = vmatprep.subr.mxu0 0.0
    %2789 = vmatpush2.xpose.msra.mxu0 0.0
    %2790 = vmatprep.subr.mxu0 0.0
    %2791 = vmatpush2.xpose.msra.mxu0 0.0
    %2792 = vmatprep.subr.mxu0 0.0
    %2793 = vmatpush2.xpose.msra.mxu0 0.0
    %2794 = vmatprep.subr.mxu0 0.0
    %2795 = vmatpush2.xpose.msra.mxu0 0.0
    %2796 = vmatprep.subr.mxu0 0.0
    %2797 = vmatpush2.xpose.msra.mxu0 0.0
    %2798 = vmatprep.subr.mxu0 0.0
    %2799 = vmatpush2.xpose.msra.mxu0 0.0
    %2800 = vmatprep.mubr.f32.mxu0 %v297
    %2801 = vmatmul.mubr.f32.gmra.mxu0 %v295
    %v2802 = vpop.f32.mrf.mxu0
    %v2803 = vadd.f32 %v2733, %v2802
    %v2804 = vpop.f32.mrf.mxu0
    %2805 = vdwg.mxu0
    %2806 = vmatprep.subr.mxu0 0.0
    %2807 = vmatpush1.xpose.msra.mxu0 0.0
    %2808 = vmatprep.subr.mxu0 0.0
    %2809 = vmatpush1.xpose.msra.mxu0 0.0
    %2810 = vmatprep.subr.mxu0 0.0
    %2811 = vmatpush1.xpose.msra.mxu0 0.0
    %2812 = vmatprep.subr.mxu0 0.0
    %2813 = vmatpush1.xpose.msra.mxu0 0.0
    %2814 = vmatprep.subr.mxu0 0.0
    %2815 = vmatpush1.xpose.msra.mxu0 0.0
    %2816 = vmatprep.subr.mxu0 0.0
    %2817 = vmatpush1.xpose.msra.mxu0 0.0
    %2818 = vmatprep.subr.mxu0 0.0
    %2819 = vmatpush1.xpose.msra.mxu0 0.0
    %2820 = vmatprep.subr.mxu0 0.0
    %2821 = vmatpush1.xpose.msra.mxu0 0.0
    %2822 = vmatprep.subr.mxu0 0.0
    %2823 = vmatpush1.xpose.msra.mxu0 0.0
    %2824 = vmatprep.subr.mxu0 0.0
    %2825 = vmatpush1.xpose.msra.mxu0 0.0
    %2826 = vmatprep.subr.mxu0 0.0
    %2827 = vmatpush1.xpose.msra.mxu0 0.0
    %2828 = vmatprep.subr.mxu0 0.0
    %2829 = vmatpush1.xpose.msra.mxu0 0.0
    %2830 = vmatprep.subr.mxu0 0.0
    %2831 = vmatpush1.xpose.msra.mxu0 0.0
    %2832 = vmatprep.subr.mxu0 0.0
    %2833 = vmatpush1.xpose.msra.mxu0 0.0
    %2834 = vmatprep.subr.mxu0 0.0
    %2835 = vmatpush1.xpose.msra.mxu0 0.0
    %2836 = vmatprep.subr.mxu0 %v841
    %2837 = vmatpush1.xpose.msra.mxu0 %v833
    %2838 = vmatprep.subr.mxu0 0.0
    %2839 = vmatpush2.xpose.msra.mxu0 0.0
    %2840 = vmatprep.subr.mxu0 0.0
    %2841 = vmatpush2.xpose.msra.mxu0 0.0
    %2842 = vmatprep.subr.mxu0 0.0
    %2843 = vmatpush2.xpose.msra.mxu0 0.0
    %2844 = vmatprep.subr.mxu0 0.0
    %2845 = vmatpush2.xpose.msra.mxu0 0.0
    %2846 = vmatprep.subr.mxu0 0.0
    %2847 = vmatpush2.xpose.msra.mxu0 0.0
    %2848 = vmatprep.subr.mxu0 0.0
    %2849 = vmatpush2.xpose.msra.mxu0 0.0
    %2850 = vmatprep.subr.mxu0 0.0
    %2851 = vmatpush2.xpose.msra.mxu0 0.0
    %2852 = vmatprep.subr.mxu0 0.0
    %2853 = vmatpush2.xpose.msra.mxu0 0.0
    %2854 = vmatprep.subr.mxu0 0.0
    %2855 = vmatpush2.xpose.msra.mxu0 0.0
    %2856 = vmatprep.subr.mxu0 0.0
    %2857 = vmatpush2.xpose.msra.mxu0 0.0
    %2858 = vmatprep.subr.mxu0 0.0
    %2859 = vmatpush2.xpose.msra.mxu0 0.0
    %2860 = vmatprep.subr.mxu0 0.0
    %2861 = vmatpush2.xpose.msra.mxu0 0.0
    %2862 = vmatprep.subr.mxu0 0.0
    %2863 = vmatpush2.xpose.msra.mxu0 0.0
    %2864 = vmatprep.subr.mxu0 0.0
    %2865 = vmatpush2.xpose.msra.mxu0 0.0
    %2866 = vmatprep.subr.mxu0 0.0
    %2867 = vmatpush2.xpose.msra.mxu0 0.0
    %2868 = vmatprep.subr.mxu0 0.0
    %2869 = vmatpush2.xpose.msra.mxu0 0.0
    %2870 = vmatprep.mubr.f32.mxu0 %v313
    %2871 = vmatmul.mubr.f32.gmra.mxu0 %v305
    %v2872 = vpop.f32.mrf.mxu0
    %v2873 = vadd.f32 %v2803, %v2872
    %v2874 = vpop.f32.mrf.mxu0
    %2875 = vdwg.mxu0
    %2876 = vmatprep.subr.mxu0 0.0
    %2877 = vmatpush1.xpose.msra.mxu0 0.0
    %2878 = vmatprep.subr.mxu0 0.0
    %2879 = vmatpush1.xpose.msra.mxu0 0.0
    %2880 = vmatprep.subr.mxu0 0.0
    %2881 = vmatpush1.xpose.msra.mxu0 0.0
    %2882 = vmatprep.subr.mxu0 0.0
    %2883 = vmatpush1.xpose.msra.mxu0 0.0
    %2884 = vmatprep.subr.mxu0 0.0
    %2885 = vmatpush1.xpose.msra.mxu0 0.0
    %2886 = vmatprep.subr.mxu0 0.0
    %2887 = vmatpush1.xpose.msra.mxu0 0.0
    %2888 = vmatprep.subr.mxu0 0.0
    %2889 = vmatpush1.xpose.msra.mxu0 0.0
    %2890 = vmatprep.subr.mxu0 0.0
    %2891 = vmatpush1.xpose.msra.mxu0 0.0
    %2892 = vmatprep.subr.mxu0 0.0
    %2893 = vmatpush1.xpose.msra.mxu0 0.0
    %2894 = vmatprep.subr.mxu0 0.0
    %2895 = vmatpush1.xpose.msra.mxu0 0.0
    %2896 = vmatprep.subr.mxu0 0.0
    %2897 = vmatpush1.xpose.msra.mxu0 0.0
    %2898 = vmatprep.subr.mxu0 0.0
    %2899 = vmatpush1.xpose.msra.mxu0 0.0
    %2900 = vmatprep.subr.mxu0 0.0
    %2901 = vmatpush1.xpose.msra.mxu0 0.0
    %2902 = vmatprep.subr.mxu0 0.0
    %2903 = vmatpush1.xpose.msra.mxu0 0.0
    %2904 = vmatprep.subr.mxu0 0.0
    %2905 = vmatpush1.xpose.msra.mxu0 0.0
    %2906 = vmatprep.subr.mxu0 %v842
    %2907 = vmatpush1.xpose.msra.mxu0 %v840
    %2908 = vmatprep.subr.mxu0 0.0
    %2909 = vmatpush2.xpose.msra.mxu0 0.0
    %2910 = vmatprep.subr.mxu0 0.0
    %2911 = vmatpush2.xpose.msra.mxu0 0.0
    %2912 = vmatprep.subr.mxu0 0.0
    %2913 = vmatpush2.xpose.msra.mxu0 0.0
    %2914 = vmatprep.subr.mxu0 0.0
    %2915 = vmatpush2.xpose.msra.mxu0 0.0
    %2916 = vmatprep.subr.mxu0 0.0
    %2917 = vmatpush2.xpose.msra.mxu0 0.0
    %2918 = vmatprep.subr.mxu0 0.0
    %2919 = vmatpush2.xpose.msra.mxu0 0.0
    %2920 = vmatprep.subr.mxu0 0.0
    %2921 = vmatpush2.xpose.msra.mxu0 0.0
    %2922 = vmatprep.subr.mxu0 0.0
    %2923 = vmatpush2.xpose.msra.mxu0 0.0
    %2924 = vmatprep.subr.mxu0 0.0
    %2925 = vmatpush2.xpose.msra.mxu0 0.0
    %2926 = vmatprep.subr.mxu0 0.0
    %2927 = vmatpush2.xpose.msra.mxu0 0.0
    %2928 = vmatprep.subr.mxu0 0.0
    %2929 = vmatpush2.xpose.msra.mxu0 0.0
    %2930 = vmatprep.subr.mxu0 0.0
    %2931 = vmatpush2.xpose.msra.mxu0 0.0
    %2932 = vmatprep.subr.mxu0 0.0
    %2933 = vmatpush2.xpose.msra.mxu0 0.0
    %2934 = vmatprep.subr.mxu0 0.0
    %2935 = vmatpush2.xpose.msra.mxu0 0.0
    %2936 = vmatprep.subr.mxu0 0.0
    %2937 = vmatpush2.xpose.msra.mxu0 0.0
    %2938 = vmatprep.subr.mxu0 0.0
    %2939 = vmatpush2.xpose.msra.mxu0 0.0
    %2940 = vmatprep.mubr.f32.mxu0 %v314
    %2941 = vmatmul.mubr.f32.gmra.mxu0 %v312
    %v2942 = vpop.f32.mrf.mxu0
    %v2943 = vadd.f32 %v2873, %v2942
    %v2944 = vpop.f32.mrf.mxu0
    %2945 = vdwg.mxu0
    %2946 = vmatprep.subr.mxu0 0.0
    %2947 = vmatpush1.xpose.msra.mxu0 0.0
    %2948 = vmatprep.subr.mxu0 0.0
    %2949 = vmatpush1.xpose.msra.mxu0 0.0
    %2950 = vmatprep.subr.mxu0 0.0
    %2951 = vmatpush1.xpose.msra.mxu0 0.0
    %2952 = vmatprep.subr.mxu0 0.0
    %2953 = vmatpush1.xpose.msra.mxu0 0.0
    %2954 = vmatprep.subr.mxu0 0.0
    %2955 = vmatpush1.xpose.msra.mxu0 0.0
    %2956 = vmatprep.subr.mxu0 0.0
    %2957 = vmatpush1.xpose.msra.mxu0 0.0
    %2958 = vmatprep.subr.mxu0 0.0
    %2959 = vmatpush1.xpose.msra.mxu0 0.0
    %2960 = vmatprep.subr.mxu0 0.0
    %2961 = vmatpush1.xpose.msra.mxu0 0.0
    %2962 = vmatprep.subr.mxu0 0.0
    %2963 = vmatpush1.xpose.msra.mxu0 0.0
    %2964 = vmatprep.subr.mxu0 0.0
    %2965 = vmatpush1.xpose.msra.mxu0 0.0
    %2966 = vmatprep.subr.mxu0 0.0
    %2967 = vmatpush1.xpose.msra.mxu0 0.0
    %2968 = vmatprep.subr.mxu0 0.0
    %2969 = vmatpush1.xpose.msra.mxu0 0.0
    %2970 = vmatprep.subr.mxu0 0.0
    %2971 = vmatpush1.xpose.msra.mxu0 0.0
    %2972 = vmatprep.subr.mxu0 0.0
    %2973 = vmatpush1.xpose.msra.mxu0 0.0
    %2974 = vmatprep.subr.mxu0 0.0
    %2975 = vmatpush1.xpose.msra.mxu0 0.0
    %2976 = vmatprep.subr.mxu0 %v858
    %2977 = vmatpush1.xpose.msra.mxu0 %v850
    %2978 = vmatprep.subr.mxu0 0.0
    %2979 = vmatpush2.xpose.msra.mxu0 0.0
    %2980 = vmatprep.subr.mxu0 0.0
    %2981 = vmatpush2.xpose.msra.mxu0 0.0
    %2982 = vmatprep.subr.mxu0 0.0
    %2983 = vmatpush2.xpose.msra.mxu0 0.0
    %2984 = vmatprep.subr.mxu0 0.0
    %2985 = vmatpush2.xpose.msra.mxu0 0.0
    %2986 = vmatprep.subr.mxu0 0.0
    %2987 = vmatpush2.xpose.msra.mxu0 0.0
    %2988 = vmatprep.subr.mxu0 0.0
    %2989 = vmatpush2.xpose.msra.mxu0 0.0
    %2990 = vmatprep.subr.mxu0 0.0
    %2991 = vmatpush2.xpose.msra.mxu0 0.0
    %2992 = vmatprep.subr.mxu0 0.0
    %2993 = vmatpush2.xpose.msra.mxu0 0.0
    %2994 = vmatprep.subr.mxu0 0.0
    %2995 = vmatpush2.xpose.msra.mxu0 0.0
    %2996 = vmatprep.subr.mxu0 0.0
    %2997 = vmatpush2.xpose.msra.mxu0 0.0
    %2998 = vmatprep.subr.mxu0 0.0
    %2999 = vmatpush2.xpose.msra.mxu0 0.0
    %3000 = vmatprep.subr.mxu0 0.0
    %3001 = vmatpush2.xpose.msra.mxu0 0.0
    %3002 = vmatprep.subr.mxu0 0.0
    %3003 = vmatpush2.xpose.msra.mxu0 0.0
    %3004 = vmatprep.subr.mxu0 0.0
    %3005 = vmatpush2.xpose.msra.mxu0 0.0
    %3006 = vmatprep.subr.mxu0 0.0
    %3007 = vmatpush2.xpose.msra.mxu0 0.0
    %3008 = vmatprep.subr.mxu0 0.0
    %3009 = vmatpush2.xpose.msra.mxu0 0.0
    %3010 = vmatprep.mubr.f32.mxu0 %v330
    %3011 = vmatmul.mubr.f32.gmra.mxu0 %v322
    %v3012 = vpop.f32.mrf.mxu0
    %v3013 = vadd.f32 %v2943, %v3012
    %v3014 = vpop.f32.mrf.mxu0
    %3015 = vdwg.mxu0
    %3016 = vmatprep.subr.mxu0 0.0
    %3017 = vmatpush1.xpose.msra.mxu0 0.0
    %3018 = vmatprep.subr.mxu0 0.0
    %3019 = vmatpush1.xpose.msra.mxu0 0.0
    %3020 = vmatprep.subr.mxu0 0.0
    %3021 = vmatpush1.xpose.msra.mxu0 0.0
    %3022 = vmatprep.subr.mxu0 0.0
    %3023 = vmatpush1.xpose.msra.mxu0 0.0
    %3024 = vmatprep.subr.mxu0 0.0
    %3025 = vmatpush1.xpose.msra.mxu0 0.0
    %3026 = vmatprep.subr.mxu0 0.0
    %3027 = vmatpush1.xpose.msra.mxu0 0.0
    %3028 = vmatprep.subr.mxu0 0.0
    %3029 = vmatpush1.xpose.msra.mxu0 0.0
    %3030 = vmatprep.subr.mxu0 0.0
    %3031 = vmatpush1.xpose.msra.mxu0 0.0
    %3032 = vmatprep.subr.mxu0 0.0
    %3033 = vmatpush1.xpose.msra.mxu0 0.0
    %3034 = vmatprep.subr.mxu0 0.0
    %3035 = vmatpush1.xpose.msra.mxu0 0.0
    %3036 = vmatprep.subr.mxu0 0.0
    %3037 = vmatpush1.xpose.msra.mxu0 0.0
    %3038 = vmatprep.subr.mxu0 0.0
    %3039 = vmatpush1.xpose.msra.mxu0 0.0
    %3040 = vmatprep.subr.mxu0 0.0
    %3041 = vmatpush1.xpose.msra.mxu0 0.0
    %3042 = vmatprep.subr.mxu0 0.0
    %3043 = vmatpush1.xpose.msra.mxu0 0.0
    %3044 = vmatprep.subr.mxu0 0.0
    %3045 = vmatpush1.xpose.msra.mxu0 0.0
    %3046 = vmatprep.subr.mxu0 %v859
    %3047 = vmatpush1.xpose.msra.mxu0 %v857
    %3048 = vmatprep.subr.mxu0 0.0
    %3049 = vmatpush2.xpose.msra.mxu0 0.0
    %3050 = vmatprep.subr.mxu0 0.0
    %3051 = vmatpush2.xpose.msra.mxu0 0.0
    %3052 = vmatprep.subr.mxu0 0.0
    %3053 = vmatpush2.xpose.msra.mxu0 0.0
    %3054 = vmatprep.subr.mxu0 0.0
    %3055 = vmatpush2.xpose.msra.mxu0 0.0
    %3056 = vmatprep.subr.mxu0 0.0
    %3057 = vmatpush2.xpose.msra.mxu0 0.0
    %3058 = vmatprep.subr.mxu0 0.0
    %3059 = vmatpush2.xpose.msra.mxu0 0.0
    %3060 = vmatprep.subr.mxu0 0.0
    %3061 = vmatpush2.xpose.msra.mxu0 0.0
    %3062 = vmatprep.subr.mxu0 0.0
    %3063 = vmatpush2.xpose.msra.mxu0 0.0
    %3064 = vmatprep.subr.mxu0 0.0
    %3065 = vmatpush2.xpose.msra.mxu0 0.0
    %3066 = vmatprep.subr.mxu0 0.0
    %3067 = vmatpush2.xpose.msra.mxu0 0.0
    %3068 = vmatprep.subr.mxu0 0.0
    %3069 = vmatpush2.xpose.msra.mxu0 0.0
    %3070 = vmatprep.subr.mxu0 0.0
    %3071 = vmatpush2.xpose.msra.mxu0 0.0
    %3072 = vmatprep.subr.mxu0 0.0
    %3073 = vmatpush2.xpose.msra.mxu0 0.0
    %3074 = vmatprep.subr.mxu0 0.0
    %3075 = vmatpush2.xpose.msra.mxu0 0.0
    %3076 = vmatprep.subr.mxu0 0.0
    %3077 = vmatpush2.xpose.msra.mxu0 0.0
    %3078 = vmatprep.subr.mxu0 0.0
    %3079 = vmatpush2.xpose.msra.mxu0 0.0
    %3080 = vmatprep.mubr.f32.mxu0 %v331
    %3081 = vmatmul.mubr.f32.gmra.mxu0 %v329
    %v3082 = vpop.f32.mrf.mxu0
    %v3083 = vadd.f32 %v3013, %v3082
    %v3084 = vpop.f32.mrf.mxu0
    %3085 = vdwg.mxu0
    %3086 = vmatprep.subr.mxu0 0.0
    %3087 = vmatpush1.xpose.msra.mxu0 0.0
    %3088 = vmatprep.subr.mxu0 0.0
    %3089 = vmatpush1.xpose.msra.mxu0 0.0
    %3090 = vmatprep.subr.mxu0 0.0
    %3091 = vmatpush1.xpose.msra.mxu0 0.0
    %3092 = vmatprep.subr.mxu0 0.0
    %3093 = vmatpush1.xpose.msra.mxu0 0.0
    %3094 = vmatprep.subr.mxu0 0.0
    %3095 = vmatpush1.xpose.msra.mxu0 0.0
    %3096 = vmatprep.subr.mxu0 0.0
    %3097 = vmatpush1.xpose.msra.mxu0 0.0
    %3098 = vmatprep.subr.mxu0 0.0
    %3099 = vmatpush1.xpose.msra.mxu0 0.0
    %3100 = vmatprep.subr.mxu0 0.0
    %3101 = vmatpush1.xpose.msra.mxu0 0.0
    %3102 = vmatprep.subr.mxu0 0.0
    %3103 = vmatpush1.xpose.msra.mxu0 0.0
    %3104 = vmatprep.subr.mxu0 0.0
    %3105 = vmatpush1.xpose.msra.mxu0 0.0
    %3106 = vmatprep.subr.mxu0 0.0
    %3107 = vmatpush1.xpose.msra.mxu0 0.0
    %3108 = vmatprep.subr.mxu0 0.0
    %3109 = vmatpush1.xpose.msra.mxu0 0.0
    %3110 = vmatprep.subr.mxu0 0.0
    %3111 = vmatpush1.xpose.msra.mxu0 0.0
    %3112 = vmatprep.subr.mxu0 0.0
    %3113 = vmatpush1.xpose.msra.mxu0 0.0
    %3114 = vmatprep.subr.mxu0 0.0
    %3115 = vmatpush1.xpose.msra.mxu0 0.0
    %3116 = vmatprep.subr.mxu0 %v875
    %3117 = vmatpush1.xpose.msra.mxu0 %v867
    %3118 = vmatprep.subr.mxu0 0.0
    %3119 = vmatpush2.xpose.msra.mxu0 0.0
    %3120 = vmatprep.subr.mxu0 0.0
    %3121 = vmatpush2.xpose.msra.mxu0 0.0
    %3122 = vmatprep.subr.mxu0 0.0
    %3123 = vmatpush2.xpose.msra.mxu0 0.0
    %3124 = vmatprep.subr.mxu0 0.0
    %3125 = vmatpush2.xpose.msra.mxu0 0.0
    %3126 = vmatprep.subr.mxu0 0.0
    %3127 = vmatpush2.xpose.msra.mxu0 0.0
    %3128 = vmatprep.subr.mxu0 0.0
    %3129 = vmatpush2.xpose.msra.mxu0 0.0
    %3130 = vmatprep.subr.mxu0 0.0
    %3131 = vmatpush2.xpose.msra.mxu0 0.0
    %3132 = vmatprep.subr.mxu0 0.0
    %3133 = vmatpush2.xpose.msra.mxu0 0.0
    %3134 = vmatprep.subr.mxu0 0.0
    %3135 = vmatpush2.xpose.msra.mxu0 0.0
    %3136 = vmatprep.subr.mxu0 0.0
    %3137 = vmatpush2.xpose.msra.mxu0 0.0
    %3138 = vmatprep.subr.mxu0 0.0
    %3139 = vmatpush2.xpose.msra.mxu0 0.0
    %3140 = vmatprep.subr.mxu0 0.0
    %3141 = vmatpush2.xpose.msra.mxu0 0.0
    %3142 = vmatprep.subr.mxu0 0.0
    %3143 = vmatpush2.xpose.msra.mxu0 0.0
    %3144 = vmatprep.subr.mxu0 0.0
    %3145 = vmatpush2.xpose.msra.mxu0 0.0
    %3146 = vmatprep.subr.mxu0 0.0
    %3147 = vmatpush2.xpose.msra.mxu0 0.0
    %3148 = vmatprep.subr.mxu0 0.0
    %3149 = vmatpush2.xpose.msra.mxu0 0.0
    %3150 = vmatprep.mubr.f32.mxu0 %v347
    %3151 = vmatmul.mubr.f32.gmra.mxu0 %v339
    %v3152 = vpop.f32.mrf.mxu0
    %v3153 = vadd.f32 %v3083, %v3152
    %v3154 = vpop.f32.mrf.mxu0
    %3155 = vdwg.mxu0
    %3156 = vmatprep.subr.mxu0 0.0
    %3157 = vmatpush1.xpose.msra.mxu0 0.0
    %3158 = vmatprep.subr.mxu0 0.0
    %3159 = vmatpush1.xpose.msra.mxu0 0.0
    %3160 = vmatprep.subr.mxu0 0.0
    %3161 = vmatpush1.xpose.msra.mxu0 0.0
    %3162 = vmatprep.subr.mxu0 0.0
    %3163 = vmatpush1.xpose.msra.mxu0 0.0
    %3164 = vmatprep.subr.mxu0 0.0
    %3165 = vmatpush1.xpose.msra.mxu0 0.0
    %3166 = vmatprep.subr.mxu0 0.0
    %3167 = vmatpush1.xpose.msra.mxu0 0.0
    %3168 = vmatprep.subr.mxu0 0.0
    %3169 = vmatpush1.xpose.msra.mxu0 0.0
    %3170 = vmatprep.subr.mxu0 0.0
    %3171 = vmatpush1.xpose.msra.mxu0 0.0
    %3172 = vmatprep.subr.mxu0 0.0
    %3173 = vmatpush1.xpose.msra.mxu0 0.0
    %3174 = vmatprep.subr.mxu0 0.0
    %3175 = vmatpush1.xpose.msra.mxu0 0.0
    %3176 = vmatprep.subr.mxu0 0.0
    %3177 = vmatpush1.xpose.msra.mxu0 0.0
    %3178 = vmatprep.subr.mxu0 0.0
    %3179 = vmatpush1.xpose.msra.mxu0 0.0
    %3180 = vmatprep.subr.mxu0 0.0
    %3181 = vmatpush1.xpose.msra.mxu0 0.0
    %3182 = vmatprep.subr.mxu0 0.0
    %3183 = vmatpush1.xpose.msra.mxu0 0.0
    %3184 = vmatprep.subr.mxu0 0.0
    %3185 = vmatpush1.xpose.msra.mxu0 0.0
    %3186 = vmatprep.subr.mxu0 %v876
    %3187 = vmatpush1.xpose.msra.mxu0 %v874
    %3188 = vmatprep.subr.mxu0 0.0
    %3189 = vmatpush2.xpose.msra.mxu0 0.0
    %3190 = vmatprep.subr.mxu0 0.0
    %3191 = vmatpush2.xpose.msra.mxu0 0.0
    %3192 = vmatprep.subr.mxu0 0.0
    %3193 = vmatpush2.xpose.msra.mxu0 0.0
    %3194 = vmatprep.subr.mxu0 0.0
    %3195 = vmatpush2.xpose.msra.mxu0 0.0
    %3196 = vmatprep.subr.mxu0 0.0
    %3197 = vmatpush2.xpose.msra.mxu0 0.0
    %3198 = vmatprep.subr.mxu0 0.0
    %3199 = vmatpush2.xpose.msra.mxu0 0.0
    %3200 = vmatprep.subr.mxu0 0.0
    %3201 = vmatpush2.xpose.msra.mxu0 0.0
    %3202 = vmatprep.subr.mxu0 0.0
    %3203 = vmatpush2.xpose.msra.mxu0 0.0
    %3204 = vmatprep.subr.mxu0 0.0
    %3205 = vmatpush2.xpose.msra.mxu0 0.0
    %3206 = vmatprep.subr.mxu0 0.0
    %3207 = vmatpush2.xpose.msra.mxu0 0.0
    %3208 = vmatprep.subr.mxu0 0.0
    %3209 = vmatpush2.xpose.msra.mxu0 0.0
    %3210 = vmatprep.subr.mxu0 0.0
    %3211 = vmatpush2.xpose.msra.mxu0 0.0
    %3212 = vmatprep.subr.mxu0 0.0
    %3213 = vmatpush2.xpose.msra.mxu0 0.0
    %3214 = vmatprep.subr.mxu0 0.0
    %3215 = vmatpush2.xpose.msra.mxu0 0.0
    %3216 = vmatprep.subr.mxu0 0.0
    %3217 = vmatpush2.xpose.msra.mxu0 0.0
    %3218 = vmatprep.subr.mxu0 0.0
    %3219 = vmatpush2.xpose.msra.mxu0 0.0
    %3220 = vmatprep.mubr.f32.mxu0 %v348
    %3221 = vmatmul.mubr.f32.gmra.mxu0 %v346
    %v3222 = vpop.f32.mrf.mxu0
    %v3223 = vadd.f32 %v3153, %v3222
    %v3224 = vpop.f32.mrf.mxu0
    %3225 = vdwg.mxu0
    %3226 = vmatprep.subr.mxu0 0.0
    %3227 = vmatpush1.xpose.msra.mxu0 0.0
    %3228 = vmatprep.subr.mxu0 0.0
    %3229 = vmatpush1.xpose.msra.mxu0 0.0
    %3230 = vmatprep.subr.mxu0 0.0
    %3231 = vmatpush1.xpose.msra.mxu0 0.0
    %3232 = vmatprep.subr.mxu0 0.0
    %3233 = vmatpush1.xpose.msra.mxu0 0.0
    %3234 = vmatprep.subr.mxu0 0.0
    %3235 = vmatpush1.xpose.msra.mxu0 0.0
    %3236 = vmatprep.subr.mxu0 0.0
    %3237 = vmatpush1.xpose.msra.mxu0 0.0
    %3238 = vmatprep.subr.mxu0 0.0
    %3239 = vmatpush1.xpose.msra.mxu0 0.0
    %3240 = vmatprep.subr.mxu0 0.0
    %3241 = vmatpush1.xpose.msra.mxu0 0.0
    %3242 = vmatprep.subr.mxu0 0.0
    %3243 = vmatpush1.xpose.msra.mxu0 0.0
    %3244 = vmatprep.subr.mxu0 0.0
    %3245 = vmatpush1.xpose.msra.mxu0 0.0
    %3246 = vmatprep.subr.mxu0 0.0
    %3247 = vmatpush1.xpose.msra.mxu0 0.0
    %3248 = vmatprep.subr.mxu0 0.0
    %3249 = vmatpush1.xpose.msra.mxu0 0.0
    %3250 = vmatprep.subr.mxu0 0.0
    %3251 = vmatpush1.xpose.msra.mxu0 0.0
    %3252 = vmatprep.subr.mxu0 0.0
    %3253 = vmatpush1.xpose.msra.mxu0 0.0
    %3254 = vmatprep.subr.mxu0 0.0
    %3255 = vmatpush1.xpose.msra.mxu0 0.0
    %3256 = vmatprep.subr.mxu0 %v892
    %3257 = vmatpush1.xpose.msra.mxu0 %v884
    %3258 = vmatprep.subr.mxu0 0.0
    %3259 = vmatpush2.xpose.msra.mxu0 0.0
    %3260 = vmatprep.subr.mxu0 0.0
    %3261 = vmatpush2.xpose.msra.mxu0 0.0
    %3262 = vmatprep.subr.mxu0 0.0
    %3263 = vmatpush2.xpose.msra.mxu0 0.0
    %3264 = vmatprep.subr.mxu0 0.0
    %3265 = vmatpush2.xpose.msra.mxu0 0.0
    %3266 = vmatprep.subr.mxu0 0.0
    %3267 = vmatpush2.xpose.msra.mxu0 0.0
    %3268 = vmatprep.subr.mxu0 0.0
    %3269 = vmatpush2.xpose.msra.mxu0 0.0
    %3270 = vmatprep.subr.mxu0 0.0
    %3271 = vmatpush2.xpose.msra.mxu0 0.0
    %3272 = vmatprep.subr.mxu0 0.0
    %3273 = vmatpush2.xpose.msra.mxu0 0.0
    %3274 = vmatprep.subr.mxu0 0.0
    %3275 = vmatpush2.xpose.msra.mxu0 0.0
    %3276 = vmatprep.subr.mxu0 0.0
    %3277 = vmatpush2.xpose.msra.mxu0 0.0
    %3278 = vmatprep.subr.mxu0 0.0
    %3279 = vmatpush2.xpose.msra.mxu0 0.0
    %3280 = vmatprep.subr.mxu0 0.0
    %3281 = vmatpush2.xpose.msra.mxu0 0.0
    %3282 = vmatprep.subr.mxu0 0.0
    %3283 = vmatpush2.xpose.msra.mxu0 0.0
    %3284 = vmatprep.subr.mxu0 0.0
    %3285 = vmatpush2.xpose.msra.mxu0 0.0
    %3286 = vmatprep.subr.mxu0 0.0
    %3287 = vmatpush2.xpose.msra.mxu0 0.0
    %3288 = vmatprep.subr.mxu0 0.0
    %3289 = vmatpush2.xpose.msra.mxu0 0.0
    %3290 = vmatprep.mubr.f32.mxu0 %v364
    %3291 = vmatmul.mubr.f32.gmra.mxu0 %v356
    %v3292 = vpop.f32.mrf.mxu0
    %v3293 = vadd.f32 %v3223, %v3292
    %v3294 = vpop.f32.mrf.mxu0
    %3295 = vdwg.mxu0
    %3296 = vmatprep.subr.mxu0 0.0
    %3297 = vmatpush1.xpose.msra.mxu0 0.0
    %3298 = vmatprep.subr.mxu0 0.0
    %3299 = vmatpush1.xpose.msra.mxu0 0.0
    %3300 = vmatprep.subr.mxu0 0.0
    %3301 = vmatpush1.xpose.msra.mxu0 0.0
    %3302 = vmatprep.subr.mxu0 0.0
    %3303 = vmatpush1.xpose.msra.mxu0 0.0
    %3304 = vmatprep.subr.mxu0 0.0
    %3305 = vmatpush1.xpose.msra.mxu0 0.0
    %3306 = vmatprep.subr.mxu0 0.0
    %3307 = vmatpush1.xpose.msra.mxu0 0.0
    %3308 = vmatprep.subr.mxu0 0.0
    %3309 = vmatpush1.xpose.msra.mxu0 0.0
    %3310 = vmatprep.subr.mxu0 0.0
    %3311 = vmatpush1.xpose.msra.mxu0 0.0
    %3312 = vmatprep.subr.mxu0 0.0
    %3313 = vmatpush1.xpose.msra.mxu0 0.0
    %3314 = vmatprep.subr.mxu0 0.0
    %3315 = vmatpush1.xpose.msra.mxu0 0.0
    %3316 = vmatprep.subr.mxu0 0.0
    %3317 = vmatpush1.xpose.msra.mxu0 0.0
    %3318 = vmatprep.subr.mxu0 0.0
    %3319 = vmatpush1.xpose.msra.mxu0 0.0
    %3320 = vmatprep.subr.mxu0 0.0
    %3321 = vmatpush1.xpose.msra.mxu0 0.0
    %3322 = vmatprep.subr.mxu0 0.0
    %3323 = vmatpush1.xpose.msra.mxu0 0.0
    %3324 = vmatprep.subr.mxu0 0.0
    %3325 = vmatpush1.xpose.msra.mxu0 0.0
    %3326 = vmatprep.subr.mxu0 %v893
    %3327 = vmatpush1.xpose.msra.mxu0 %v891
    %3328 = vmatprep.subr.mxu0 0.0
    %3329 = vmatpush2.xpose.msra.mxu0 0.0
    %3330 = vmatprep.subr.mxu0 0.0
    %3331 = vmatpush2.xpose.msra.mxu0 0.0
    %3332 = vmatprep.subr.mxu0 0.0
    %3333 = vmatpush2.xpose.msra.mxu0 0.0
    %3334 = vmatprep.subr.mxu0 0.0
    %3335 = vmatpush2.xpose.msra.mxu0 0.0
    %3336 = vmatprep.subr.mxu0 0.0
    %3337 = vmatpush2.xpose.msra.mxu0 0.0
    %3338 = vmatprep.subr.mxu0 0.0
    %3339 = vmatpush2.xpose.msra.mxu0 0.0
    %3340 = vmatprep.subr.mxu0 0.0
    %3341 = vmatpush2.xpose.msra.mxu0 0.0
    %3342 = vmatprep.subr.mxu0 0.0
    %3343 = vmatpush2.xpose.msra.mxu0 0.0
    %3344 = vmatprep.subr.mxu0 0.0
    %3345 = vmatpush2.xpose.msra.mxu0 0.0
    %3346 = vmatprep.subr.mxu0 0.0
    %3347 = vmatpush2.xpose.msra.mxu0 0.0
    %3348 = vmatprep.subr.mxu0 0.0
    %3349 = vmatpush2.xpose.msra.mxu0 0.0
    %3350 = vmatprep.subr.mxu0 0.0
    %3351 = vmatpush2.xpose.msra.mxu0 0.0
    %3352 = vmatprep.subr.mxu0 0.0
    %3353 = vmatpush2.xpose.msra.mxu0 0.0
    %3354 = vmatprep.subr.mxu0 0.0
    %3355 = vmatpush2.xpose.msra.mxu0 0.0
    %3356 = vmatprep.subr.mxu0 0.0
    %3357 = vmatpush2.xpose.msra.mxu0 0.0
    %3358 = vmatprep.subr.mxu0 0.0
    %3359 = vmatpush2.xpose.msra.mxu0 0.0
    %3360 = vmatprep.mubr.f32.mxu0 %v365
    %3361 = vmatmul.mubr.f32.gmra.mxu0 %v363
    %v3362 = vpop.f32.mrf.mxu0
    %v3363 = vadd.f32 %v3293, %v3362
    %v3364 = vpop.f32.mrf.mxu0
    %3365 = vdwg.mxu0
    %3366 = vmatprep.subr.mxu0 0.0
    %3367 = vmatpush1.xpose.msra.mxu0 0.0
    %3368 = vmatprep.subr.mxu0 0.0
    %3369 = vmatpush1.xpose.msra.mxu0 0.0
    %3370 = vmatprep.subr.mxu0 0.0
    %3371 = vmatpush1.xpose.msra.mxu0 0.0
    %3372 = vmatprep.subr.mxu0 0.0
    %3373 = vmatpush1.xpose.msra.mxu0 0.0
    %3374 = vmatprep.subr.mxu0 0.0
    %3375 = vmatpush1.xpose.msra.mxu0 0.0
    %3376 = vmatprep.subr.mxu0 0.0
    %3377 = vmatpush1.xpose.msra.mxu0 0.0
    %3378 = vmatprep.subr.mxu0 0.0
    %3379 = vmatpush1.xpose.msra.mxu0 0.0
    %3380 = vmatprep.subr.mxu0 0.0
    %3381 = vmatpush1.xpose.msra.mxu0 0.0
    %3382 = vmatprep.subr.mxu0 0.0
    %3383 = vmatpush1.xpose.msra.mxu0 0.0
    %3384 = vmatprep.subr.mxu0 0.0
    %3385 = vmatpush1.xpose.msra.mxu0 0.0
    %3386 = vmatprep.subr.mxu0 0.0
    %3387 = vmatpush1.xpose.msra.mxu0 0.0
    %3388 = vmatprep.subr.mxu0 0.0
    %3389 = vmatpush1.xpose.msra.mxu0 0.0
    %3390 = vmatprep.subr.mxu0 0.0
    %3391 = vmatpush1.xpose.msra.mxu0 0.0
    %3392 = vmatprep.subr.mxu0 0.0
    %3393 = vmatpush1.xpose.msra.mxu0 0.0
    %3394 = vmatprep.subr.mxu0 0.0
    %3395 = vmatpush1.xpose.msra.mxu0 0.0
    %3396 = vmatprep.subr.mxu0 %v909
    %3397 = vmatpush1.xpose.msra.mxu0 %v901
    %3398 = vmatprep.subr.mxu0 0.0
    %3399 = vmatpush2.xpose.msra.mxu0 0.0
    %3400 = vmatprep.subr.mxu0 0.0
    %3401 = vmatpush2.xpose.msra.mxu0 0.0
    %3402 = vmatprep.subr.mxu0 0.0
    %3403 = vmatpush2.xpose.msra.mxu0 0.0
    %3404 = vmatprep.subr.mxu0 0.0
    %3405 = vmatpush2.xpose.msra.mxu0 0.0
    %3406 = vmatprep.subr.mxu0 0.0
    %3407 = vmatpush2.xpose.msra.mxu0 0.0
    %3408 = vmatprep.subr.mxu0 0.0
    %3409 = vmatpush2.xpose.msra.mxu0 0.0
    %3410 = vmatprep.subr.mxu0 0.0
    %3411 = vmatpush2.xpose.msra.mxu0 0.0
    %3412 = vmatprep.subr.mxu0 0.0
    %3413 = vmatpush2.xpose.msra.mxu0 0.0
    %3414 = vmatprep.subr.mxu0 0.0
    %3415 = vmatpush2.xpose.msra.mxu0 0.0
    %3416 = vmatprep.subr.mxu0 0.0
    %3417 = vmatpush2.xpose.msra.mxu0 0.0
    %3418 = vmatprep.subr.mxu0 0.0
    %3419 = vmatpush2.xpose.msra.mxu0 0.0
    %3420 = vmatprep.subr.mxu0 0.0
    %3421 = vmatpush2.xpose.msra.mxu0 0.0
    %3422 = vmatprep.subr.mxu0 0.0
    %3423 = vmatpush2.xpose.msra.mxu0 0.0
    %3424 = vmatprep.subr.mxu0 0.0
    %3425 = vmatpush2.xpose.msra.mxu0 0.0
    %3426 = vmatprep.subr.mxu0 0.0
    %3427 = vmatpush2.xpose.msra.mxu0 0.0
    %3428 = vmatprep.subr.mxu0 0.0
    %3429 = vmatpush2.xpose.msra.mxu0 0.0
    %3430 = vmatprep.mubr.f32.mxu0 %v381
    %3431 = vmatmul.mubr.f32.gmra.mxu0 %v373
    %v3432 = vpop.f32.mrf.mxu0
    %v3433 = vadd.f32 %v3363, %v3432
    %v3434 = vpop.f32.mrf.mxu0
    %3435 = vdwg.mxu0
    %3436 = vmatprep.subr.mxu0 0.0
    %3437 = vmatpush1.xpose.msra.mxu0 0.0
    %3438 = vmatprep.subr.mxu0 0.0
    %3439 = vmatpush1.xpose.msra.mxu0 0.0
    %3440 = vmatprep.subr.mxu0 0.0
    %3441 = vmatpush1.xpose.msra.mxu0 0.0
    %3442 = vmatprep.subr.mxu0 0.0
    %3443 = vmatpush1.xpose.msra.mxu0 0.0
    %3444 = vmatprep.subr.mxu0 0.0
    %3445 = vmatpush1.xpose.msra.mxu0 0.0
    %3446 = vmatprep.subr.mxu0 0.0
    %3447 = vmatpush1.xpose.msra.mxu0 0.0
    %3448 = vmatprep.subr.mxu0 0.0
    %3449 = vmatpush1.xpose.msra.mxu0 0.0
    %3450 = vmatprep.subr.mxu0 0.0
    %3451 = vmatpush1.xpose.msra.mxu0 0.0
    %3452 = vmatprep.subr.mxu0 0.0
    %3453 = vmatpush1.xpose.msra.mxu0 0.0
    %3454 = vmatprep.subr.mxu0 0.0
    %3455 = vmatpush1.xpose.msra.mxu0 0.0
    %3456 = vmatprep.subr.mxu0 0.0
    %3457 = vmatpush1.xpose.msra.mxu0 0.0
    %3458 = vmatprep.subr.mxu0 0.0
    %3459 = vmatpush1.xpose.msra.mxu0 0.0
    %3460 = vmatprep.subr.mxu0 0.0
    %3461 = vmatpush1.xpose.msra.mxu0 0.0
    %3462 = vmatprep.subr.mxu0 0.0
    %3463 = vmatpush1.xpose.msra.mxu0 0.0
    %3464 = vmatprep.subr.mxu0 0.0
    %3465 = vmatpush1.xpose.msra.mxu0 0.0
    %3466 = vmatprep.subr.mxu0 %v910
    %3467 = vmatpush1.xpose.msra.mxu0 %v908
    %3468 = vmatprep.subr.mxu0 0.0
    %3469 = vmatpush2.xpose.msra.mxu0 0.0
    %3470 = vmatprep.subr.mxu0 0.0
    %3471 = vmatpush2.xpose.msra.mxu0 0.0
    %3472 = vmatprep.subr.mxu0 0.0
    %3473 = vmatpush2.xpose.msra.mxu0 0.0
    %3474 = vmatprep.subr.mxu0 0.0
    %3475 = vmatpush2.xpose.msra.mxu0 0.0
    %3476 = vmatprep.subr.mxu0 0.0
    %3477 = vmatpush2.xpose.msra.mxu0 0.0
    %3478 = vmatprep.subr.mxu0 0.0
    %3479 = vmatpush2.xpose.msra.mxu0 0.0
    %3480 = vmatprep.subr.mxu0 0.0
    %3481 = vmatpush2.xpose.msra.mxu0 0.0
    %3482 = vmatprep.subr.mxu0 0.0
    %3483 = vmatpush2.xpose.msra.mxu0 0.0
    %3484 = vmatprep.subr.mxu0 0.0
    %3485 = vmatpush2.xpose.msra.mxu0 0.0
    %3486 = vmatprep.subr.mxu0 0.0
    %3487 = vmatpush2.xpose.msra.mxu0 0.0
    %3488 = vmatprep.subr.mxu0 0.0
    %3489 = vmatpush2.xpose.msra.mxu0 0.0
    %3490 = vmatprep.subr.mxu0 0.0
    %3491 = vmatpush2.xpose.msra.mxu0 0.0
    %3492 = vmatprep.subr.mxu0 0.0
    %3493 = vmatpush2.xpose.msra.mxu0 0.0
    %3494 = vmatprep.subr.mxu0 0.0
    %3495 = vmatpush2.xpose.msra.mxu0 0.0
    %3496 = vmatprep.subr.mxu0 0.0
    %3497 = vmatpush2.xpose.msra.mxu0 0.0
    %3498 = vmatprep.subr.mxu0 0.0
    %3499 = vmatpush2.xpose.msra.mxu0 0.0
    %3500 = vmatprep.mubr.f32.mxu0 %v382
    %3501 = vmatmul.mubr.f32.gmra.mxu0 %v380
    %v3502 = vpop.f32.mrf.mxu0
    %v3503 = vadd.f32 %v3433, %v3502
    %v3504 = vpop.f32.mrf.mxu0
    %3505 = vdwg.mxu0
    %3506 = vmatprep.subr.mxu0 0.0
    %3507 = vmatpush1.xpose.msra.mxu0 0.0
    %3508 = vmatprep.subr.mxu0 0.0
    %3509 = vmatpush1.xpose.msra.mxu0 0.0
    %3510 = vmatprep.subr.mxu0 0.0
    %3511 = vmatpush1.xpose.msra.mxu0 0.0
    %3512 = vmatprep.subr.mxu0 0.0
    %3513 = vmatpush1.xpose.msra.mxu0 0.0
    %3514 = vmatprep.subr.mxu0 0.0
    %3515 = vmatpush1.xpose.msra.mxu0 0.0
    %3516 = vmatprep.subr.mxu0 0.0
    %3517 = vmatpush1.xpose.msra.mxu0 0.0
    %3518 = vmatprep.subr.mxu0 0.0
    %3519 = vmatpush1.xpose.msra.mxu0 0.0
    %3520 = vmatprep.subr.mxu0 0.0
    %3521 = vmatpush1.xpose.msra.mxu0 0.0
    %3522 = vmatprep.subr.mxu0 0.0
    %3523 = vmatpush1.xpose.msra.mxu0 0.0
    %3524 = vmatprep.subr.mxu0 0.0
    %3525 = vmatpush1.xpose.msra.mxu0 0.0
    %3526 = vmatprep.subr.mxu0 0.0
    %3527 = vmatpush1.xpose.msra.mxu0 0.0
    %3528 = vmatprep.subr.mxu0 0.0
    %3529 = vmatpush1.xpose.msra.mxu0 0.0
    %3530 = vmatprep.subr.mxu0 0.0
    %3531 = vmatpush1.xpose.msra.mxu0 0.0
    %3532 = vmatprep.subr.mxu0 0.0
    %3533 = vmatpush1.xpose.msra.mxu0 0.0
    %3534 = vmatprep.subr.mxu0 0.0
    %3535 = vmatpush1.xpose.msra.mxu0 0.0
    %3536 = vmatprep.subr.mxu0 %v926
    %3537 = vmatpush1.xpose.msra.mxu0 %v918
    %3538 = vmatprep.subr.mxu0 0.0
    %3539 = vmatpush2.xpose.msra.mxu0 0.0
    %3540 = vmatprep.subr.mxu0 0.0
    %3541 = vmatpush2.xpose.msra.mxu0 0.0
    %3542 = vmatprep.subr.mxu0 0.0
    %3543 = vmatpush2.xpose.msra.mxu0 0.0
    %3544 = vmatprep.subr.mxu0 0.0
    %3545 = vmatpush2.xpose.msra.mxu0 0.0
    %3546 = vmatprep.subr.mxu0 0.0
    %3547 = vmatpush2.xpose.msra.mxu0 0.0
    %3548 = vmatprep.subr.mxu0 0.0
    %3549 = vmatpush2.xpose.msra.mxu0 0.0
    %3550 = vmatprep.subr.mxu0 0.0
    %3551 = vmatpush2.xpose.msra.mxu0 0.0
    %3552 = vmatprep.subr.mxu0 0.0
    %3553 = vmatpush2.xpose.msra.mxu0 0.0
    %3554 = vmatprep.subr.mxu0 0.0
    %3555 = vmatpush2.xpose.msra.mxu0 0.0
    %3556 = vmatprep.subr.mxu0 0.0
    %3557 = vmatpush2.xpose.msra.mxu0 0.0
    %3558 = vmatprep.subr.mxu0 0.0
    %3559 = vmatpush2.xpose.msra.mxu0 0.0
    %3560 = vmatprep.subr.mxu0 0.0
    %3561 = vmatpush2.xpose.msra.mxu0 0.0
    %3562 = vmatprep.subr.mxu0 0.0
    %3563 = vmatpush2.xpose.msra.mxu0 0.0
    %3564 = vmatprep.subr.mxu0 0.0
    %3565 = vmatpush2.xpose.msra.mxu0 0.0
    %3566 = vmatprep.subr.mxu0 0.0
    %3567 = vmatpush2.xpose.msra.mxu0 0.0
    %3568 = vmatprep.subr.mxu0 0.0
    %3569 = vmatpush2.xpose.msra.mxu0 0.0
    %3570 = vmatprep.mubr.f32.mxu0 %v398
    %3571 = vmatmul.mubr.f32.gmra.mxu0 %v390
    %v3572 = vpop.f32.mrf.mxu0
    %v3573 = vadd.f32 %v3503, %v3572
    %v3574 = vpop.f32.mrf.mxu0
    %3575 = vdwg.mxu0
    %3576 = vmatprep.subr.mxu0 0.0
    %3577 = vmatpush1.xpose.msra.mxu0 0.0
    %3578 = vmatprep.subr.mxu0 0.0
    %3579 = vmatpush1.xpose.msra.mxu0 0.0
    %3580 = vmatprep.subr.mxu0 0.0
    %3581 = vmatpush1.xpose.msra.mxu0 0.0
    %3582 = vmatprep.subr.mxu0 0.0
    %3583 = vmatpush1.xpose.msra.mxu0 0.0
    %3584 = vmatprep.subr.mxu0 0.0
    %3585 = vmatpush1.xpose.msra.mxu0 0.0
    %3586 = vmatprep.subr.mxu0 0.0
    %3587 = vmatpush1.xpose.msra.mxu0 0.0
    %3588 = vmatprep.subr.mxu0 0.0
    %3589 = vmatpush1.xpose.msra.mxu0 0.0
    %3590 = vmatprep.subr.mxu0 0.0
    %3591 = vmatpush1.xpose.msra.mxu0 0.0
    %3592 = vmatprep.subr.mxu0 0.0
    %3593 = vmatpush1.xpose.msra.mxu0 0.0
    %3594 = vmatprep.subr.mxu0 0.0
    %3595 = vmatpush1.xpose.msra.mxu0 0.0
    %3596 = vmatprep.subr.mxu0 0.0
    %3597 = vmatpush1.xpose.msra.mxu0 0.0
    %3598 = vmatprep.subr.mxu0 0.0
    %3599 = vmatpush1.xpose.msra.mxu0 0.0
    %3600 = vmatprep.subr.mxu0 0.0
    %3601 = vmatpush1.xpose.msra.mxu0 0.0
    %3602 = vmatprep.subr.mxu0 0.0
    %3603 = vmatpush1.xpose.msra.mxu0 0.0
    %3604 = vmatprep.subr.mxu0 0.0
    %3605 = vmatpush1.xpose.msra.mxu0 0.0
    %3606 = vmatprep.subr.mxu0 %v927
    %3607 = vmatpush1.xpose.msra.mxu0 %v925
    %3608 = vmatprep.subr.mxu0 0.0
    %3609 = vmatpush2.xpose.msra.mxu0 0.0
    %3610 = vmatprep.subr.mxu0 0.0
    %3611 = vmatpush2.xpose.msra.mxu0 0.0
    %3612 = vmatprep.subr.mxu0 0.0
    %3613 = vmatpush2.xpose.msra.mxu0 0.0
    %3614 = vmatprep.subr.mxu0 0.0
    %3615 = vmatpush2.xpose.msra.mxu0 0.0
    %3616 = vmatprep.subr.mxu0 0.0
    %3617 = vmatpush2.xpose.msra.mxu0 0.0
    %3618 = vmatprep.subr.mxu0 0.0
    %3619 = vmatpush2.xpose.msra.mxu0 0.0
    %3620 = vmatprep.subr.mxu0 0.0
    %3621 = vmatpush2.xpose.msra.mxu0 0.0
    %3622 = vmatprep.subr.mxu0 0.0
    %3623 = vmatpush2.xpose.msra.mxu0 0.0
    %3624 = vmatprep.subr.mxu0 0.0
    %3625 = vmatpush2.xpose.msra.mxu0 0.0
    %3626 = vmatprep.subr.mxu0 0.0
    %3627 = vmatpush2.xpose.msra.mxu0 0.0
    %3628 = vmatprep.subr.mxu0 0.0
    %3629 = vmatpush2.xpose.msra.mxu0 0.0
    %3630 = vmatprep.subr.mxu0 0.0
    %3631 = vmatpush2.xpose.msra.mxu0 0.0
    %3632 = vmatprep.subr.mxu0 0.0
    %3633 = vmatpush2.xpose.msra.mxu0 0.0
    %3634 = vmatprep.subr.mxu0 0.0
    %3635 = vmatpush2.xpose.msra.mxu0 0.0
    %3636 = vmatprep.subr.mxu0 0.0
    %3637 = vmatpush2.xpose.msra.mxu0 0.0
    %3638 = vmatprep.subr.mxu0 0.0
    %3639 = vmatpush2.xpose.msra.mxu0 0.0
    %3640 = vmatprep.mubr.f32.mxu0 %v399
    %3641 = vmatmul.mubr.f32.gmra.mxu0 %v397
    %v3642 = vpop.f32.mrf.mxu0
    %v3643 = vadd.f32 %v3573, %v3642
    %v3644 = vpop.f32.mrf.mxu0
    %3645 = vdwg.mxu0
    %3646 = vmatprep.subr.mxu0 0.0
    %3647 = vmatpush1.xpose.msra.mxu0 0.0
    %3648 = vmatprep.subr.mxu0 0.0
    %3649 = vmatpush1.xpose.msra.mxu0 0.0
    %3650 = vmatprep.subr.mxu0 0.0
    %3651 = vmatpush1.xpose.msra.mxu0 0.0
    %3652 = vmatprep.subr.mxu0 0.0
    %3653 = vmatpush1.xpose.msra.mxu0 0.0
    %3654 = vmatprep.subr.mxu0 0.0
    %3655 = vmatpush1.xpose.msra.mxu0 0.0
    %3656 = vmatprep.subr.mxu0 0.0
    %3657 = vmatpush1.xpose.msra.mxu0 0.0
    %3658 = vmatprep.subr.mxu0 0.0
    %3659 = vmatpush1.xpose.msra.mxu0 0.0
    %3660 = vmatprep.subr.mxu0 0.0
    %3661 = vmatpush1.xpose.msra.mxu0 0.0
    %3662 = vmatprep.subr.mxu0 0.0
    %3663 = vmatpush1.xpose.msra.mxu0 0.0
    %3664 = vmatprep.subr.mxu0 0.0
    %3665 = vmatpush1.xpose.msra.mxu0 0.0
    %3666 = vmatprep.subr.mxu0 0.0
    %3667 = vmatpush1.xpose.msra.mxu0 0.0
    %3668 = vmatprep.subr.mxu0 0.0
    %3669 = vmatpush1.xpose.msra.mxu0 0.0
    %3670 = vmatprep.subr.mxu0 0.0
    %3671 = vmatpush1.xpose.msra.mxu0 0.0
    %3672 = vmatprep.subr.mxu0 0.0
    %3673 = vmatpush1.xpose.msra.mxu0 0.0
    %3674 = vmatprep.subr.mxu0 0.0
    %3675 = vmatpush1.xpose.msra.mxu0 0.0
    %3676 = vmatprep.subr.mxu0 %v943
    %3677 = vmatpush1.xpose.msra.mxu0 %v935
    %3678 = vmatprep.subr.mxu0 0.0
    %3679 = vmatpush2.xpose.msra.mxu0 0.0
    %3680 = vmatprep.subr.mxu0 0.0
    %3681 = vmatpush2.xpose.msra.mxu0 0.0
    %3682 = vmatprep.subr.mxu0 0.0
    %3683 = vmatpush2.xpose.msra.mxu0 0.0
    %3684 = vmatprep.subr.mxu0 0.0
    %3685 = vmatpush2.xpose.msra.mxu0 0.0
    %3686 = vmatprep.subr.mxu0 0.0
    %3687 = vmatpush2.xpose.msra.mxu0 0.0
    %3688 = vmatprep.subr.mxu0 0.0
    %3689 = vmatpush2.xpose.msra.mxu0 0.0
    %3690 = vmatprep.subr.mxu0 0.0
    %3691 = vmatpush2.xpose.msra.mxu0 0.0
    %3692 = vmatprep.subr.mxu0 0.0
    %3693 = vmatpush2.xpose.msra.mxu0 0.0
    %3694 = vmatprep.subr.mxu0 0.0
    %3695 = vmatpush2.xpose.msra.mxu0 0.0
    %3696 = vmatprep.subr.mxu0 0.0
    %3697 = vmatpush2.xpose.msra.mxu0 0.0
    %3698 = vmatprep.subr.mxu0 0.0
    %3699 = vmatpush2.xpose.msra.mxu0 0.0
    %3700 = vmatprep.subr.mxu0 0.0
    %3701 = vmatpush2.xpose.msra.mxu0 0.0
    %3702 = vmatprep.subr.mxu0 0.0
    %3703 = vmatpush2.xpose.msra.mxu0 0.0
    %3704 = vmatprep.subr.mxu0 0.0
    %3705 = vmatpush2.xpose.msra.mxu0 0.0
    %3706 = vmatprep.subr.mxu0 0.0
    %3707 = vmatpush2.xpose.msra.mxu0 0.0
    %3708 = vmatprep.subr.mxu0 0.0
    %3709 = vmatpush2.xpose.msra.mxu0 0.0
    %3710 = vmatprep.mubr.f32.mxu0 %v415
    %3711 = vmatmul.mubr.f32.gmra.mxu0 %v407
    %v3712 = vpop.f32.mrf.mxu0
    %v3713 = vadd.f32 %v3643, %v3712
    %v3714 = vpop.f32.mrf.mxu0
    %3715 = vdwg.mxu0
    %3716 = vmatprep.subr.mxu0 0.0
    %3717 = vmatpush1.xpose.msra.mxu0 0.0
    %3718 = vmatprep.subr.mxu0 0.0
    %3719 = vmatpush1.xpose.msra.mxu0 0.0
    %3720 = vmatprep.subr.mxu0 0.0
    %3721 = vmatpush1.xpose.msra.mxu0 0.0
    %3722 = vmatprep.subr.mxu0 0.0
    %3723 = vmatpush1.xpose.msra.mxu0 0.0
    %3724 = vmatprep.subr.mxu0 0.0
    %3725 = vmatpush1.xpose.msra.mxu0 0.0
    %3726 = vmatprep.subr.mxu0 0.0
    %3727 = vmatpush1.xpose.msra.mxu0 0.0
    %3728 = vmatprep.subr.mxu0 0.0
    %3729 = vmatpush1.xpose.msra.mxu0 0.0
    %3730 = vmatprep.subr.mxu0 0.0
    %3731 = vmatpush1.xpose.msra.mxu0 0.0
    %3732 = vmatprep.subr.mxu0 0.0
    %3733 = vmatpush1.xpose.msra.mxu0 0.0
    %3734 = vmatprep.subr.mxu0 0.0
    %3735 = vmatpush1.xpose.msra.mxu0 0.0
    %3736 = vmatprep.subr.mxu0 0.0
    %3737 = vmatpush1.xpose.msra.mxu0 0.0
    %3738 = vmatprep.subr.mxu0 0.0
    %3739 = vmatpush1.xpose.msra.mxu0 0.0
    %3740 = vmatprep.subr.mxu0 0.0
    %3741 = vmatpush1.xpose.msra.mxu0 0.0
    %3742 = vmatprep.subr.mxu0 0.0
    %3743 = vmatpush1.xpose.msra.mxu0 0.0
    %3744 = vmatprep.subr.mxu0 0.0
    %3745 = vmatpush1.xpose.msra.mxu0 0.0
    %3746 = vmatprep.subr.mxu0 %v944
    %3747 = vmatpush1.xpose.msra.mxu0 %v942
    %3748 = vmatprep.subr.mxu0 0.0
    %3749 = vmatpush2.xpose.msra.mxu0 0.0
    %3750 = vmatprep.subr.mxu0 0.0
    %3751 = vmatpush2.xpose.msra.mxu0 0.0
    %3752 = vmatprep.subr.mxu0 0.0
    %3753 = vmatpush2.xpose.msra.mxu0 0.0
    %3754 = vmatprep.subr.mxu0 0.0
    %3755 = vmatpush2.xpose.msra.mxu0 0.0
    %3756 = vmatprep.subr.mxu0 0.0
    %3757 = vmatpush2.xpose.msra.mxu0 0.0
    %3758 = vmatprep.subr.mxu0 0.0
    %3759 = vmatpush2.xpose.msra.mxu0 0.0
    %3760 = vmatprep.subr.mxu0 0.0
    %3761 = vmatpush2.xpose.msra.mxu0 0.0
    %3762 = vmatprep.subr.mxu0 0.0
    %3763 = vmatpush2.xpose.msra.mxu0 0.0
    %3764 = vmatprep.subr.mxu0 0.0
    %3765 = vmatpush2.xpose.msra.mxu0 0.0
    %3766 = vmatprep.subr.mxu0 0.0
    %3767 = vmatpush2.xpose.msra.mxu0 0.0
    %3768 = vmatprep.subr.mxu0 0.0
    %3769 = vmatpush2.xpose.msra.mxu0 0.0
    %3770 = vmatprep.subr.mxu0 0.0
    %3771 = vmatpush2.xpose.msra.mxu0 0.0
    %3772 = vmatprep.subr.mxu0 0.0
    %3773 = vmatpush2.xpose.msra.mxu0 0.0
    %3774 = vmatprep.subr.mxu0 0.0
    %3775 = vmatpush2.xpose.msra.mxu0 0.0
    %3776 = vmatprep.subr.mxu0 0.0
    %3777 = vmatpush2.xpose.msra.mxu0 0.0
    %3778 = vmatprep.subr.mxu0 0.0
    %3779 = vmatpush2.xpose.msra.mxu0 0.0
    %3780 = vmatprep.mubr.f32.mxu0 %v416
    %3781 = vmatmul.mubr.f32.gmra.mxu0 %v414
    %v3782 = vpop.f32.mrf.mxu0
    %v3783 = vadd.f32 %v3713, %v3782
    %v3784 = vpop.f32.mrf.mxu0
    %3785 = vdwg.mxu0
    %3786 = vmatprep.subr.mxu0 0.0
    %3787 = vmatpush1.xpose.msra.mxu0 0.0
    %3788 = vmatprep.subr.mxu0 0.0
    %3789 = vmatpush1.xpose.msra.mxu0 0.0
    %3790 = vmatprep.subr.mxu0 0.0
    %3791 = vmatpush1.xpose.msra.mxu0 0.0
    %3792 = vmatprep.subr.mxu0 0.0
    %3793 = vmatpush1.xpose.msra.mxu0 0.0
    %3794 = vmatprep.subr.mxu0 0.0
    %3795 = vmatpush1.xpose.msra.mxu0 0.0
    %3796 = vmatprep.subr.mxu0 0.0
    %3797 = vmatpush1.xpose.msra.mxu0 0.0
    %3798 = vmatprep.subr.mxu0 0.0
    %3799 = vmatpush1.xpose.msra.mxu0 0.0
    %3800 = vmatprep.subr.mxu0 0.0
    %3801 = vmatpush1.xpose.msra.mxu0 0.0
    %3802 = vmatprep.subr.mxu0 0.0
    %3803 = vmatpush1.xpose.msra.mxu0 0.0
    %3804 = vmatprep.subr.mxu0 0.0
    %3805 = vmatpush1.xpose.msra.mxu0 0.0
    %3806 = vmatprep.subr.mxu0 0.0
    %3807 = vmatpush1.xpose.msra.mxu0 0.0
    %3808 = vmatprep.subr.mxu0 0.0
    %3809 = vmatpush1.xpose.msra.mxu0 0.0
    %3810 = vmatprep.subr.mxu0 0.0
    %3811 = vmatpush1.xpose.msra.mxu0 0.0
    %3812 = vmatprep.subr.mxu0 0.0
    %3813 = vmatpush1.xpose.msra.mxu0 0.0
    %3814 = vmatprep.subr.mxu0 0.0
    %3815 = vmatpush1.xpose.msra.mxu0 0.0
    %3816 = vmatprep.subr.mxu0 %v960
    %3817 = vmatpush1.xpose.msra.mxu0 %v952
    %3818 = vmatprep.subr.mxu0 0.0
    %3819 = vmatpush2.xpose.msra.mxu0 0.0
    %3820 = vmatprep.subr.mxu0 0.0
    %3821 = vmatpush2.xpose.msra.mxu0 0.0
    %3822 = vmatprep.subr.mxu0 0.0
    %3823 = vmatpush2.xpose.msra.mxu0 0.0
    %3824 = vmatprep.subr.mxu0 0.0
    %3825 = vmatpush2.xpose.msra.mxu0 0.0
    %3826 = vmatprep.subr.mxu0 0.0
    %3827 = vmatpush2.xpose.msra.mxu0 0.0
    %3828 = vmatprep.subr.mxu0 0.0
    %3829 = vmatpush2.xpose.msra.mxu0 0.0
    %3830 = vmatprep.subr.mxu0 0.0
    %3831 = vmatpush2.xpose.msra.mxu0 0.0
    %3832 = vmatprep.subr.mxu0 0.0
    %3833 = vmatpush2.xpose.msra.mxu0 0.0
    %3834 = vmatprep.subr.mxu0 0.0
    %3835 = vmatpush2.xpose.msra.mxu0 0.0
    %3836 = vmatprep.subr.mxu0 0.0
    %3837 = vmatpush2.xpose.msra.mxu0 0.0
    %3838 = vmatprep.subr.mxu0 0.0
    %3839 = vmatpush2.xpose.msra.mxu0 0.0
    %3840 = vmatprep.subr.mxu0 0.0
    %3841 = vmatpush2.xpose.msra.mxu0 0.0
    %3842 = vmatprep.subr.mxu0 0.0
    %3843 = vmatpush2.xpose.msra.mxu0 0.0
    %3844 = vmatprep.subr.mxu0 0.0
    %3845 = vmatpush2.xpose.msra.mxu0 0.0
    %3846 = vmatprep.subr.mxu0 0.0
    %3847 = vmatpush2.xpose.msra.mxu0 0.0
    %3848 = vmatprep.subr.mxu0 0.0
    %3849 = vmatpush2.xpose.msra.mxu0 0.0
    %3850 = vmatprep.mubr.f32.mxu0 %v432
    %3851 = vmatmul.mubr.f32.gmra.mxu0 %v424
    %v3852 = vpop.f32.mrf.mxu0
    %v3853 = vadd.f32 %v3783, %v3852
    %v3854 = vpop.f32.mrf.mxu0
    %3855 = vdwg.mxu0
    %3856 = vmatprep.subr.mxu0 0.0
    %3857 = vmatpush1.xpose.msra.mxu0 0.0
    %3858 = vmatprep.subr.mxu0 0.0
    %3859 = vmatpush1.xpose.msra.mxu0 0.0
    %3860 = vmatprep.subr.mxu0 0.0
    %3861 = vmatpush1.xpose.msra.mxu0 0.0
    %3862 = vmatprep.subr.mxu0 0.0
    %3863 = vmatpush1.xpose.msra.mxu0 0.0
    %3864 = vmatprep.subr.mxu0 0.0
    %3865 = vmatpush1.xpose.msra.mxu0 0.0
    %3866 = vmatprep.subr.mxu0 0.0
    %3867 = vmatpush1.xpose.msra.mxu0 0.0
    %3868 = vmatprep.subr.mxu0 0.0
    %3869 = vmatpush1.xpose.msra.mxu0 0.0
    %3870 = vmatprep.subr.mxu0 0.0
    %3871 = vmatpush1.xpose.msra.mxu0 0.0
    %3872 = vmatprep.subr.mxu0 0.0
    %3873 = vmatpush1.xpose.msra.mxu0 0.0
    %3874 = vmatprep.subr.mxu0 0.0
    %3875 = vmatpush1.xpose.msra.mxu0 0.0
    %3876 = vmatprep.subr.mxu0 0.0
    %3877 = vmatpush1.xpose.msra.mxu0 0.0
    %3878 = vmatprep.subr.mxu0 0.0
    %3879 = vmatpush1.xpose.msra.mxu0 0.0
    %3880 = vmatprep.subr.mxu0 0.0
    %3881 = vmatpush1.xpose.msra.mxu0 0.0
    %3882 = vmatprep.subr.mxu0 0.0
    %3883 = vmatpush1.xpose.msra.mxu0 0.0
    %3884 = vmatprep.subr.mxu0 0.0
    %3885 = vmatpush1.xpose.msra.mxu0 0.0
    %3886 = vmatprep.subr.mxu0 %v961
    %3887 = vmatpush1.xpose.msra.mxu0 %v959
    %3888 = vmatprep.subr.mxu0 0.0
    %3889 = vmatpush2.xpose.msra.mxu0 0.0
    %3890 = vmatprep.subr.mxu0 0.0
    %3891 = vmatpush2.xpose.msra.mxu0 0.0
    %3892 = vmatprep.subr.mxu0 0.0
    %3893 = vmatpush2.xpose.msra.mxu0 0.0
    %3894 = vmatprep.subr.mxu0 0.0
    %3895 = vmatpush2.xpose.msra.mxu0 0.0
    %3896 = vmatprep.subr.mxu0 0.0
    %3897 = vmatpush2.xpose.msra.mxu0 0.0
    %3898 = vmatprep.subr.mxu0 0.0
    %3899 = vmatpush2.xpose.msra.mxu0 0.0
    %3900 = vmatprep.subr.mxu0 0.0
    %3901 = vmatpush2.xpose.msra.mxu0 0.0
    %3902 = vmatprep.subr.mxu0 0.0
    %3903 = vmatpush2.xpose.msra.mxu0 0.0
    %3904 = vmatprep.subr.mxu0 0.0
    %3905 = vmatpush2.xpose.msra.mxu0 0.0
    %3906 = vmatprep.subr.mxu0 0.0
    %3907 = vmatpush2.xpose.msra.mxu0 0.0
    %3908 = vmatprep.subr.mxu0 0.0
    %3909 = vmatpush2.xpose.msra.mxu0 0.0
    %3910 = vmatprep.subr.mxu0 0.0
    %3911 = vmatpush2.xpose.msra.mxu0 0.0
    %3912 = vmatprep.subr.mxu0 0.0
    %3913 = vmatpush2.xpose.msra.mxu0 0.0
    %3914 = vmatprep.subr.mxu0 0.0
    %3915 = vmatpush2.xpose.msra.mxu0 0.0
    %3916 = vmatprep.subr.mxu0 0.0
    %3917 = vmatpush2.xpose.msra.mxu0 0.0
    %3918 = vmatprep.subr.mxu0 0.0
    %3919 = vmatpush2.xpose.msra.mxu0 0.0
    %3920 = vmatprep.mubr.f32.mxu0 %v433
    %3921 = vmatmul.mubr.f32.gmra.mxu0 %v431
    %v3922 = vpop.f32.mrf.mxu0
    %v3923 = vadd.f32 %v3853, %v3922
    %v3924 = vpop.f32.mrf.mxu0
    %3925 = vdwg.mxu0
    %3926 = vmatprep.subr.mxu0 0.0
    %3927 = vmatpush1.xpose.msra.mxu0 0.0
    %3928 = vmatprep.subr.mxu0 0.0
    %3929 = vmatpush1.xpose.msra.mxu0 0.0
    %3930 = vmatprep.subr.mxu0 0.0
    %3931 = vmatpush1.xpose.msra.mxu0 0.0
    %3932 = vmatprep.subr.mxu0 0.0
    %3933 = vmatpush1.xpose.msra.mxu0 0.0
    %3934 = vmatprep.subr.mxu0 0.0
    %3935 = vmatpush1.xpose.msra.mxu0 0.0
    %3936 = vmatprep.subr.mxu0 0.0
    %3937 = vmatpush1.xpose.msra.mxu0 0.0
    %3938 = vmatprep.subr.mxu0 0.0
    %3939 = vmatpush1.xpose.msra.mxu0 0.0
    %3940 = vmatprep.subr.mxu0 0.0
    %3941 = vmatpush1.xpose.msra.mxu0 0.0
    %3942 = vmatprep.subr.mxu0 0.0
    %3943 = vmatpush1.xpose.msra.mxu0 0.0
    %3944 = vmatprep.subr.mxu0 0.0
    %3945 = vmatpush1.xpose.msra.mxu0 0.0
    %3946 = vmatprep.subr.mxu0 0.0
    %3947 = vmatpush1.xpose.msra.mxu0 0.0
    %3948 = vmatprep.subr.mxu0 0.0
    %3949 = vmatpush1.xpose.msra.mxu0 0.0
    %3950 = vmatprep.subr.mxu0 0.0
    %3951 = vmatpush1.xpose.msra.mxu0 0.0
    %3952 = vmatprep.subr.mxu0 0.0
    %3953 = vmatpush1.xpose.msra.mxu0 0.0
    %3954 = vmatprep.subr.mxu0 0.0
    %3955 = vmatpush1.xpose.msra.mxu0 0.0
    %3956 = vmatprep.subr.mxu0 %v977
    %3957 = vmatpush1.xpose.msra.mxu0 %v969
    %3958 = vmatprep.subr.mxu0 0.0
    %3959 = vmatpush2.xpose.msra.mxu0 0.0
    %3960 = vmatprep.subr.mxu0 0.0
    %3961 = vmatpush2.xpose.msra.mxu0 0.0
    %3962 = vmatprep.subr.mxu0 0.0
    %3963 = vmatpush2.xpose.msra.mxu0 0.0
    %3964 = vmatprep.subr.mxu0 0.0
    %3965 = vmatpush2.xpose.msra.mxu0 0.0
    %3966 = vmatprep.subr.mxu0 0.0
    %3967 = vmatpush2.xpose.msra.mxu0 0.0
    %3968 = vmatprep.subr.mxu0 0.0
    %3969 = vmatpush2.xpose.msra.mxu0 0.0
    %3970 = vmatprep.subr.mxu0 0.0
    %3971 = vmatpush2.xpose.msra.mxu0 0.0
    %3972 = vmatprep.subr.mxu0 0.0
    %3973 = vmatpush2.xpose.msra.mxu0 0.0
    %3974 = vmatprep.subr.mxu0 0.0
    %3975 = vmatpush2.xpose.msra.mxu0 0.0
    %3976 = vmatprep.subr.mxu0 0.0
    %3977 = vmatpush2.xpose.msra.mxu0 0.0
    %3978 = vmatprep.subr.mxu0 0.0
    %3979 = vmatpush2.xpose.msra.mxu0 0.0
    %3980 = vmatprep.subr.mxu0 0.0
    %3981 = vmatpush2.xpose.msra.mxu0 0.0
    %3982 = vmatprep.subr.mxu0 0.0
    %3983 = vmatpush2.xpose.msra.mxu0 0.0
    %3984 = vmatprep.subr.mxu0 0.0
    %3985 = vmatpush2.xpose.msra.mxu0 0.0
    %3986 = vmatprep.subr.mxu0 0.0
    %3987 = vmatpush2.xpose.msra.mxu0 0.0
    %3988 = vmatprep.subr.mxu0 0.0
    %3989 = vmatpush2.xpose.msra.mxu0 0.0
    %3990 = vmatprep.mubr.f32.mxu0 %v449
    %3991 = vmatmul.mubr.f32.gmra.mxu0 %v441
    %v3992 = vpop.f32.mrf.mxu0
    %v3993 = vadd.f32 %v3923, %v3992
    %v3994 = vpop.f32.mrf.mxu0
    %3995 = vdwg.mxu0
    %3996 = vmatprep.subr.mxu0 0.0
    %3997 = vmatpush1.xpose.msra.mxu0 0.0
    %3998 = vmatprep.subr.mxu0 0.0
    %3999 = vmatpush1.xpose.msra.mxu0 0.0
    %4000 = vmatprep.subr.mxu0 0.0
    %4001 = vmatpush1.xpose.msra.mxu0 0.0
    %4002 = vmatprep.subr.mxu0 0.0
    %4003 = vmatpush1.xpose.msra.mxu0 0.0
    %4004 = vmatprep.subr.mxu0 0.0
    %4005 = vmatpush1.xpose.msra.mxu0 0.0
    %4006 = vmatprep.subr.mxu0 0.0
    %4007 = vmatpush1.xpose.msra.mxu0 0.0
    %4008 = vmatprep.subr.mxu0 0.0
    %4009 = vmatpush1.xpose.msra.mxu0 0.0
    %4010 = vmatprep.subr.mxu0 0.0
    %4011 = vmatpush1.xpose.msra.mxu0 0.0
    %4012 = vmatprep.subr.mxu0 0.0
    %4013 = vmatpush1.xpose.msra.mxu0 0.0
    %4014 = vmatprep.subr.mxu0 0.0
    %4015 = vmatpush1.xpose.msra.mxu0 0.0
    %4016 = vmatprep.subr.mxu0 0.0
    %4017 = vmatpush1.xpose.msra.mxu0 0.0
    %4018 = vmatprep.subr.mxu0 0.0
    %4019 = vmatpush1.xpose.msra.mxu0 0.0
    %4020 = vmatprep.subr.mxu0 0.0
    %4021 = vmatpush1.xpose.msra.mxu0 0.0
    %4022 = vmatprep.subr.mxu0 0.0
    %4023 = vmatpush1.xpose.msra.mxu0 0.0
    %4024 = vmatprep.subr.mxu0 0.0
    %4025 = vmatpush1.xpose.msra.mxu0 0.0
    %4026 = vmatprep.subr.mxu0 %v978
    %4027 = vmatpush1.xpose.msra.mxu0 %v976
    %4028 = vmatprep.subr.mxu0 0.0
    %4029 = vmatpush2.xpose.msra.mxu0 0.0
    %4030 = vmatprep.subr.mxu0 0.0
    %4031 = vmatpush2.xpose.msra.mxu0 0.0
    %4032 = vmatprep.subr.mxu0 0.0
    %4033 = vmatpush2.xpose.msra.mxu0 0.0
    %4034 = vmatprep.subr.mxu0 0.0
    %4035 = vmatpush2.xpose.msra.mxu0 0.0
    %4036 = vmatprep.subr.mxu0 0.0
    %4037 = vmatpush2.xpose.msra.mxu0 0.0
    %4038 = vmatprep.subr.mxu0 0.0
    %4039 = vmatpush2.xpose.msra.mxu0 0.0
    %4040 = vmatprep.subr.mxu0 0.0
    %4041 = vmatpush2.xpose.msra.mxu0 0.0
    %4042 = vmatprep.subr.mxu0 0.0
    %4043 = vmatpush2.xpose.msra.mxu0 0.0
    %4044 = vmatprep.subr.mxu0 0.0
    %4045 = vmatpush2.xpose.msra.mxu0 0.0
    %4046 = vmatprep.subr.mxu0 0.0
    %4047 = vmatpush2.xpose.msra.mxu0 0.0
    %4048 = vmatprep.subr.mxu0 0.0
    %4049 = vmatpush2.xpose.msra.mxu0 0.0
    %4050 = vmatprep.subr.mxu0 0.0
    %4051 = vmatpush2.xpose.msra.mxu0 0.0
    %4052 = vmatprep.subr.mxu0 0.0
    %4053 = vmatpush2.xpose.msra.mxu0 0.0
    %4054 = vmatprep.subr.mxu0 0.0
    %4055 = vmatpush2.xpose.msra.mxu0 0.0
    %4056 = vmatprep.subr.mxu0 0.0
    %4057 = vmatpush2.xpose.msra.mxu0 0.0
    %4058 = vmatprep.subr.mxu0 0.0
    %4059 = vmatpush2.xpose.msra.mxu0 0.0
    %4060 = vmatprep.mubr.f32.mxu0 %v450
    %4061 = vmatmul.mubr.f32.gmra.mxu0 %v448
    %v4062 = vpop.f32.mrf.mxu0
    %v4063 = vadd.f32 %v3993, %v4062
    %v4064 = vpop.f32.mrf.mxu0
    %4065 = vdwg.mxu0
    %4066 = vmatprep.subr.mxu0 0.0
    %4067 = vmatpush1.xpose.msra.mxu0 0.0
    %4068 = vmatprep.subr.mxu0 0.0
    %4069 = vmatpush1.xpose.msra.mxu0 0.0
    %4070 = vmatprep.subr.mxu0 0.0
    %4071 = vmatpush1.xpose.msra.mxu0 0.0
    %4072 = vmatprep.subr.mxu0 0.0
    %4073 = vmatpush1.xpose.msra.mxu0 0.0
    %4074 = vmatprep.subr.mxu0 0.0
    %4075 = vmatpush1.xpose.msra.mxu0 0.0
    %4076 = vmatprep.subr.mxu0 0.0
    %4077 = vmatpush1.xpose.msra.mxu0 0.0
    %4078 = vmatprep.subr.mxu0 0.0
    %4079 = vmatpush1.xpose.msra.mxu0 0.0
    %4080 = vmatprep.subr.mxu0 0.0
    %4081 = vmatpush1.xpose.msra.mxu0 0.0
    %4082 = vmatprep.subr.mxu0 0.0
    %4083 = vmatpush1.xpose.msra.mxu0 0.0
    %4084 = vmatprep.subr.mxu0 0.0
    %4085 = vmatpush1.xpose.msra.mxu0 0.0
    %4086 = vmatprep.subr.mxu0 0.0
    %4087 = vmatpush1.xpose.msra.mxu0 0.0
    %4088 = vmatprep.subr.mxu0 0.0
    %4089 = vmatpush1.xpose.msra.mxu0 0.0
    %4090 = vmatprep.subr.mxu0 0.0
    %4091 = vmatpush1.xpose.msra.mxu0 0.0
    %4092 = vmatprep.subr.mxu0 0.0
    %4093 = vmatpush1.xpose.msra.mxu0 0.0
    %4094 = vmatprep.subr.mxu0 0.0
    %4095 = vmatpush1.xpose.msra.mxu0 0.0
    %4096 = vmatprep.subr.mxu0 %v994
    %4097 = vmatpush1.xpose.msra.mxu0 %v986
    %4098 = vmatprep.subr.mxu0 0.0
    %4099 = vmatpush2.xpose.msra.mxu0 0.0
    %4100 = vmatprep.subr.mxu0 0.0
    %4101 = vmatpush2.xpose.msra.mxu0 0.0
    %4102 = vmatprep.subr.mxu0 0.0
    %4103 = vmatpush2.xpose.msra.mxu0 0.0
    %4104 = vmatprep.subr.mxu0 0.0
    %4105 = vmatpush2.xpose.msra.mxu0 0.0
    %4106 = vmatprep.subr.mxu0 0.0
    %4107 = vmatpush2.xpose.msra.mxu0 0.0
    %4108 = vmatprep.subr.mxu0 0.0
    %4109 = vmatpush2.xpose.msra.mxu0 0.0
    %4110 = vmatprep.subr.mxu0 0.0
    %4111 = vmatpush2.xpose.msra.mxu0 0.0
    %4112 = vmatprep.subr.mxu0 0.0
    %4113 = vmatpush2.xpose.msra.mxu0 0.0
    %4114 = vmatprep.subr.mxu0 0.0
    %4115 = vmatpush2.xpose.msra.mxu0 0.0
    %4116 = vmatprep.subr.mxu0 0.0
    %4117 = vmatpush2.xpose.msra.mxu0 0.0
    %4118 = vmatprep.subr.mxu0 0.0
    %4119 = vmatpush2.xpose.msra.mxu0 0.0
    %4120 = vmatprep.subr.mxu0 0.0
    %4121 = vmatpush2.xpose.msra.mxu0 0.0
    %4122 = vmatprep.subr.mxu0 0.0
    %4123 = vmatpush2.xpose.msra.mxu0 0.0
    %4124 = vmatprep.subr.mxu0 0.0
    %4125 = vmatpush2.xpose.msra.mxu0 0.0
    %4126 = vmatprep.subr.mxu0 0.0
    %4127 = vmatpush2.xpose.msra.mxu0 0.0
    %4128 = vmatprep.subr.mxu0 0.0
    %4129 = vmatpush2.xpose.msra.mxu0 0.0
    %4130 = vmatprep.mubr.f32.mxu0 %v466
    %4131 = vmatmul.mubr.f32.gmra.mxu0 %v458
    %v4132 = vpop.f32.mrf.mxu0
    %v4133 = vadd.f32 %v4063, %v4132
    %v4134 = vpop.f32.mrf.mxu0
    %4135 = vdwg.mxu0
    %4136 = vmatprep.subr.mxu0 0.0
    %4137 = vmatpush1.xpose.msra.mxu0 0.0
    %4138 = vmatprep.subr.mxu0 0.0
    %4139 = vmatpush1.xpose.msra.mxu0 0.0
    %4140 = vmatprep.subr.mxu0 0.0
    %4141 = vmatpush1.xpose.msra.mxu0 0.0
    %4142 = vmatprep.subr.mxu0 0.0
    %4143 = vmatpush1.xpose.msra.mxu0 0.0
    %4144 = vmatprep.subr.mxu0 0.0
    %4145 = vmatpush1.xpose.msra.mxu0 0.0
    %4146 = vmatprep.subr.mxu0 0.0
    %4147 = vmatpush1.xpose.msra.mxu0 0.0
    %4148 = vmatprep.subr.mxu0 0.0
    %4149 = vmatpush1.xpose.msra.mxu0 0.0
    %4150 = vmatprep.subr.mxu0 0.0
    %4151 = vmatpush1.xpose.msra.mxu0 0.0
    %4152 = vmatprep.subr.mxu0 0.0
    %4153 = vmatpush1.xpose.msra.mxu0 0.0
    %4154 = vmatprep.subr.mxu0 0.0
    %4155 = vmatpush1.xpose.msra.mxu0 0.0
    %4156 = vmatprep.subr.mxu0 0.0
    %4157 = vmatpush1.xpose.msra.mxu0 0.0
    %4158 = vmatprep.subr.mxu0 0.0
    %4159 = vmatpush1.xpose.msra.mxu0 0.0
    %4160 = vmatprep.subr.mxu0 0.0
    %4161 = vmatpush1.xpose.msra.mxu0 0.0
    %4162 = vmatprep.subr.mxu0 0.0
    %4163 = vmatpush1.xpose.msra.mxu0 0.0
    %4164 = vmatprep.subr.mxu0 0.0
    %4165 = vmatpush1.xpose.msra.mxu0 0.0
    %4166 = vmatprep.subr.mxu0 %v995
    %4167 = vmatpush1.xpose.msra.mxu0 %v993
    %4168 = vmatprep.subr.mxu0 0.0
    %4169 = vmatpush2.xpose.msra.mxu0 0.0
    %4170 = vmatprep.subr.mxu0 0.0
    %4171 = vmatpush2.xpose.msra.mxu0 0.0
    %4172 = vmatprep.subr.mxu0 0.0
    %4173 = vmatpush2.xpose.msra.mxu0 0.0
    %4174 = vmatprep.subr.mxu0 0.0
    %4175 = vmatpush2.xpose.msra.mxu0 0.0
    %4176 = vmatprep.subr.mxu0 0.0
    %4177 = vmatpush2.xpose.msra.mxu0 0.0
    %4178 = vmatprep.subr.mxu0 0.0
    %4179 = vmatpush2.xpose.msra.mxu0 0.0
    %4180 = vmatprep.subr.mxu0 0.0
    %4181 = vmatpush2.xpose.msra.mxu0 0.0
    %4182 = vmatprep.subr.mxu0 0.0
    %4183 = vmatpush2.xpose.msra.mxu0 0.0
    %4184 = vmatprep.subr.mxu0 0.0
    %4185 = vmatpush2.xpose.msra.mxu0 0.0
    %4186 = vmatprep.subr.mxu0 0.0
    %4187 = vmatpush2.xpose.msra.mxu0 0.0
    %4188 = vmatprep.subr.mxu0 0.0
    %4189 = vmatpush2.xpose.msra.mxu0 0.0
    %4190 = vmatprep.subr.mxu0 0.0
    %4191 = vmatpush2.xpose.msra.mxu0 0.0
    %4192 = vmatprep.subr.mxu0 0.0
    %4193 = vmatpush2.xpose.msra.mxu0 0.0
    %4194 = vmatprep.subr.mxu0 0.0
    %4195 = vmatpush2.xpose.msra.mxu0 0.0
    %4196 = vmatprep.subr.mxu0 0.0
    %4197 = vmatpush2.xpose.msra.mxu0 0.0
    %4198 = vmatprep.subr.mxu0 0.0
    %4199 = vmatpush2.xpose.msra.mxu0 0.0
    %4200 = vmatprep.mubr.f32.mxu0 %v467
    %4201 = vmatmul.mubr.f32.gmra.mxu0 %v465
    %v4202 = vpop.f32.mrf.mxu0
    %v4203 = vadd.f32 %v4133, %v4202
    %v4204 = vpop.f32.mrf.mxu0
    %4205 = vdwg.mxu0
    %4206 = vmatprep.subr.mxu0 0.0
    %4207 = vmatpush1.xpose.msra.mxu0 0.0
    %4208 = vmatprep.subr.mxu0 0.0
    %4209 = vmatpush1.xpose.msra.mxu0 0.0
    %4210 = vmatprep.subr.mxu0 0.0
    %4211 = vmatpush1.xpose.msra.mxu0 0.0
    %4212 = vmatprep.subr.mxu0 0.0
    %4213 = vmatpush1.xpose.msra.mxu0 0.0
    %4214 = vmatprep.subr.mxu0 0.0
    %4215 = vmatpush1.xpose.msra.mxu0 0.0
    %4216 = vmatprep.subr.mxu0 0.0
    %4217 = vmatpush1.xpose.msra.mxu0 0.0
    %4218 = vmatprep.subr.mxu0 0.0
    %4219 = vmatpush1.xpose.msra.mxu0 0.0
    %4220 = vmatprep.subr.mxu0 0.0
    %4221 = vmatpush1.xpose.msra.mxu0 0.0
    %4222 = vmatprep.subr.mxu0 0.0
    %4223 = vmatpush1.xpose.msra.mxu0 0.0
    %4224 = vmatprep.subr.mxu0 0.0
    %4225 = vmatpush1.xpose.msra.mxu0 0.0
    %4226 = vmatprep.subr.mxu0 0.0
    %4227 = vmatpush1.xpose.msra.mxu0 0.0
    %4228 = vmatprep.subr.mxu0 0.0
    %4229 = vmatpush1.xpose.msra.mxu0 0.0
    %4230 = vmatprep.subr.mxu0 0.0
    %4231 = vmatpush1.xpose.msra.mxu0 0.0
    %4232 = vmatprep.subr.mxu0 0.0
    %4233 = vmatpush1.xpose.msra.mxu0 0.0
    %4234 = vmatprep.subr.mxu0 0.0
    %4235 = vmatpush1.xpose.msra.mxu0 0.0
    %4236 = vmatprep.subr.mxu0 %v1011
    %4237 = vmatpush1.xpose.msra.mxu0 %v1003
    %4238 = vmatprep.subr.mxu0 0.0
    %4239 = vmatpush2.xpose.msra.mxu0 0.0
    %4240 = vmatprep.subr.mxu0 0.0
    %4241 = vmatpush2.xpose.msra.mxu0 0.0
    %4242 = vmatprep.subr.mxu0 0.0
    %4243 = vmatpush2.xpose.msra.mxu0 0.0
    %4244 = vmatprep.subr.mxu0 0.0
    %4245 = vmatpush2.xpose.msra.mxu0 0.0
    %4246 = vmatprep.subr.mxu0 0.0
    %4247 = vmatpush2.xpose.msra.mxu0 0.0
    %4248 = vmatprep.subr.mxu0 0.0
    %4249 = vmatpush2.xpose.msra.mxu0 0.0
    %4250 = vmatprep.subr.mxu0 0.0
    %4251 = vmatpush2.xpose.msra.mxu0 0.0
    %4252 = vmatprep.subr.mxu0 0.0
    %4253 = vmatpush2.xpose.msra.mxu0 0.0
    %4254 = vmatprep.subr.mxu0 0.0
    %4255 = vmatpush2.xpose.msra.mxu0 0.0
    %4256 = vmatprep.subr.mxu0 0.0
    %4257 = vmatpush2.xpose.msra.mxu0 0.0
    %4258 = vmatprep.subr.mxu0 0.0
    %4259 = vmatpush2.xpose.msra.mxu0 0.0
    %4260 = vmatprep.subr.mxu0 0.0
    %4261 = vmatpush2.xpose.msra.mxu0 0.0
    %4262 = vmatprep.subr.mxu0 0.0
    %4263 = vmatpush2.xpose.msra.mxu0 0.0
    %4264 = vmatprep.subr.mxu0 0.0
    %4265 = vmatpush2.xpose.msra.mxu0 0.0
    %4266 = vmatprep.subr.mxu0 0.0
    %4267 = vmatpush2.xpose.msra.mxu0 0.0
    %4268 = vmatprep.subr.mxu0 0.0
    %4269 = vmatpush2.xpose.msra.mxu0 0.0
    %4270 = vmatprep.mubr.f32.mxu0 %v483
    %4271 = vmatmul.mubr.f32.gmra.mxu0 %v475
    %v4272 = vpop.f32.mrf.mxu0
    %v4273 = vadd.f32 %v4203, %v4272
    %v4274 = vpop.f32.mrf.mxu0
    %4275 = vdwg.mxu0
    %4276 = vmatprep.subr.mxu0 0.0
    %4277 = vmatpush1.xpose.msra.mxu0 0.0
    %4278 = vmatprep.subr.mxu0 0.0
    %4279 = vmatpush1.xpose.msra.mxu0 0.0
    %4280 = vmatprep.subr.mxu0 0.0
    %4281 = vmatpush1.xpose.msra.mxu0 0.0
    %4282 = vmatprep.subr.mxu0 0.0
    %4283 = vmatpush1.xpose.msra.mxu0 0.0
    %4284 = vmatprep.subr.mxu0 0.0
    %4285 = vmatpush1.xpose.msra.mxu0 0.0
    %4286 = vmatprep.subr.mxu0 0.0
    %4287 = vmatpush1.xpose.msra.mxu0 0.0
    %4288 = vmatprep.subr.mxu0 0.0
    %4289 = vmatpush1.xpose.msra.mxu0 0.0
    %4290 = vmatprep.subr.mxu0 0.0
    %4291 = vmatpush1.xpose.msra.mxu0 0.0
    %4292 = vmatprep.subr.mxu0 0.0
    %4293 = vmatpush1.xpose.msra.mxu0 0.0
    %4294 = vmatprep.subr.mxu0 0.0
    %4295 = vmatpush1.xpose.msra.mxu0 0.0
    %4296 = vmatprep.subr.mxu0 0.0
    %4297 = vmatpush1.xpose.msra.mxu0 0.0
    %4298 = vmatprep.subr.mxu0 0.0
    %4299 = vmatpush1.xpose.msra.mxu0 0.0
    %4300 = vmatprep.subr.mxu0 0.0
    %4301 = vmatpush1.xpose.msra.mxu0 0.0
    %4302 = vmatprep.subr.mxu0 0.0
    %4303 = vmatpush1.xpose.msra.mxu0 0.0
    %4304 = vmatprep.subr.mxu0 0.0
    %4305 = vmatpush1.xpose.msra.mxu0 0.0
    %4306 = vmatprep.subr.mxu0 %v1012
    %4307 = vmatpush1.xpose.msra.mxu0 %v1010
    %4308 = vmatprep.subr.mxu0 0.0
    %4309 = vmatpush2.xpose.msra.mxu0 0.0
    %4310 = vmatprep.subr.mxu0 0.0
    %4311 = vmatpush2.xpose.msra.mxu0 0.0
    %4312 = vmatprep.subr.mxu0 0.0
    %4313 = vmatpush2.xpose.msra.mxu0 0.0
    %4314 = vmatprep.subr.mxu0 0.0
    %4315 = vmatpush2.xpose.msra.mxu0 0.0
    %4316 = vmatprep.subr.mxu0 0.0
    %4317 = vmatpush2.xpose.msra.mxu0 0.0
    %4318 = vmatprep.subr.mxu0 0.0
    %4319 = vmatpush2.xpose.msra.mxu0 0.0
    %4320 = vmatprep.subr.mxu0 0.0
    %4321 = vmatpush2.xpose.msra.mxu0 0.0
    %4322 = vmatprep.subr.mxu0 0.0
    %4323 = vmatpush2.xpose.msra.mxu0 0.0
    %4324 = vmatprep.subr.mxu0 0.0
    %4325 = vmatpush2.xpose.msra.mxu0 0.0
    %4326 = vmatprep.subr.mxu0 0.0
    %4327 = vmatpush2.xpose.msra.mxu0 0.0
    %4328 = vmatprep.subr.mxu0 0.0
    %4329 = vmatpush2.xpose.msra.mxu0 0.0
    %4330 = vmatprep.subr.mxu0 0.0
    %4331 = vmatpush2.xpose.msra.mxu0 0.0
    %4332 = vmatprep.subr.mxu0 0.0
    %4333 = vmatpush2.xpose.msra.mxu0 0.0
    %4334 = vmatprep.subr.mxu0 0.0
    %4335 = vmatpush2.xpose.msra.mxu0 0.0
    %4336 = vmatprep.subr.mxu0 0.0
    %4337 = vmatpush2.xpose.msra.mxu0 0.0
    %4338 = vmatprep.subr.mxu0 0.0
    %4339 = vmatpush2.xpose.msra.mxu0 0.0
    %4340 = vmatprep.mubr.f32.mxu0 %v484
    %4341 = vmatmul.mubr.f32.gmra.mxu0 %v482
    %v4342 = vpop.f32.mrf.mxu0
    %v4343 = vadd.f32 %v4273, %v4342
    %v4344 = vpop.f32.mrf.mxu0
    %4345 = vdwg.mxu0
    %4346 = vmatprep.subr.mxu0 0.0
    %4347 = vmatpush1.xpose.msra.mxu0 0.0
    %4348 = vmatprep.subr.mxu0 0.0
    %4349 = vmatpush1.xpose.msra.mxu0 0.0
    %4350 = vmatprep.subr.mxu0 0.0
    %4351 = vmatpush1.xpose.msra.mxu0 0.0
    %4352 = vmatprep.subr.mxu0 0.0
    %4353 = vmatpush1.xpose.msra.mxu0 0.0
    %4354 = vmatprep.subr.mxu0 0.0
    %4355 = vmatpush1.xpose.msra.mxu0 0.0
    %4356 = vmatprep.subr.mxu0 0.0
    %4357 = vmatpush1.xpose.msra.mxu0 0.0
    %4358 = vmatprep.subr.mxu0 0.0
    %4359 = vmatpush1.xpose.msra.mxu0 0.0
    %4360 = vmatprep.subr.mxu0 0.0
    %4361 = vmatpush1.xpose.msra.mxu0 0.0
    %4362 = vmatprep.subr.mxu0 0.0
    %4363 = vmatpush1.xpose.msra.mxu0 0.0
    %4364 = vmatprep.subr.mxu0 0.0
    %4365 = vmatpush1.xpose.msra.mxu0 0.0
    %4366 = vmatprep.subr.mxu0 0.0
    %4367 = vmatpush1.xpose.msra.mxu0 0.0
    %4368 = vmatprep.subr.mxu0 0.0
    %4369 = vmatpush1.xpose.msra.mxu0 0.0
    %4370 = vmatprep.subr.mxu0 0.0
    %4371 = vmatpush1.xpose.msra.mxu0 0.0
    %4372 = vmatprep.subr.mxu0 0.0
    %4373 = vmatpush1.xpose.msra.mxu0 0.0
    %4374 = vmatprep.subr.mxu0 0.0
    %4375 = vmatpush1.xpose.msra.mxu0 0.0
    %4376 = vmatprep.subr.mxu0 %v1028
    %4377 = vmatpush1.xpose.msra.mxu0 %v1020
    %4378 = vmatprep.subr.mxu0 0.0
    %4379 = vmatpush2.xpose.msra.mxu0 0.0
    %4380 = vmatprep.subr.mxu0 0.0
    %4381 = vmatpush2.xpose.msra.mxu0 0.0
    %4382 = vmatprep.subr.mxu0 0.0
    %4383 = vmatpush2.xpose.msra.mxu0 0.0
    %4384 = vmatprep.subr.mxu0 0.0
    %4385 = vmatpush2.xpose.msra.mxu0 0.0
    %4386 = vmatprep.subr.mxu0 0.0
    %4387 = vmatpush2.xpose.msra.mxu0 0.0
    %4388 = vmatprep.subr.mxu0 0.0
    %4389 = vmatpush2.xpose.msra.mxu0 0.0
    %4390 = vmatprep.subr.mxu0 0.0
    %4391 = vmatpush2.xpose.msra.mxu0 0.0
    %4392 = vmatprep.subr.mxu0 0.0
    %4393 = vmatpush2.xpose.msra.mxu0 0.0
    %4394 = vmatprep.subr.mxu0 0.0
    %4395 = vmatpush2.xpose.msra.mxu0 0.0
    %4396 = vmatprep.subr.mxu0 0.0
    %4397 = vmatpush2.xpose.msra.mxu0 0.0
    %4398 = vmatprep.subr.mxu0 0.0
    %4399 = vmatpush2.xpose.msra.mxu0 0.0
    %4400 = vmatprep.subr.mxu0 0.0
    %4401 = vmatpush2.xpose.msra.mxu0 0.0
    %4402 = vmatprep.subr.mxu0 0.0
    %4403 = vmatpush2.xpose.msra.mxu0 0.0
    %4404 = vmatprep.subr.mxu0 0.0
    %4405 = vmatpush2.xpose.msra.mxu0 0.0
    %4406 = vmatprep.subr.mxu0 0.0
    %4407 = vmatpush2.xpose.msra.mxu0 0.0
    %4408 = vmatprep.subr.mxu0 0.0
    %4409 = vmatpush2.xpose.msra.mxu0 0.0
    %4410 = vmatprep.mubr.f32.mxu0 %v500
    %4411 = vmatmul.mubr.f32.gmra.mxu0 %v492
    %v4412 = vpop.f32.mrf.mxu0
    %v4413 = vadd.f32 %v4343, %v4412
    %v4414 = vpop.f32.mrf.mxu0
    %4415 = vdwg.mxu0
    %4416 = vmatprep.subr.mxu0 0.0
    %4417 = vmatpush1.xpose.msra.mxu0 0.0
    %4418 = vmatprep.subr.mxu0 0.0
    %4419 = vmatpush1.xpose.msra.mxu0 0.0
    %4420 = vmatprep.subr.mxu0 0.0
    %4421 = vmatpush1.xpose.msra.mxu0 0.0
    %4422 = vmatprep.subr.mxu0 0.0
    %4423 = vmatpush1.xpose.msra.mxu0 0.0
    %4424 = vmatprep.subr.mxu0 0.0
    %4425 = vmatpush1.xpose.msra.mxu0 0.0
    %4426 = vmatprep.subr.mxu0 0.0
    %4427 = vmatpush1.xpose.msra.mxu0 0.0
    %4428 = vmatprep.subr.mxu0 0.0
    %4429 = vmatpush1.xpose.msra.mxu0 0.0
    %4430 = vmatprep.subr.mxu0 0.0
    %4431 = vmatpush1.xpose.msra.mxu0 0.0
    %4432 = vmatprep.subr.mxu0 0.0
    %4433 = vmatpush1.xpose.msra.mxu0 0.0
    %4434 = vmatprep.subr.mxu0 0.0
    %4435 = vmatpush1.xpose.msra.mxu0 0.0
    %4436 = vmatprep.subr.mxu0 0.0
    %4437 = vmatpush1.xpose.msra.mxu0 0.0
    %4438 = vmatprep.subr.mxu0 0.0
    %4439 = vmatpush1.xpose.msra.mxu0 0.0
    %4440 = vmatprep.subr.mxu0 0.0
    %4441 = vmatpush1.xpose.msra.mxu0 0.0
    %4442 = vmatprep.subr.mxu0 0.0
    %4443 = vmatpush1.xpose.msra.mxu0 0.0
    %4444 = vmatprep.subr.mxu0 0.0
    %4445 = vmatpush1.xpose.msra.mxu0 0.0
    %4446 = vmatprep.subr.mxu0 %v1029
    %4447 = vmatpush1.xpose.msra.mxu0 %v1027
    %4448 = vmatprep.subr.mxu0 0.0
    %4449 = vmatpush2.xpose.msra.mxu0 0.0
    %4450 = vmatprep.subr.mxu0 0.0
    %4451 = vmatpush2.xpose.msra.mxu0 0.0
    %4452 = vmatprep.subr.mxu0 0.0
    %4453 = vmatpush2.xpose.msra.mxu0 0.0
    %4454 = vmatprep.subr.mxu0 0.0
    %4455 = vmatpush2.xpose.msra.mxu0 0.0
    %4456 = vmatprep.subr.mxu0 0.0
    %4457 = vmatpush2.xpose.msra.mxu0 0.0
    %4458 = vmatprep.subr.mxu0 0.0
    %4459 = vmatpush2.xpose.msra.mxu0 0.0
    %4460 = vmatprep.subr.mxu0 0.0
    %4461 = vmatpush2.xpose.msra.mxu0 0.0
    %4462 = vmatprep.subr.mxu0 0.0
    %4463 = vmatpush2.xpose.msra.mxu0 0.0
    %4464 = vmatprep.subr.mxu0 0.0
    %4465 = vmatpush2.xpose.msra.mxu0 0.0
    %4466 = vmatprep.subr.mxu0 0.0
    %4467 = vmatpush2.xpose.msra.mxu0 0.0
    %4468 = vmatprep.subr.mxu0 0.0
    %4469 = vmatpush2.xpose.msra.mxu0 0.0
    %4470 = vmatprep.subr.mxu0 0.0
    %4471 = vmatpush2.xpose.msra.mxu0 0.0
    %4472 = vmatprep.subr.mxu0 0.0
    %4473 = vmatpush2.xpose.msra.mxu0 0.0
    %4474 = vmatprep.subr.mxu0 0.0
    %4475 = vmatpush2.xpose.msra.mxu0 0.0
    %4476 = vmatprep.subr.mxu0 0.0
    %4477 = vmatpush2.xpose.msra.mxu0 0.0
    %4478 = vmatprep.subr.mxu0 0.0
    %4479 = vmatpush2.xpose.msra.mxu0 0.0
    %4480 = vmatprep.mubr.f32.mxu0 %v501
    %4481 = vmatmul.mubr.f32.gmra.mxu0 %v499
    %v4482 = vpop.f32.mrf.mxu0
    %v4483 = vadd.f32 %v4413, %v4482
    %v4484 = vpop.f32.mrf.mxu0
    %4485 = vdwg.mxu0
    %vm4486 = vcmask 9216
    %4487 = vst.msk [vmem:[#allocation2] sm:$0x3] %vm4486, %v4483
    // Predicated region
    $region14: #{dummy_inner_model_forward.1} parent=1 // pred_check
      _
    $region15: #{dummy_inner_model_forward.1} parent=1 // pred_check_branch
      %4489 = sbr.rel (0) target = $region17
    $region16: #{dummy_inner_model_forward.1} parent=1 // pred_region
      %s4491 = ssub.s32 32, 32
      %4492 = vsyncadd [#allocation3], %s4491
      %s4494 = sshll.u32 [#allocation2], 4
      %s4495 = int_to_ptr.vmem [resolvable:$true] %s4494
      %4497 = dma.vmem_to_hbm [thread:$0]  %s4495, 32, %s3, [#allocation3]
    $region17: #{dummy_inner_model_forward.1} parent=1 // pred_fallthru
      _
    // Predicated region
    $region18: #{dummy_inner_model_forward.1} parent=1 // pred_check
      _
    $region19: #{dummy_inner_model_forward.1} parent=1 // pred_check_branch
      %4499 = sbr.rel (0) target = $region21
    $region20: #{dummy_inner_model_forward.1} parent=1 // pred_region
      %4500 = dma.done [#allocation3], 32
    $region21: #{dummy_inner_model_forward.1} parent=1 // pred_fallthru
      _
    %4501 = vsyncpa [#allocation3], 1

</llo_original>
